<compile_context>
chip_gen: v7x
topology: tpu7x:2x2x1
jax: 0.10.0
libtpu: 0.0.40
codegen_flags: <defaults>
</compile_context>

<pallas_src>
import functools

import jax
import jax.numpy as jnp
from jax import lax
from jax.experimental import pallas as pl
from jax.experimental.pallas import tpu as pltpu

EPS = 1e-5
_VMEM_LIMIT = 32 * 1024 * 1024  # well under physical VMEM on v5e/v6e/v7x


# --------------------------------------------------------------------------------------
# In-kernel helpers
# --------------------------------------------------------------------------------------
def _folded_bn(stats, gamma, beta, n_rows):
    """stats: [2, C] = (sum, sum of squares) over all rows -> (scale, shift), each [1, C]."""
    inv_n = 1.0 / float(n_rows)
    mean = stats[0:1] * inv_n
    var = stats[1:2] * inv_n - mean * mean          # biased variance (matches torch BN fwd)
    scale = gamma * lax.rsqrt(var + EPS)
    shift = beta - mean * scale
    return scale, shift


def _accumulate_stats(stats_ref, h):
    """Accumulate per-channel sum and sum-of-squares of h ([rows, C], f32) into stats_ref [2, C]."""
    s = jnp.sum(h, axis=0, keepdims=True)
    q = jnp.sum(h * h, axis=0, keepdims=True)
    stats_ref[...] += jnp.concatenate([s, q], axis=0)


# --------------------------------------------------------------------------------------
# Kernels
# --------------------------------------------------------------------------------------
def _conv1_stats_kernel(x_ref, w_ref, h_ref, stats_ref):
    """Pass 1: 1x1 conv (bf16 operands, f32 accumulate) + BN1 stats accumulation."""
    @pl.when(pl.program_id(0) == 0)
    def _init():
        stats_ref[...] = jnp.zeros_like(stats_ref)

    h = jnp.dot(x_ref[...], w_ref[...], preferred_element_type=jnp.float32)
    h_ref[...] = h.astype(h_ref.dtype)              # bf16 store, stats from f32
    _accumulate_stats(stats_ref, h)


def _bn_conv3x3_stats_kernel(h1_ref, st1_ref, g1_ref, b1_ref, w2_ref,
                             h2_ref, st2_ref, *, n_rows, H, W, C):
    """Pass 2: folded BN1+ReLU, then 3x3 conv (pad=1) as one im2col matmul, + BN2 stats."""
    @pl.when(pl.program_id(0) == 0)
    def _init():
        st2_ref[...] = jnp.zeros_like(st2_ref)

    scale, shift = _folded_bn(st1_ref[...], g1_ref[...], b1_ref[...], n_rows)
    a = jnp.maximum(h1_ref[...] * scale + shift, 0.0).astype(jnp.bfloat16)   # [H*W, C]

    # Zero halo (padding=1) built at value level in bf16 -- no scratch round trip.
    a = a.reshape(H, W, C)
    zrow = jnp.zeros((1, W + 2, C), jnp.bfloat16)
    zcol = jnp.zeros((H, 1, C), jnp.bfloat16)
    ap = jnp.concatenate([zcol, a, zcol], axis=1)        # [H,   W+2, C]
    ap = jnp.concatenate([zrow, ap, zrow], axis=0)       # [H+2, W+2, C]

    # im2col: single matmul with K = 9*C instead of nine tiny-K matmuls.
    taps = [ap[ky:ky + H, kx:kx + W, :].reshape(H * W, C)
            for ky in range(3) for kx in range(3)]
    col = jnp.concatenate(taps, axis=-1)                 # [H*W, 9*C] bf16
    h2 = jnp.dot(col, w2_ref[...], preferred_element_type=jnp.float32)

    h2_ref[...] = h2.astype(h2_ref.dtype)                # bf16 store, stats from f32
    _accumulate_stats(st2_ref, h2)


def _bn_conv1_stats_kernel(h_ref, st_in_ref, g_ref, b_ref, w_ref,
                           o_ref, stats_ref, *, n_rows):
    """Pass 3: folded BN2+ReLU, then 1x1 conv, + BN3 stats accumulation."""
    @pl.when(pl.program_id(0) == 0)
    def _init():
        stats_ref[...] = jnp.zeros_like(stats_ref)

    scale, shift = _folded_bn(st_in_ref[...], g_ref[...], b_ref[...], n_rows)
    a = jnp.maximum(h_ref[...] * scale + shift, 0.0).astype(jnp.bfloat16)
    o = jnp.dot(a, w_ref[...], preferred_element_type=jnp.float32)
    o_ref[...] = o.astype(o_ref.dtype)                   # bf16 store, stats from f32
    _accumulate_stats(stats_ref, o)


def _bn_add_relu_kernel(h_ref, st_in_ref, g_ref, b_ref, x_ref, o_ref, *, n_rows):
    """Pass 4: folded BN3, residual add (identity, f32), ReLU. Fully parallel."""
    scale, shift = _folded_bn(st_in_ref[...], g_ref[...], b_ref[...], n_rows)
    o_ref[...] = jnp.maximum(h_ref[...] * scale + shift + x_ref[...], 0.0)


# --------------------------------------------------------------------------------------
# Wrapper
# --------------------------------------------------------------------------------------
def _pick_row_tile(rows, max_tile=1024):
    """Largest multiple-of-8 divisor of `rows` that is <= max_tile (fallback: full rows)."""
    t = (min(max_tile, rows) // 8) * 8
    while t >= 8:
        if rows % t == 0:
            return t
        t -= 8
    return rows


@functools.partial(jax.jit, static_argnames=("max_row_tile",))
def bottleneck_forward(x_nchw, w1_oihw, g1, b1, w2_oihw, g2, b2, w3_oihw, g3, b3,
                       *, max_row_tile=1024):
    """x_nchw: [N, Cin, H, W] f32, conv weights in PyTorch OIHW layout."""
    N, Cin, H, W = x_nchw.shape
    width = w1_oihw.shape[0]
    Cout = w3_oihw.shape[0]
    assert Cin == Cout, "identity shortcut requires inplanes == planes * expansion"
    R = N * H * W
    TR = _pick_row_tile(R, max_row_tile)

    # Layout plumbing (NCHW -> NHWC / [rows, C]); weights -> MXU-friendly layouts, bf16.
    x_nhwc = jnp.transpose(x_nchw, (0, 2, 3, 1)).astype(jnp.float32)
    x2d = x_nhwc.reshape(R, Cin)                                   # f32 for the residual
    x_bf = x2d.astype(jnp.bfloat16)                                # bf16 matmul operand
    w1 = jnp.transpose(w1_oihw[:, :, 0, 0], (1, 0)).astype(jnp.bfloat16)        # [Cin, width]
    w2 = jnp.transpose(w2_oihw, (2, 3, 1, 0)).reshape(9 * width, width).astype(jnp.bfloat16)
    w3 = jnp.transpose(w3_oihw[:, :, 0, 0], (1, 0)).astype(jnp.bfloat16)        # [width, Cout]
    g1r, b1r = g1.reshape(1, width).astype(jnp.float32), b1.reshape(1, width).astype(jnp.float32)
    g2r, b2r = g2.reshape(1, width).astype(jnp.float32), b2.reshape(1, width).astype(jnp.float32)
    g3r, b3r = g3.reshape(1, Cout).astype(jnp.float32), b3.reshape(1, Cout).astype(jnp.float32)

    # ---- Pass 1: conv1 + BN1 stats (row-tiled, stats accumulated across the grid) ----
    h1, st1 = pl.pallas_call(
        _conv1_stats_kernel,
        grid=(R // TR,),
        in_specs=[pl.BlockSpec((TR, Cin), lambda i: (i, 0)),
                  pl.BlockSpec((Cin, width), lambda i: (0, 0))],
        out_specs=(pl.BlockSpec((TR, width), lambda i: (i, 0)),
                   pl.BlockSpec((2, width), lambda i: (0, 0))),
        out_shape=(jax.ShapeDtypeStruct((R, width), jnp.bfloat16),
                   jax.ShapeDtypeStruct((2, width), jnp.float32)),
        compiler_params=pltpu.CompilerParams(
            dimension_semantics=("arbitrary",), vmem_limit_bytes=_VMEM_LIMIT),
        cost_estimate=pl.CostEstimate(
            flops=2 * R * Cin * width, transcendentals=0,
            bytes_accessed=2 * R * Cin + 2 * Cin * width + 2 * R * width + 8 * width),
    )(x_bf, w1)

    # ---- Pass 2: BN1+ReLU, 3x3 conv via im2col (per-image blocks of the 2-D array) ----
    h2, st2 = pl.pallas_call(
        functools.partial(_bn_conv3x3_stats_kernel, n_rows=R, H=H, W=W, C=width),
        grid=(N,),
        in_specs=[pl.BlockSpec((H * W, width), lambda n: (n, 0)),
                  pl.BlockSpec((2, width), lambda n: (0, 0)),
                  pl.BlockSpec((1, width), lambda n: (0, 0)),
                  pl.BlockSpec((1, width), lambda n: (0, 0)),
                  pl.BlockSpec((9 * width, width), lambda n: (0, 0))],
        out_specs=(pl.BlockSpec((H * W, width), lambda n: (n, 0)),
                   pl.BlockSpec((2, width), lambda n: (0, 0))),
        out_shape=(jax.ShapeDtypeStruct((R, width), jnp.bfloat16),
                   jax.ShapeDtypeStruct((2, width), jnp.float32)),
        compiler_params=pltpu.CompilerParams(
            dimension_semantics=("arbitrary",), vmem_limit_bytes=_VMEM_LIMIT),
        cost_estimate=pl.CostEstimate(
            flops=2 * R * 9 * width * width, transcendentals=0,
            bytes_accessed=4 * R * width + 2 * 9 * width * width + 8 * width),
    )(h1, st1, g1r, b1r, w2)

    # ---- Pass 3: BN2+ReLU, conv3 (1x1) + BN3 stats (row-tiled) ----
    h3, st3 = pl.pallas_call(
        functools.partial(_bn_conv1_stats_kernel, n_rows=R),
        grid=(R // TR,),
        in_specs=[pl.BlockSpec((TR, width), lambda i: (i, 0)),
                  pl.BlockSpec((2, width), lambda i: (0, 0)),
                  pl.BlockSpec((1, width), lambda i: (0, 0)),
                  pl.BlockSpec((1, width), lambda i: (0, 0)),
                  pl.BlockSpec((width, Cout), lambda i: (0, 0))],
        out_specs=(pl.BlockSpec((TR, Cout), lambda i: (i, 0)),
                   pl.BlockSpec((2, Cout), lambda i: (0, 0))),
        out_shape=(jax.ShapeDtypeStruct((R, Cout), jnp.bfloat16),
                   jax.ShapeDtypeStruct((2, Cout), jnp.float32)),
        compiler_params=pltpu.CompilerParams(
            dimension_semantics=("arbitrary",), vmem_limit_bytes=_VMEM_LIMIT),
        cost_estimate=pl.CostEstimate(
            flops=2 * R * width * Cout, transcendentals=0,
            bytes_accessed=2 * R * width + 2 * width * Cout + 2 * R * Cout + 8 * Cout),
    )(h2, st2, g2r, b2r, w3)

    # ---- Pass 4: BN3 + residual + ReLU (no cross-step state -> parallel / megacore) ----
    out2d = pl.pallas_call(
        functools.partial(_bn_add_relu_kernel, n_rows=R),
        grid=(R // TR,),
        in_specs=[pl.BlockSpec((TR, Cout), lambda i: (i, 0)),
                  pl.BlockSpec((2, Cout), lambda i: (0, 0)),
                  pl.BlockSpec((1, Cout), lambda i: (0, 0)),
                  pl.BlockSpec((1, Cout), lambda i: (0, 0)),
                  pl.BlockSpec((TR, Cin), lambda i: (i, 0))],
        out_specs=pl.BlockSpec((TR, Cout), lambda i: (i, 0)),
        out_shape=jax.ShapeDtypeStruct((R, Cout), jnp.float32),
        compiler_params=pltpu.CompilerParams(
            dimension_semantics=("parallel",), vmem_limit_bytes=_VMEM_LIMIT),
        cost_estimate=pl.CostEstimate(
            flops=4 * R * Cout, transcendentals=0,
            bytes_accessed=2 * R * Cout + 4 * R * Cin + 4 * R * Cout),
    )(h3, st3, g3r, b3r, x2d)

    return jnp.transpose(out2d.reshape(N, H, W, Cout), (0, 3, 1, 2))   # back to NCHW


# --------------------------------------------------------------------------------------
# Pure-JAX f32 reference (train-mode BN)
# --------------------------------------------------------------------------------------
def _bn_train_nchw(x, gamma, beta):
    mean = jnp.mean(x, axis=(0, 2, 3), keepdims=True)
    var = jnp.mean((x - mean) ** 2, axis=(0, 2, 3), keepdims=True)
    return ((x - mean) / jnp.sqrt(var + EPS)) * gamma[None, :, None, None] \
        + beta[None, :, None, None]


def bottleneck_reference(x, w1_oihw, g1, b1, w2_oihw, g2, b2, w3_oihw, g3, b3):
    dn = ('NCHW', 'OIHW', 'NCHW')
    prec = lax.Precision.HIGHEST
    h = lax.conv_general_dilated(x, w1_oihw, (1, 1), 'VALID',
                                 dimension_numbers=dn, precision=prec)
    h = jax.nn.relu(_bn_train_nchw(h, g1, b1))
    h = lax.conv_general_dilated(h, w2_oihw, (1, 1), ((1, 1), (1, 1)),
                                 dimension_numbers=dn, precision=prec)
    h = jax.nn.relu(_bn_train_nchw(h, g2, b2))
    h = lax.conv_general_dilated(h, w3_oihw, (1, 1), 'VALID',
                                 dimension_numbers=dn, precision=prec)
    h = _bn_train_nchw(h, g3, b3)
    return jax.nn.relu(h + x)


if __name__ == "__main__":
    # Bottleneck(inplanes=128, planes=32): width=32, Cout=planes*4=128 (=inplanes, so the
    # identity shortcut is valid with downsample=None). Cin=Cout=128 keeps the lane dim dense.
    N, H, W = 2, 16, 16
    planes = 32
    width = planes               # base_width=64, groups=1
    cout = planes * 4
    inplanes = cout

    key = jax.random.PRNGKey(0)
    ks = jax.random.split(key, 10)
    x = jax.random.normal(ks[0], (N, inplanes, H, W), jnp.float32)

    w1_oihw = 0.2 * jax.random.normal(ks[1], (width, inplanes, 1, 1), jnp.float32)
    w2_oihw = 0.2 * jax.random.normal(ks[2], (width, width, 3, 3), jnp.float32)
    w3_oihw = 0.2 * jax.random.normal(ks[3], (cout, width, 1, 1), jnp.float32)
    g1 = 1.0 + 0.1 * jax.random.normal(ks[4], (width,), jnp.float32)
    b1 = 0.1 * jax.random.normal(ks[5], (width,), jnp.float32)
    g2 = 1.0 + 0.1 * jax.random.normal(ks[6], (width,), jnp.float32)
    b2 = 0.1 * jax.random.normal(ks[7], (width,), jnp.float32)
    g3 = 1.0 + 0.1 * jax.random.normal(ks[8], (cout,), jnp.float32)
    b3 = 0.1 * jax.random.normal(ks[9], (cout,), jnp.float32)

    out = bottleneck_forward(x, w1_oihw, g1, b1, w2_oihw, g2, b2, w3_oihw, g3, b3)
    out = jax.block_until_ready(out)

    ref = jax.block_until_ready(
        bottleneck_reference(x, w1_oihw, g1, b1, w2_oihw, g2, b2, w3_oihw, g3, b3))

    assert out.shape == (N, cout, H, W), out.shape
    # Mixed precision (bf16 MXU operands + bf16 HBM intermediates, f32 accumulation / BN)
    # vs an all-f32 HIGHEST-precision reference: expected max abs deviation ~2-4e-2 and
    # relative L2 error well under 1%; structural bugs would give O(1) absolute errors.
    max_err = float(jnp.max(jnp.abs(out - ref)))
    rel_l2 = float(jnp.linalg.norm(out - ref) / (jnp.linalg.norm(ref) + 1e-12))
    assert max_err < 1e-1, f"mismatch vs reference, max abs err = {max_err}"
    assert rel_l2 < 2e-2, f"mismatch vs reference, relative L2 err = {rel_l2}"

    print("KERNEL_OK")
</pallas_src>

<mosaic_0001>
module attributes {stable_mosaic.version = 11 : i64} {
  func.func @_bn_add_relu_kernel(%arg0: i32, %arg1: memref<512x128xbf16, #tpu.memory_space<vmem>>, %arg2: memref<2x128xf32, #tpu.memory_space<vmem>>, %arg3: memref<1x128xf32, #tpu.memory_space<vmem>>, %arg4: memref<1x128xf32, #tpu.memory_space<vmem>>, %arg5: memref<512x128xf32, #tpu.memory_space<vmem>>, %arg6: memref<512x128xf32, #tpu.memory_space<vmem>>) attributes {dimension_semantics = [#tpu.dimension_semantics<parallel>], iteration_bounds = array<i64: 1>, scalar_prefetch = 0 : i64, scratch_operands = 0 : i64, tpu.core_type = #tpu.core_type<tc>, window_params = [{transform_indices = @transform_0, window_bounds = array<i64: 512, 128>}, {pipeline_mode = #tpu.pipeline_mode<synchronous>, transform_indices = @transform_1, window_bounds = array<i64: 2, 128>}, {pipeline_mode = #tpu.pipeline_mode<synchronous>, transform_indices = @transform_2, window_bounds = array<i64: 1, 128>}, {pipeline_mode = #tpu.pipeline_mode<synchronous>, transform_indices = @transform_3, window_bounds = array<i64: 1, 128>}, {transform_indices = @transform_4, window_bounds = array<i64: 512, 128>}, {transform_indices = @transform_5, window_bounds = array<i64: 512, 128>}]} {
    %c0 = arith.constant 0 : index
    %c0_0 = arith.constant 0 : index
    %0 = vector.load %arg2[%c0, %c0_0] : memref<2x128xf32, #tpu.memory_space<vmem>>, vector<2x128xf32>
    %c0_1 = arith.constant 0 : index
    %c0_2 = arith.constant 0 : index
    %1 = vector.load %arg3[%c0_1, %c0_2] : memref<1x128xf32, #tpu.memory_space<vmem>>, vector<1x128xf32>
    %c0_3 = arith.constant 0 : index
    %c0_4 = arith.constant 0 : index
    %2 = vector.load %arg4[%c0_3, %c0_4] : memref<1x128xf32, #tpu.memory_space<vmem>>, vector<1x128xf32>
    %3 = vector.extract_strided_slice %0 {offsets = [0, 0], sizes = [1, 128], strides = [1, 1]} : vector<2x128xf32> to vector<1x128xf32>
    %cst = arith.constant 0.001953125 : f32
    %4 = vector.broadcast %cst : f32 to vector<1x128xf32>
    %5 = arith.mulf %3, %4 : vector<1x128xf32>
    %6 = vector.extract_strided_slice %0 {offsets = [1, 0], sizes = [1, 128], strides = [1, 1]} : vector<2x128xf32> to vector<1x128xf32>
    %cst_5 = arith.constant 0.001953125 : f32
    %7 = vector.broadcast %cst_5 : f32 to vector<1x128xf32>
    %8 = arith.mulf %6, %7 : vector<1x128xf32>
    %9 = arith.mulf %5, %5 : vector<1x128xf32>
    %10 = arith.subf %8, %9 : vector<1x128xf32>
    %cst_6 = arith.constant 9.99999974E-6 : f32
    %11 = vector.broadcast %cst_6 : f32 to vector<1x128xf32>
    %12 = arith.addf %10, %11 : vector<1x128xf32>
    %13 = math.rsqrt %12 : vector<1x128xf32>
    %14 = arith.mulf %1, %13 : vector<1x128xf32>
    %15 = arith.mulf %5, %14 : vector<1x128xf32>
    %16 = arith.subf %2, %15 : vector<1x128xf32>
    %c0_7 = arith.constant 0 : index
    %c0_8 = arith.constant 0 : index
    %17 = vector.load %arg1[%c0_7, %c0_8] : memref<512x128xbf16, #tpu.memory_space<vmem>>, vector<512x128xbf16>
    %18 = arith.extf %17 : vector<512x128xbf16> to vector<512x128xf32>
    %19 = vector.broadcast %14 : vector<1x128xf32> to vector<512x128xf32>
    %20 = arith.mulf %18, %19 : vector<512x128xf32>
    %21 = vector.broadcast %16 : vector<1x128xf32> to vector<512x128xf32>
    %22 = arith.addf %20, %21 : vector<512x128xf32>
    %c0_9 = arith.constant 0 : index
    %c0_10 = arith.constant 0 : index
    %23 = vector.load %arg5[%c0_9, %c0_10] : memref<512x128xf32, #tpu.memory_space<vmem>>, vector<512x128xf32>
    %24 = arith.addf %22, %23 : vector<512x128xf32>
    %cst_11 = arith.constant 0.000000e+00 : f32
    %25 = vector.broadcast %cst_11 : f32 to vector<512x128xf32>
    %26 = arith.maximumf %24, %25 : vector<512x128xf32>
    %c0_12 = arith.constant 0 : index
    %c0_13 = arith.constant 0 : index
    %27 = vector.load %arg6[%c0_12, %c0_13] : memref<512x128xf32, #tpu.memory_space<vmem>>, vector<512x128xf32>
    tpu.vector_store %arg6[%c0_12, %c0_13], %26 {strides = array<i32>} : memref<512x128xf32, #tpu.memory_space<vmem>>, vector<512x128xf32>,
    return
  }
  func.func @transform_0(%arg0: i32) -> (i32, i32) {
    %c0_i32 = arith.constant 0 : i32
    %c0_i32_0 = arith.constant 0 : i32
    return %arg0, %c0_i32 : i32, i32
  }
  func.func @transform_1(%arg0: i32) -> (i32, i32) {
    %c0_i32 = arith.constant 0 : i32
    %c0_i32_0 = arith.constant 0 : i32
    %c0_i32_1 = arith.constant 0 : i32
    return %c0_i32, %c0_i32_0 : i32, i32
  }
  func.func @transform_2(%arg0: i32) -> (i32, i32) {
    %c0_i32 = arith.constant 0 : i32
    %c0_i32_0 = arith.constant 0 : i32
    %c0_i32_1 = arith.constant 0 : i32
    return %c0_i32, %c0_i32_0 : i32, i32
  }
  func.func @transform_3(%arg0: i32) -> (i32, i32) {
    %c0_i32 = arith.constant 0 : i32
    %c0_i32_0 = arith.constant 0 : i32
    %c0_i32_1 = arith.constant 0 : i32
    return %c0_i32, %c0_i32_0 : i32, i32
  }
  func.func @transform_4(%arg0: i32) -> (i32, i32) {
    %c0_i32 = arith.constant 0 : i32
    %c0_i32_0 = arith.constant 0 : i32
    return %arg0, %c0_i32 : i32, i32
  }
  func.func @transform_5(%arg0: i32) -> (i32, i32) {
    %c0_i32 = arith.constant 0 : i32
    %c0_i32_0 = arith.constant 0 : i32
    return %arg0, %c0_i32 : i32, i32
  }
}

module attributes {stable_mosaic.version = 11 : i64} {
  func.func @_bn_conv1_stats_kernel(%arg0: i32, %arg1: memref<512x32xbf16, #tpu.memory_space<vmem>>, %arg2: memref<2x32xf32, #tpu.memory_space<vmem>>, %arg3: memref<1x32xf32, #tpu.memory_space<vmem>>, %arg4: memref<1x32xf32, #tpu.memory_space<vmem>>, %arg5: memref<32x128xbf16, #tpu.memory_space<vmem>>, %arg6: memref<512x128xbf16, #tpu.memory_space<vmem>>, %arg7: memref<2x128xf32, #tpu.memory_space<vmem>>) attributes {dimension_semantics = [#tpu.dimension_semantics<arbitrary>], iteration_bounds = array<i64: 1>, scalar_prefetch = 0 : i64, scratch_operands = 0 : i64, tpu.core_type = #tpu.core_type<tc>, window_params = [{transform_indices = @transform_0, window_bounds = array<i64: 512, 32>}, {pipeline_mode = #tpu.pipeline_mode<synchronous>, transform_indices = @transform_1, window_bounds = array<i64: 2, 32>}, {pipeline_mode = #tpu.pipeline_mode<synchronous>, transform_indices = @transform_2, window_bounds = array<i64: 1, 32>}, {pipeline_mode = #tpu.pipeline_mode<synchronous>, transform_indices = @transform_3, window_bounds = array<i64: 1, 32>}, {pipeline_mode = #tpu.pipeline_mode<synchronous>, transform_indices = @transform_4, window_bounds = array<i64: 32, 128>}, {transform_indices = @transform_5, window_bounds = array<i64: 512, 128>}, {pipeline_mode = #tpu.pipeline_mode<synchronous>, transform_indices = @transform_6, window_bounds = array<i64: 2, 128>}]} {
    %c0_i32 = arith.constant 0 : i32
    %0 = arith.cmpi eq, %arg0, %c0_i32 : i32
    %1 = arith.extui %0 : i1 to i32
    %c0_i32_0 = arith.constant 0 : i32
    %2 = arith.cmpi ne, %1, %c0_i32_0 : i32
    scf.if %2 {
      %cst_22 = arith.constant 0.000000e+00 : f32
      %42 = vector.broadcast %cst_22 : f32 to vector<2x128xf32>
      %c0_23 = arith.constant 0 : index
      %c0_24 = arith.constant 0 : index
      %43 = vector.load %arg7[%c0_23, %c0_24] : memref<2x128xf32, #tpu.memory_space<vmem>>, vector<2x128xf32>
      tpu.vector_store %arg7[%c0_23, %c0_24], %42 {strides = array<i32>} : memref<2x128xf32, #tpu.memory_space<vmem>>, vector<2x128xf32>,
    } else {
    }
    %c0 = arith.constant 0 : index
    %c0_1 = arith.constant 0 : index
    %3 = vector.load %arg2[%c0, %c0_1] : memref<2x32xf32, #tpu.memory_space<vmem>>, vector<2x32xf32>
    %c0_2 = arith.constant 0 : index
    %c0_3 = arith.constant 0 : index
    %4 = vector.load %arg3[%c0_2, %c0_3] : memref<1x32xf32, #tpu.memory_space<vmem>>, vector<1x32xf32>
    %c0_4 = arith.constant 0 : index
    %c0_5 = arith.constant 0 : index
    %5 = vector.load %arg4[%c0_4, %c0_5] : memref<1x32xf32, #tpu.memory_space<vmem>>, vector<1x32xf32>
    %6 = vector.extract_strided_slice %3 {offsets = [0, 0], sizes = [1, 32], strides = [1, 1]} : vector<2x32xf32> to vector<1x32xf32>
    %cst = arith.constant 0.001953125 : f32
    %7 = vector.broadcast %cst : f32 to vector<1x32xf32>
    %8 = arith.mulf %6, %7 : vector<1x32xf32>
    %9 = vector.extract_strided_slice %3 {offsets = [1, 0], sizes = [1, 32], strides = [1, 1]} : vector<2x32xf32> to vector<1x32xf32>
    %cst_6 = arith.constant 0.001953125 : f32
    %10 = vector.broadcast %cst_6 : f32 to vector<1x32xf32>
    %11 = arith.mulf %9, %10 : vector<1x32xf32>
    %12 = arith.mulf %8, %8 : vector<1x32xf32>
    %13 = arith.subf %11, %12 : vector<1x32xf32>
    %cst_7 = arith.constant 9.99999974E-6 : f32
    %14 = vector.broadcast %cst_7 : f32 to vector<1x32xf32>
    %15 = arith.addf %13, %14 : vector<1x32xf32>
    %16 = math.rsqrt %15 : vector<1x32xf32>
    %17 = arith.mulf %4, %16 : vector<1x32xf32>
    %18 = arith.mulf %8, %17 : vector<1x32xf32>
    %19 = arith.subf %5, %18 : vector<1x32xf32>
    %c0_8 = arith.constant 0 : index
    %c0_9 = arith.constant 0 : index
    %20 = vector.load %arg1[%c0_8, %c0_9] : memref<512x32xbf16, #tpu.memory_space<vmem>>, vector<512x32xbf16>
    %21 = arith.extf %20 : vector<512x32xbf16> to vector<512x32xf32>
    %22 = vector.broadcast %17 : vector<1x32xf32> to vector<512x32xf32>
    %23 = arith.mulf %21, %22 : vector<512x32xf32>
    %24 = vector.broadcast %19 : vector<1x32xf32> to vector<512x32xf32>
    %25 = arith.addf %23, %24 : vector<512x32xf32>
    %cst_10 = arith.constant 0.000000e+00 : f32
    %26 = vector.broadcast %cst_10 : f32 to vector<512x32xf32>
    %27 = arith.maximumf %25, %26 : vector<512x32xf32>
    %28 = arith.truncf %27 : vector<512x32xf32> to vector<512x32xbf16>
    %c0_11 = arith.constant 0 : index
    %c0_12 = arith.constant 0 : index
    %29 = vector.load %arg5[%c0_11, %c0_12] : memref<32x128xbf16, #tpu.memory_space<vmem>>, vector<32x128xbf16>
    %cst_13 = arith.constant dense<0.000000e+00> : vector<512x128xf32>
    %30 = tpu.matmul %28, %29, %cst_13 {dimension_numbers = #tpu.dot_dimension_numbers<[1], [0], [0], [1], [0, 0, 1, 1], [], []>} : vector<512x32xbf16>, vector<32x128xbf16>, vector<512x128xf32> -> vector<512x128xf32>
    %31 = arith.truncf %30 : vector<512x128xf32> to vector<512x128xbf16>
    %c0_14 = arith.constant 0 : index
    %c0_15 = arith.constant 0 : index
    %32 = vector.load %arg6[%c0_14, %c0_15] : memref<512x128xbf16, #tpu.memory_space<vmem>>, vector<512x128xbf16>
    tpu.vector_store %arg6[%c0_14, %c0_15], %31 {strides = array<i32>} : memref<512x128xbf16, #tpu.memory_space<vmem>>, vector<512x128xbf16>,
    %cst_16 = arith.constant dense<0.000000e+00> : vector<128xf32>
    %33 = vector.multi_reduction <add>, %30, %cst_16 [0] : vector<512x128xf32> to vector<128xf32>
    %34 = vector.shape_cast %33 : vector<128xf32> to vector<1x128xf32>
    %35 = arith.mulf %30, %30 : vector<512x128xf32>
    %cst_17 = arith.constant dense<0.000000e+00> : vector<128xf32>
    %36 = vector.multi_reduction <add>, %35, %cst_17 [0] : vector<512x128xf32> to vector<128xf32>
    %37 = vector.shape_cast %36 : vector<128xf32> to vector<1x128xf32>
    %c0_18 = arith.constant 0 : index
    %c0_19 = arith.constant 0 : index
    %38 = vector.load %arg7[%c0_18, %c0_19] : memref<2x128xf32, #tpu.memory_space<vmem>>, vector<2x128xf32>
    %39 = tpu.concatenate %34, %37 in 0 : vector<1x128xf32>, vector<1x128xf32> -> vector<2x128xf32>
    %40 = arith.addf %38, %39 : vector<2x128xf32>
    %c0_20 = arith.constant 0 : index
    %c0_21 = arith.constant 0 : index
    %41 = vector.load %arg7[%c0_20, %c0_21] : memref<2x128xf32, #tpu.memory_space<vmem>>, vector<2x128xf32>
    tpu.vector_store %arg7[%c0_20, %c0_21], %40 {strides = array<i32>} : memref<2x128xf32, #tpu.memory_space<vmem>>, vector<2x128xf32>,
    return
  }
  func.func @transform_0(%arg0: i32) -> (i32, i32) {
    %c0_i32 = arith.constant 0 : i32
    %c0_i32_0 = arith.constant 0 : i32
    return %arg0, %c0_i32 : i32, i32
  }
  func.func @transform_1(%arg0: i32) -> (i32, i32) {
    %c0_i32 = arith.constant 0 : i32
    %c0_i32_0 = arith.constant 0 : i32
    %c0_i32_1 = arith.constant 0 : i32
    return %c0_i32, %c0_i32_0 : i32, i32
  }
  func.func @transform_2(%arg0: i32) -> (i32, i32) {
    %c0_i32 = arith.constant 0 : i32
    %c0_i32_0 = arith.constant 0 : i32
    %c0_i32_1 = arith.constant 0 : i32
    return %c0_i32, %c0_i32_0 : i32, i32
  }
  func.func @transform_3(%arg0: i32) -> (i32, i32) {
    %c0_i32 = arith.constant 0 : i32
    %c0_i32_0 = arith.constant 0 : i32
    %c0_i32_1 = arith.constant 0 : i32
    return %c0_i32, %c0_i32_0 : i32, i32
  }
  func.func @transform_4(%arg0: i32) -> (i32, i32) {
    %c0_i32 = arith.constant 0 : i32
    %c0_i32_0 = arith.constant 0 : i32
    %c0_i32_1 = arith.constant 0 : i32
    return %c0_i32, %c0_i32_0 : i32, i32
  }
  func.func @transform_5(%arg0: i32) -> (i32, i32) {
    %c0_i32 = arith.constant 0 : i32
    %c0_i32_0 = arith.constant 0 : i32
    return %arg0, %c0_i32 : i32, i32
  }
  func.func @transform_6(%arg0: i32) -> (i32, i32) {
    %c0_i32 = arith.constant 0 : i32
    %c0_i32_0 = arith.constant 0 : i32
    %c0_i32_1 = arith.constant 0 : i32
    return %c0_i32, %c0_i32_0 : i32, i32
  }
}

module attributes {stable_mosaic.version = 11 : i64} {
  func.func @_bn_conv3x3_stats_kernel(%arg0: i32, %arg1: memref<256x32xbf16, #tpu.memory_space<vmem>>, %arg2: memref<2x32xf32, #tpu.memory_space<vmem>>, %arg3: memref<1x32xf32, #tpu.memory_space<vmem>>, %arg4: memref<1x32xf32, #tpu.memory_space<vmem>>, %arg5: memref<288x32xbf16, #tpu.memory_space<vmem>>, %arg6: memref<256x32xbf16, #tpu.memory_space<vmem>>, %arg7: memref<2x32xf32, #tpu.memory_space<vmem>>) attributes {dimension_semantics = [#tpu.dimension_semantics<arbitrary>], iteration_bounds = array<i64: 2>, scalar_prefetch = 0 : i64, scratch_operands = 0 : i64, tpu.core_type = #tpu.core_type<tc>, window_params = [{transform_indices = @transform_0, window_bounds = array<i64: 256, 32>}, {pipeline_mode = #tpu.pipeline_mode<synchronous>, transform_indices = @transform_1, window_bounds = array<i64: 2, 32>}, {pipeline_mode = #tpu.pipeline_mode<synchronous>, transform_indices = @transform_2, window_bounds = array<i64: 1, 32>}, {pipeline_mode = #tpu.pipeline_mode<synchronous>, transform_indices = @transform_3, window_bounds = array<i64: 1, 32>}, {pipeline_mode = #tpu.pipeline_mode<synchronous>, transform_indices = @transform_4, window_bounds = array<i64: 288, 32>}, {transform_indices = @transform_5, window_bounds = array<i64: 256, 32>}, {pipeline_mode = #tpu.pipeline_mode<synchronous>, transform_indices = @transform_6, window_bounds = array<i64: 2, 32>}]} {
    %c0_i32 = arith.constant 0 : i32
    %0 = arith.cmpi eq, %arg0, %c0_i32 : i32
    %1 = arith.extui %0 : i1 to i32
    %c0_i32_0 = arith.constant 0 : i32
    %2 = arith.cmpi ne, %1, %c0_i32_0 : i32
    scf.if %2 {
      %cst_24 = arith.constant 0.000000e+00 : f32
      %66 = vector.broadcast %cst_24 : f32 to vector<2x32xf32>
      %c0_25 = arith.constant 0 : index
      %c0_26 = arith.constant 0 : index
      %67 = vector.load %arg7[%c0_25, %c0_26] : memref<2x32xf32, #tpu.memory_space<vmem>>, vector<2x32xf32>
      tpu.vector_store %arg7[%c0_25, %c0_26], %66 {strides = array<i32>} : memref<2x32xf32, #tpu.memory_space<vmem>>, vector<2x32xf32>,
    } else {
    }
    %c0 = arith.constant 0 : index
    %c0_1 = arith.constant 0 : index
    %3 = vector.load %arg2[%c0, %c0_1] : memref<2x32xf32, #tpu.memory_space<vmem>>, vector<2x32xf32>
    %c0_2 = arith.constant 0 : index
    %c0_3 = arith.constant 0 : index
    %4 = vector.load %arg3[%c0_2, %c0_3] : memref<1x32xf32, #tpu.memory_space<vmem>>, vector<1x32xf32>
    %c0_4 = arith.constant 0 : index
    %c0_5 = arith.constant 0 : index
    %5 = vector.load %arg4[%c0_4, %c0_5] : memref<1x32xf32, #tpu.memory_space<vmem>>, vector<1x32xf32>
    %6 = vector.extract_strided_slice %3 {offsets = [0, 0], sizes = [1, 32], strides = [1, 1]} : vector<2x32xf32> to vector<1x32xf32>
    %cst = arith.constant 0.001953125 : f32
    %7 = vector.broadcast %cst : f32 to vector<1x32xf32>
    %8 = arith.mulf %6, %7 : vector<1x32xf32>
    %9 = vector.extract_strided_slice %3 {offsets = [1, 0], sizes = [1, 32], strides = [1, 1]} : vector<2x32xf32> to vector<1x32xf32>
    %cst_6 = arith.constant 0.001953125 : f32
    %10 = vector.broadcast %cst_6 : f32 to vector<1x32xf32>
    %11 = arith.mulf %9, %10 : vector<1x32xf32>
    %12 = arith.mulf %8, %8 : vector<1x32xf32>
    %13 = arith.subf %11, %12 : vector<1x32xf32>
    %cst_7 = arith.constant 9.99999974E-6 : f32
    %14 = vector.broadcast %cst_7 : f32 to vector<1x32xf32>
    %15 = arith.addf %13, %14 : vector<1x32xf32>
    %16 = math.rsqrt %15 : vector<1x32xf32>
    %17 = arith.mulf %4, %16 : vector<1x32xf32>
    %18 = arith.mulf %8, %17 : vector<1x32xf32>
    %19 = arith.subf %5, %18 : vector<1x32xf32>
    %c0_8 = arith.constant 0 : index
    %c0_9 = arith.constant 0 : index
    %20 = vector.load %arg1[%c0_8, %c0_9] : memref<256x32xbf16, #tpu.memory_space<vmem>>, vector<256x32xbf16>
    %21 = arith.extf %20 : vector<256x32xbf16> to vector<256x32xf32>
    %22 = vector.broadcast %17 : vector<1x32xf32> to vector<256x32xf32>
    %23 = arith.mulf %21, %22 : vector<256x32xf32>
    %24 = vector.broadcast %19 : vector<1x32xf32> to vector<256x32xf32>
    %25 = arith.addf %23, %24 : vector<256x32xf32>
    %cst_10 = arith.constant 0.000000e+00 : f32
    %26 = vector.broadcast %cst_10 : f32 to vector<256x32xf32>
    %27 = arith.maximumf %25, %26 : vector<256x32xf32>
    %28 = arith.truncf %27 : vector<256x32xf32> to vector<256x32xbf16>
    %29 = vector.shape_cast %28 : vector<256x32xbf16> to vector<16x16x32xbf16>
    %cst_11 = arith.constant 0.000000e+00 : bf16
    %30 = vector.broadcast %cst_11 : bf16 to vector<1x18x32xbf16>
    %cst_12 = arith.constant 0.000000e+00 : bf16
    %31 = vector.broadcast %cst_12 : bf16 to vector<16x1x32xbf16>
    %32 = tpu.concatenate %31, %29, %31 in 1 : vector<16x1x32xbf16>, vector<16x16x32xbf16>, vector<16x1x32xbf16> -> vector<16x18x32xbf16>
    %33 = tpu.concatenate %30, %32, %30 in 0 : vector<1x18x32xbf16>, vector<16x18x32xbf16>, vector<1x18x32xbf16> -> vector<18x18x32xbf16>
    %34 = vector.extract_strided_slice %33 {offsets = [0, 0, 0], sizes = [16, 16, 32], strides = [1, 1, 1]} : vector<18x18x32xbf16> to vector<16x16x32xbf16>
    %35 = vector.shape_cast %34 : vector<16x16x32xbf16> to vector<256x32xbf16>
    %36 = vector.extract_strided_slice %33 {offsets = [0, 1, 0], sizes = [16, 16, 32], strides = [1, 1, 1]} : vector<18x18x32xbf16> to vector<16x16x32xbf16>
    %37 = vector.shape_cast %36 : vector<16x16x32xbf16> to vector<256x32xbf16>
    %38 = vector.extract_strided_slice %33 {offsets = [0, 2, 0], sizes = [16, 16, 32], strides = [1, 1, 1]} : vector<18x18x32xbf16> to vector<16x16x32xbf16>
    %39 = vector.shape_cast %38 : vector<16x16x32xbf16> to vector<256x32xbf16>
    %40 = vector.extract_strided_slice %33 {offsets = [1, 0, 0], sizes = [16, 16, 32], strides = [1, 1, 1]} : vector<18x18x32xbf16> to vector<16x16x32xbf16>
    %41 = vector.shape_cast %40 : vector<16x16x32xbf16> to vector<256x32xbf16>
    %42 = vector.extract_strided_slice %33 {offsets = [1, 1, 0], sizes = [16, 16, 32], strides = [1, 1, 1]} : vector<18x18x32xbf16> to vector<16x16x32xbf16>
    %43 = vector.shape_cast %42 : vector<16x16x32xbf16> to vector<256x32xbf16>
    %44 = vector.extract_strided_slice %33 {offsets = [1, 2, 0], sizes = [16, 16, 32], strides = [1, 1, 1]} : vector<18x18x32xbf16> to vector<16x16x32xbf16>
    %45 = vector.shape_cast %44 : vector<16x16x32xbf16> to vector<256x32xbf16>
    %46 = vector.extract_strided_slice %33 {offsets = [2, 0, 0], sizes = [16, 16, 32], strides = [1, 1, 1]} : vector<18x18x32xbf16> to vector<16x16x32xbf16>
    %47 = vector.shape_cast %46 : vector<16x16x32xbf16> to vector<256x32xbf16>
    %48 = vector.extract_strided_slice %33 {offsets = [2, 1, 0], sizes = [16, 16, 32], strides = [1, 1, 1]} : vector<18x18x32xbf16> to vector<16x16x32xbf16>
    %49 = vector.shape_cast %48 : vector<16x16x32xbf16> to vector<256x32xbf16>
    %50 = vector.extract_strided_slice %33 {offsets = [2, 2, 0], sizes = [16, 16, 32], strides = [1, 1, 1]} : vector<18x18x32xbf16> to vector<16x16x32xbf16>
    %51 = vector.shape_cast %50 : vector<16x16x32xbf16> to vector<256x32xbf16>
    %52 = tpu.concatenate %35, %37, %39, %41, %43, %45, %47, %49, %51 in 1 : vector<256x32xbf16>, vector<256x32xbf16>, vector<256x32xbf16>, vector<256x32xbf16>, vector<256x32xbf16>, vector<256x32xbf16>, vector<256x32xbf16>, vector<256x32xbf16>, vector<256x32xbf16> -> vector<256x288xbf16>
    %c0_13 = arith.constant 0 : index
    %c0_14 = arith.constant 0 : index
    %53 = vector.load %arg5[%c0_13, %c0_14] : memref<288x32xbf16, #tpu.memory_space<vmem>>, vector<288x32xbf16>
    %cst_15 = arith.constant dense<0.000000e+00> : vector<256x32xf32>
    %54 = tpu.matmul %52, %53, %cst_15 {dimension_numbers = #tpu.dot_dimension_numbers<[1], [0], [0], [1], [0, 0, 1, 1], [], []>} : vector<256x288xbf16>, vector<288x32xbf16>, vector<256x32xf32> -> vector<256x32xf32>
    %55 = arith.truncf %54 : vector<256x32xf32> to vector<256x32xbf16>
    %c0_16 = arith.constant 0 : index
    %c0_17 = arith.constant 0 : index
    %56 = vector.load %arg6[%c0_16, %c0_17] : memref<256x32xbf16, #tpu.memory_space<vmem>>, vector<256x32xbf16>
    tpu.vector_store %arg6[%c0_16, %c0_17], %55 {strides = array<i32>} : memref<256x32xbf16, #tpu.memory_space<vmem>>, vector<256x32xbf16>,
    %cst_18 = arith.constant dense<0.000000e+00> : vector<32xf32>
    %57 = vector.multi_reduction <add>, %54, %cst_18 [0] : vector<256x32xf32> to vector<32xf32>
    %58 = vector.shape_cast %57 : vector<32xf32> to vector<1x32xf32>
    %59 = arith.mulf %54, %54 : vector<256x32xf32>
    %cst_19 = arith.constant dense<0.000000e+00> : vector<32xf32>
    %60 = vector.multi_reduction <add>, %59, %cst_19 [0] : vector<256x32xf32> to vector<32xf32>
    %61 = vector.shape_cast %60 : vector<32xf32> to vector<1x32xf32>
    %c0_20 = arith.constant 0 : index
    %c0_21 = arith.constant 0 : index
    %62 = vector.load %arg7[%c0_20, %c0_21] : memref<2x32xf32, #tpu.memory_space<vmem>>, vector<2x32xf32>
    %63 = tpu.concatenate %58, %61 in 0 : vector<1x32xf32>, vector<1x32xf32> -> vector<2x32xf32>
    %64 = arith.addf %62, %63 : vector<2x32xf32>
    %c0_22 = arith.constant 0 : index
    %c0_23 = arith.constant 0 : index
    %65 = vector.load %arg7[%c0_22, %c0_23] : memref<2x32xf32, #tpu.memory_space<vmem>>, vector<2x32xf32>
    tpu.vector_store %arg7[%c0_22, %c0_23], %64 {strides = array<i32>} : memref<2x32xf32, #tpu.memory_space<vmem>>, vector<2x32xf32>,
    return
  }
  func.func @transform_0(%arg0: i32) -> (i32, i32) {
    %c0_i32 = arith.constant 0 : i32
    %c0_i32_0 = arith.constant 0 : i32
    return %arg0, %c0_i32 : i32, i32
  }
  func.func @transform_1(%arg0: i32) -> (i32, i32) {
    %c0_i32 = arith.constant 0 : i32
    %c0_i32_0 = arith.constant 0 : i32
    %c0_i32_1 = arith.constant 0 : i32
    return %c0_i32, %c0_i32_0 : i32, i32
  }
  func.func @transform_2(%arg0: i32) -> (i32, i32) {
    %c0_i32 = arith.constant 0 : i32
    %c0_i32_0 = arith.constant 0 : i32
    %c0_i32_1 = arith.constant 0 : i32
    return %c0_i32, %c0_i32_0 : i32, i32
  }
  func.func @transform_3(%arg0: i32) -> (i32, i32) {
    %c0_i32 = arith.constant 0 : i32
    %c0_i32_0 = arith.constant 0 : i32
    %c0_i32_1 = arith.constant 0 : i32
    return %c0_i32, %c0_i32_0 : i32, i32
  }
  func.func @transform_4(%arg0: i32) -> (i32, i32) {
    %c0_i32 = arith.constant 0 : i32
    %c0_i32_0 = arith.constant 0 : i32
    %c0_i32_1 = arith.constant 0 : i32
    return %c0_i32, %c0_i32_0 : i32, i32
  }
  func.func @transform_5(%arg0: i32) -> (i32, i32) {
    %c0_i32 = arith.constant 0 : i32
    %c0_i32_0 = arith.constant 0 : i32
    return %arg0, %c0_i32 : i32, i32
  }
  func.func @transform_6(%arg0: i32) -> (i32, i32) {
    %c0_i32 = arith.constant 0 : i32
    %c0_i32_0 = arith.constant 0 : i32
    %c0_i32_1 = arith.constant 0 : i32
    return %c0_i32, %c0_i32_0 : i32, i32
  }
}

module attributes {stable_mosaic.version = 11 : i64} {
  func.func @_conv1_stats_kernel(%arg0: i32, %arg1: memref<512x128xbf16, #tpu.memory_space<vmem>>, %arg2: memref<128x32xbf16, #tpu.memory_space<vmem>>, %arg3: memref<512x32xbf16, #tpu.memory_space<vmem>>, %arg4: memref<2x32xf32, #tpu.memory_space<vmem>>) attributes {dimension_semantics = [#tpu.dimension_semantics<arbitrary>], iteration_bounds = array<i64: 1>, scalar_prefetch = 0 : i64, scratch_operands = 0 : i64, tpu.core_type = #tpu.core_type<tc>, window_params = [{transform_indices = @transform_0, window_bounds = array<i64: 512, 128>}, {pipeline_mode = #tpu.pipeline_mode<synchronous>, transform_indices = @transform_1, window_bounds = array<i64: 128, 32>}, {transform_indices = @transform_2, window_bounds = array<i64: 512, 32>}, {pipeline_mode = #tpu.pipeline_mode<synchronous>, transform_indices = @transform_3, window_bounds = array<i64: 2, 32>}]} {
    %c0_i32 = arith.constant 0 : i32
    %0 = arith.cmpi eq, %arg0, %c0_i32 : i32
    %1 = arith.extui %0 : i1 to i32
    %c0_i32_0 = arith.constant 0 : i32
    %2 = arith.cmpi ne, %1, %c0_i32_0 : i32
    scf.if %2 {
      %cst_12 = arith.constant 0.000000e+00 : f32
      %17 = vector.broadcast %cst_12 : f32 to vector<2x32xf32>
      %c0_13 = arith.constant 0 : index
      %c0_14 = arith.constant 0 : index
      %18 = vector.load %arg4[%c0_13, %c0_14] : memref<2x32xf32, #tpu.memory_space<vmem>>, vector<2x32xf32>
      tpu.vector_store %arg4[%c0_13, %c0_14], %17 {strides = array<i32>} : memref<2x32xf32, #tpu.memory_space<vmem>>, vector<2x32xf32>,
    } else {
    }
    %c0 = arith.constant 0 : index
    %c0_1 = arith.constant 0 : index
    %3 = vector.load %arg1[%c0, %c0_1] : memref<512x128xbf16, #tpu.memory_space<vmem>>, vector<512x128xbf16>
    %c0_2 = arith.constant 0 : index
    %c0_3 = arith.constant 0 : index
    %4 = vector.load %arg2[%c0_2, %c0_3] : memref<128x32xbf16, #tpu.memory_space<vmem>>, vector<128x32xbf16>
    %cst = arith.constant dense<0.000000e+00> : vector<512x32xf32>
    %5 = tpu.matmul %3, %4, %cst {dimension_numbers = #tpu.dot_dimension_numbers<[1], [0], [0], [1], [0, 0, 1, 1], [], []>} : vector<512x128xbf16>, vector<128x32xbf16>, vector<512x32xf32> -> vector<512x32xf32>
    %6 = arith.truncf %5 : vector<512x32xf32> to vector<512x32xbf16>
    %c0_4 = arith.constant 0 : index
    %c0_5 = arith.constant 0 : index
    %7 = vector.load %arg3[%c0_4, %c0_5] : memref<512x32xbf16, #tpu.memory_space<vmem>>, vector<512x32xbf16>
    tpu.vector_store %arg3[%c0_4, %c0_5], %6 {strides = array<i32>} : memref<512x32xbf16, #tpu.memory_space<vmem>>, vector<512x32xbf16>,
    %cst_6 = arith.constant dense<0.000000e+00> : vector<32xf32>
    %8 = vector.multi_reduction <add>, %5, %cst_6 [0] : vector<512x32xf32> to vector<32xf32>
    %9 = vector.shape_cast %8 : vector<32xf32> to vector<1x32xf32>
    %10 = arith.mulf %5, %5 : vector<512x32xf32>
    %cst_7 = arith.constant dense<0.000000e+00> : vector<32xf32>
    %11 = vector.multi_reduction <add>, %10, %cst_7 [0] : vector<512x32xf32> to vector<32xf32>
    %12 = vector.shape_cast %11 : vector<32xf32> to vector<1x32xf32>
    %c0_8 = arith.constant 0 : index
    %c0_9 = arith.constant 0 : index
    %13 = vector.load %arg4[%c0_8, %c0_9] : memref<2x32xf32, #tpu.memory_space<vmem>>, vector<2x32xf32>
    %14 = tpu.concatenate %9, %12 in 0 : vector<1x32xf32>, vector<1x32xf32> -> vector<2x32xf32>
    %15 = arith.addf %13, %14 : vector<2x32xf32>
    %c0_10 = arith.constant 0 : index
    %c0_11 = arith.constant 0 : index
    %16 = vector.load %arg4[%c0_10, %c0_11] : memref<2x32xf32, #tpu.memory_space<vmem>>, vector<2x32xf32>
    tpu.vector_store %arg4[%c0_10, %c0_11], %15 {strides = array<i32>} : memref<2x32xf32, #tpu.memory_space<vmem>>, vector<2x32xf32>,
    return
  }
  func.func @transform_0(%arg0: i32) -> (i32, i32) {
    %c0_i32 = arith.constant 0 : i32
    %c0_i32_0 = arith.constant 0 : i32
    return %arg0, %c0_i32 : i32, i32
  }
  func.func @transform_1(%arg0: i32) -> (i32, i32) {
    %c0_i32 = arith.constant 0 : i32
    %c0_i32_0 = arith.constant 0 : i32
    %c0_i32_1 = arith.constant 0 : i32
    return %c0_i32, %c0_i32_0 : i32, i32
  }
  func.func @transform_2(%arg0: i32) -> (i32, i32) {
    %c0_i32 = arith.constant 0 : i32
    %c0_i32_0 = arith.constant 0 : i32
    return %arg0, %c0_i32 : i32, i32
  }
  func.func @transform_3(%arg0: i32) -> (i32, i32) {
    %c0_i32 = arith.constant 0 : i32
    %c0_i32_0 = arith.constant 0 : i32
    %c0_i32_1 = arith.constant 0 : i32
    return %c0_i32, %c0_i32_0 : i32, i32
  }
}

</mosaic_0001>

<llo_original>
// kernel: bottleneck_forward.6
$region0: #{bottleneck_forward.6}
  #allocation0 [shape = 'u32[]', space=smem, size = 0x4, offset = 0x4, fixed_abs, tag = 'smem constant byte address 0x4 - core index']
  #allocation1 [shape = 'u32[144,128]{1,0:T(1,128)}', space=vmem, size = 0x12000, scoped, tag = 'internal scratch']
  %s0 = inlined_call_operand.vmem [shape: bf16[512,32], index: 0, kind: input, shape index: {}]
  %s1 = inlined_call_operand.vmem [shape: f32[2,32], index: 1, kind: input, shape index: {}]
  %s2 = inlined_call_operand.vmem [shape: f32[1,32], index: 2, kind: input, shape index: {}]
  %s3 = inlined_call_operand.vmem [shape: f32[1,32], index: 3, kind: input, shape index: {}]
  %s4 = inlined_call_operand.vmem [shape: bf16[32,128], index: 4, kind: input, shape index: {}]
  %s5 = inlined_call_operand.vmem [shape: bf16[512,128], index: 5, kind: output, shape index: {0}]
  %s6 = inlined_call_operand.vmem [shape: f32[2,128], index: 6, kind: output, shape index: {1}]
  %7 = xla_tuple %s5, %s6
  %s8 = sld [smem:[#allocation0]]
  $region42: #{bottleneck_forward.6} parent=0
    _
  %s10 = ssub.s32 1, %s8
  %s11 = scalar_select 0, %s10, %s8
  // Predicated region
  $region2: #{bottleneck_forward.6} parent=0 // pred_check
    _
  $region3: #{bottleneck_forward.6} parent=0 // pred_check_branch
    %13 = sbr.rel (0) target = $region5
  $region4: #{bottleneck_forward.6} parent=0 // pred_region
    _
  $region5: #{bottleneck_forward.6} parent=0 // pred_fallthru
    _
  // Predicated region
  $region6: #{bottleneck_forward.6} parent=0 // pred_check
    _
  $region7: #{bottleneck_forward.6} parent=0 // pred_check_branch
    %15 = sbr.rel (0) target = $region9
  $region8: #{bottleneck_forward.6} parent=0 // pred_region
    _
  $region9: #{bottleneck_forward.6} parent=0 // pred_fallthru
    _
  // Predicated region
  $region10: #{bottleneck_forward.6} parent=0 // pred_check
    _
  $region11: #{bottleneck_forward.6} parent=0 // pred_check_branch
    %17 = sbr.rel (0) target = $region13
  $region12: #{bottleneck_forward.6} parent=0 // pred_region
    _
  $region13: #{bottleneck_forward.6} parent=0 // pred_fallthru
    _
  // Predicated region
  $region14: #{bottleneck_forward.6} parent=0 // pred_check
    _
  $region15: #{bottleneck_forward.6} parent=0 // pred_check_branch
    %19 = sbr.rel (0) target = $region17
  $region16: #{bottleneck_forward.6} parent=0 // pred_region
    _
  $region17: #{bottleneck_forward.6} parent=0 // pred_fallthru
    _
  // Predicated region
  $region18: #{bottleneck_forward.6} parent=0 // pred_check
    _
  $region19: #{bottleneck_forward.6} parent=0 // pred_check_branch
    %21 = sbr.rel (0) target = $region21
  $region20: #{bottleneck_forward.6} parent=0 // pred_region
    _
  $region21: #{bottleneck_forward.6} parent=0 // pred_fallthru
    _
  %p23 = scmp.eq.s32.totalorder 0, 0
  // Predicated region
  $region22: #{bottleneck_forward.6} parent=0 // pred_check
    %p24 = pneg %p23
  $region23: #{bottleneck_forward.6} parent=0 // pred_check_branch
    %26 = sbr.rel (%p24) target = $region25
  $region24: #{bottleneck_forward.6} parent=0 // pred_region
    %27 = vst [vmem:[%s6] sm:$0x3] 0.0
  $region25: #{bottleneck_forward.6} parent=0 // pred_fallthru
    _
  %v28 = vld [vmem:[%s1] sm:$0x3]
  %v29 = vld [vmem:[%s2] sm:$0x1]
  %v30 = vld [vmem:[%s3] sm:$0x1]
  %v31 = vmul.f32 %v28, 0.001953125
  %v32 = vmul.f32 %v31, %v31
  %v34 = vrot.slane %v32, 7
  %v36 = vsub.f32 %v31, %v34
  %v37 = vadd.f32 %v36, 1e-05
  %v38 = vrsqrt.pop %v37
  %v41 = vunpack.c.l.s4 1966171168
  %v42 = vunpack.c.0.s8 %v41
  %v43 = vlaneseq
  %v44 = vshrl.u32 %v43, 7
  %v45 = vsub.s32 %v42, %v44
  %v46 = vrot.slane %v38, %v45
  %v47 = vcombine.high %v46, %v46
  %v49 = vunpack.c.l.s4 1966171168
  %v50 = vunpack.c.0.s8 %v49
  %v51 = vlaneseq
  %v52 = vshrl.u32 %v51, 7
  %v53 = vsub.s32 %v50, %v52
  %v54 = vrot.slane %v47, %v53
  %v56 = vmul.f32 %v29, %v54
  %v57 = vmul.f32 %v31, %v56
  %v58 = vsub.f32 %v30, %v57
  %v59 = vld [vmem:[%s0] sm:$0xf]
  %v60 = vld [vmem:[%s0 + $0x4] sm:$0xf]
  %v61 = vld [vmem:[%s0 + $0x8] sm:$0xf]
  %v62 = vld [vmem:[%s0 + $0xc] sm:$0xf]
  %v63 = vld [vmem:[%s0 + $0x10] sm:$0xf]
  %v64 = vld [vmem:[%s0 + $0x14] sm:$0xf]
  %v65 = vld [vmem:[%s0 + $0x18] sm:$0xf]
  %v66 = vld [vmem:[%s0 + $0x1c] sm:$0xf]
  %v67 = vld [vmem:[%s0 + $0x20] sm:$0xf]
  %v68 = vld [vmem:[%s0 + $0x24] sm:$0xf]
  %v69 = vld [vmem:[%s0 + $0x28] sm:$0xf]
  %v70 = vld [vmem:[%s0 + $0x2c] sm:$0xf]
  %v71 = vld [vmem:[%s0 + $0x30] sm:$0xf]
  %v72 = vld [vmem:[%s0 + $0x34] sm:$0xf]
  %v73 = vld [vmem:[%s0 + $0x38] sm:$0xf]
  %v74 = vld [vmem:[%s0 + $0x3c] sm:$0xf]
  %v75 = vld [vmem:[%s0 + $0x40] sm:$0xf]
  %v76 = vld [vmem:[%s0 + $0x44] sm:$0xf]
  %v77 = vld [vmem:[%s0 + $0x48] sm:$0xf]
  %v78 = vld [vmem:[%s0 + $0x4c] sm:$0xf]
  %v79 = vld [vmem:[%s0 + $0x50] sm:$0xf]
  %v80 = vld [vmem:[%s0 + $0x54] sm:$0xf]
  %v81 = vld [vmem:[%s0 + $0x58] sm:$0xf]
  %v82 = vld [vmem:[%s0 + $0x5c] sm:$0xf]
  %v83 = vld [vmem:[%s0 + $0x60] sm:$0xf]
  %v84 = vld [vmem:[%s0 + $0x64] sm:$0xf]
  %v85 = vld [vmem:[%s0 + $0x68] sm:$0xf]
  %v86 = vld [vmem:[%s0 + $0x6c] sm:$0xf]
  %v87 = vld [vmem:[%s0 + $0x70] sm:$0xf]
  %v88 = vld [vmem:[%s0 + $0x74] sm:$0xf]
  %v89 = vld [vmem:[%s0 + $0x78] sm:$0xf]
  %v90 = vld [vmem:[%s0 + $0x7c] sm:$0xf]
  %v91 = vld [vmem:[%s0 + $0x80] sm:$0xf]
  %v92 = vld [vmem:[%s0 + $0x84] sm:$0xf]
  %v93 = vld [vmem:[%s0 + $0x88] sm:$0xf]
  %v94 = vld [vmem:[%s0 + $0x8c] sm:$0xf]
  %v95 = vld [vmem:[%s0 + $0x90] sm:$0xf]
  %v96 = vld [vmem:[%s0 + $0x94] sm:$0xf]
  %v97 = vld [vmem:[%s0 + $0x98] sm:$0xf]
  %v98 = vld [vmem:[%s0 + $0x9c] sm:$0xf]
  %v99 = vld [vmem:[%s0 + $0xa0] sm:$0xf]
  %v100 = vld [vmem:[%s0 + $0xa4] sm:$0xf]
  %v101 = vld [vmem:[%s0 + $0xa8] sm:$0xf]
  %v102 = vld [vmem:[%s0 + $0xac] sm:$0xf]
  %v103 = vld [vmem:[%s0 + $0xb0] sm:$0xf]
  %v104 = vld [vmem:[%s0 + $0xb4] sm:$0xf]
  %v105 = vld [vmem:[%s0 + $0xb8] sm:$0xf]
  %v106 = vld [vmem:[%s0 + $0xbc] sm:$0xf]
  %v107 = vld [vmem:[%s0 + $0xc0] sm:$0xf]
  %v108 = vld [vmem:[%s0 + $0xc4] sm:$0xf]
  %v109 = vld [vmem:[%s0 + $0xc8] sm:$0xf]
  %v110 = vld [vmem:[%s0 + $0xcc] sm:$0xf]
  %v111 = vld [vmem:[%s0 + $0xd0] sm:$0xf]
  %v112 = vld [vmem:[%s0 + $0xd4] sm:$0xf]
  %v113 = vld [vmem:[%s0 + $0xd8] sm:$0xf]
  %v114 = vld [vmem:[%s0 + $0xdc] sm:$0xf]
  %v115 = vld [vmem:[%s0 + $0xe0] sm:$0xf]
  %v116 = vld [vmem:[%s0 + $0xe4] sm:$0xf]
  %v117 = vld [vmem:[%s0 + $0xe8] sm:$0xf]
  %v118 = vld [vmem:[%s0 + $0xec] sm:$0xf]
  %v119 = vld [vmem:[%s0 + $0xf0] sm:$0xf]
  %v120 = vld [vmem:[%s0 + $0xf4] sm:$0xf]
  %v121 = vld [vmem:[%s0 + $0xf8] sm:$0xf]
  %v122 = vld [vmem:[%s0 + $0xfc] sm:$0xf]
  %v123 = vunpack.c.l.bf16 %v59
  %v124 = vunpack.c.l.bf16 %v60
  %v125 = vunpack.c.l.bf16 %v61
  %v126 = vunpack.c.l.bf16 %v62
  %v127 = vunpack.c.l.bf16 %v63
  %v128 = vunpack.c.l.bf16 %v64
  %v129 = vunpack.c.l.bf16 %v65
  %v130 = vunpack.c.l.bf16 %v66
  %v131 = vunpack.c.l.bf16 %v67
  %v132 = vunpack.c.l.bf16 %v68
  %v133 = vunpack.c.l.bf16 %v69
  %v134 = vunpack.c.l.bf16 %v70
  %v135 = vunpack.c.l.bf16 %v71
  %v136 = vunpack.c.l.bf16 %v72
  %v137 = vunpack.c.l.bf16 %v73
  %v138 = vunpack.c.l.bf16 %v74
  %v139 = vunpack.c.l.bf16 %v75
  %v140 = vunpack.c.l.bf16 %v76
  %v141 = vunpack.c.l.bf16 %v77
  %v142 = vunpack.c.l.bf16 %v78
  %v143 = vunpack.c.l.bf16 %v79
  %v144 = vunpack.c.l.bf16 %v80
  %v145 = vunpack.c.l.bf16 %v81
  %v146 = vunpack.c.l.bf16 %v82
  %v147 = vunpack.c.l.bf16 %v83
  %v148 = vunpack.c.l.bf16 %v84
  %v149 = vunpack.c.l.bf16 %v85
  %v150 = vunpack.c.l.bf16 %v86
  %v151 = vunpack.c.l.bf16 %v87
  %v152 = vunpack.c.l.bf16 %v88
  %v153 = vunpack.c.l.bf16 %v89
  %v154 = vunpack.c.l.bf16 %v90
  %v155 = vunpack.c.l.bf16 %v91
  %v156 = vunpack.c.l.bf16 %v92
  %v157 = vunpack.c.l.bf16 %v93
  %v158 = vunpack.c.l.bf16 %v94
  %v159 = vunpack.c.l.bf16 %v95
  %v160 = vunpack.c.l.bf16 %v96
  %v161 = vunpack.c.l.bf16 %v97
  %v162 = vunpack.c.l.bf16 %v98
  %v163 = vunpack.c.l.bf16 %v99
  %v164 = vunpack.c.l.bf16 %v100
  %v165 = vunpack.c.l.bf16 %v101
  %v166 = vunpack.c.l.bf16 %v102
  %v167 = vunpack.c.l.bf16 %v103
  %v168 = vunpack.c.l.bf16 %v104
  %v169 = vunpack.c.l.bf16 %v105
  %v170 = vunpack.c.l.bf16 %v106
  %v171 = vunpack.c.l.bf16 %v107
  %v172 = vunpack.c.l.bf16 %v108
  %v173 = vunpack.c.l.bf16 %v109
  %v174 = vunpack.c.l.bf16 %v110
  %v175 = vunpack.c.l.bf16 %v111
  %v176 = vunpack.c.l.bf16 %v112
  %v177 = vunpack.c.l.bf16 %v113
  %v178 = vunpack.c.l.bf16 %v114
  %v179 = vunpack.c.l.bf16 %v115
  %v180 = vunpack.c.l.bf16 %v116
  %v181 = vunpack.c.l.bf16 %v117
  %v182 = vunpack.c.l.bf16 %v118
  %v183 = vunpack.c.l.bf16 %v119
  %v184 = vunpack.c.l.bf16 %v120
  %v185 = vunpack.c.l.bf16 %v121
  %v186 = vunpack.c.l.bf16 %v122
  %v188 = vlaneseq
  %v189 = vshrl.u32 %v188, 7
  %v190 = vsub.s32 0, %v189
  %v191 = vrot.slane %v56, %v190
  %v193 = vmul.f32 %v123, %v191
  %v194 = vmul.f32 %v124, %v191
  %v195 = vmul.f32 %v125, %v191
  %v196 = vmul.f32 %v126, %v191
  %v197 = vmul.f32 %v127, %v191
  %v198 = vmul.f32 %v128, %v191
  %v199 = vmul.f32 %v129, %v191
  %v200 = vmul.f32 %v130, %v191
  %v201 = vmul.f32 %v131, %v191
  %v202 = vmul.f32 %v132, %v191
  %v203 = vmul.f32 %v133, %v191
  %v204 = vmul.f32 %v134, %v191
  %v205 = vmul.f32 %v135, %v191
  %v206 = vmul.f32 %v136, %v191
  %v207 = vmul.f32 %v137, %v191
  %v208 = vmul.f32 %v138, %v191
  %v209 = vmul.f32 %v139, %v191
  %v210 = vmul.f32 %v140, %v191
  %v211 = vmul.f32 %v141, %v191
  %v212 = vmul.f32 %v142, %v191
  %v213 = vmul.f32 %v143, %v191
  %v214 = vmul.f32 %v144, %v191
  %v215 = vmul.f32 %v145, %v191
  %v216 = vmul.f32 %v146, %v191
  %v217 = vmul.f32 %v147, %v191
  %v218 = vmul.f32 %v148, %v191
  %v219 = vmul.f32 %v149, %v191
  %v220 = vmul.f32 %v150, %v191
  %v221 = vmul.f32 %v151, %v191
  %v222 = vmul.f32 %v152, %v191
  %v223 = vmul.f32 %v153, %v191
  %v224 = vmul.f32 %v154, %v191
  %v225 = vmul.f32 %v155, %v191
  %v226 = vmul.f32 %v156, %v191
  %v227 = vmul.f32 %v157, %v191
  %v228 = vmul.f32 %v158, %v191
  %v229 = vmul.f32 %v159, %v191
  %v230 = vmul.f32 %v160, %v191
  %v231 = vmul.f32 %v161, %v191
  %v232 = vmul.f32 %v162, %v191
  %v233 = vmul.f32 %v163, %v191
  %v234 = vmul.f32 %v164, %v191
  %v235 = vmul.f32 %v165, %v191
  %v236 = vmul.f32 %v166, %v191
  %v237 = vmul.f32 %v167, %v191
  %v238 = vmul.f32 %v168, %v191
  %v239 = vmul.f32 %v169, %v191
  %v240 = vmul.f32 %v170, %v191
  %v241 = vmul.f32 %v171, %v191
  %v242 = vmul.f32 %v172, %v191
  %v243 = vmul.f32 %v173, %v191
  %v244 = vmul.f32 %v174, %v191
  %v245 = vmul.f32 %v175, %v191
  %v246 = vmul.f32 %v176, %v191
  %v247 = vmul.f32 %v177, %v191
  %v248 = vmul.f32 %v178, %v191
  %v249 = vmul.f32 %v179, %v191
  %v250 = vmul.f32 %v180, %v191
  %v251 = vmul.f32 %v181, %v191
  %v252 = vmul.f32 %v182, %v191
  %v253 = vmul.f32 %v183, %v191
  %v254 = vmul.f32 %v184, %v191
  %v255 = vmul.f32 %v185, %v191
  %v256 = vmul.f32 %v186, %v191
  %v258 = vlaneseq
  %v259 = vshrl.u32 %v258, 7
  %v260 = vsub.s32 0, %v259
  %v261 = vrot.slane %v58, %v260
  %v263 = vadd.f32 %v193, %v261
  %v264 = vadd.f32 %v194, %v261
  %v265 = vadd.f32 %v195, %v261
  %v266 = vadd.f32 %v196, %v261
  %v267 = vadd.f32 %v197, %v261
  %v268 = vadd.f32 %v198, %v261
  %v269 = vadd.f32 %v199, %v261
  %v270 = vadd.f32 %v200, %v261
  %v271 = vadd.f32 %v201, %v261
  %v272 = vadd.f32 %v202, %v261
  %v273 = vadd.f32 %v203, %v261
  %v274 = vadd.f32 %v204, %v261
  %v275 = vadd.f32 %v205, %v261
  %v276 = vadd.f32 %v206, %v261
  %v277 = vadd.f32 %v207, %v261
  %v278 = vadd.f32 %v208, %v261
  %v279 = vadd.f32 %v209, %v261
  %v280 = vadd.f32 %v210, %v261
  %v281 = vadd.f32 %v211, %v261
  %v282 = vadd.f32 %v212, %v261
  %v283 = vadd.f32 %v213, %v261
  %v284 = vadd.f32 %v214, %v261
  %v285 = vadd.f32 %v215, %v261
  %v286 = vadd.f32 %v216, %v261
  %v287 = vadd.f32 %v217, %v261
  %v288 = vadd.f32 %v218, %v261
  %v289 = vadd.f32 %v219, %v261
  %v290 = vadd.f32 %v220, %v261
  %v291 = vadd.f32 %v221, %v261
  %v292 = vadd.f32 %v222, %v261
  %v293 = vadd.f32 %v223, %v261
  %v294 = vadd.f32 %v224, %v261
  %v295 = vadd.f32 %v225, %v261
  %v296 = vadd.f32 %v226, %v261
  %v297 = vadd.f32 %v227, %v261
  %v298 = vadd.f32 %v228, %v261
  %v299 = vadd.f32 %v229, %v261
  %v300 = vadd.f32 %v230, %v261
  %v301 = vadd.f32 %v231, %v261
  %v302 = vadd.f32 %v232, %v261
  %v303 = vadd.f32 %v233, %v261
  %v304 = vadd.f32 %v234, %v261
  %v305 = vadd.f32 %v235, %v261
  %v306 = vadd.f32 %v236, %v261
  %v307 = vadd.f32 %v237, %v261
  %v308 = vadd.f32 %v238, %v261
  %v309 = vadd.f32 %v239, %v261
  %v310 = vadd.f32 %v240, %v261
  %v311 = vadd.f32 %v241, %v261
  %v312 = vadd.f32 %v242, %v261
  %v313 = vadd.f32 %v243, %v261
  %v314 = vadd.f32 %v244, %v261
  %v315 = vadd.f32 %v245, %v261
  %v316 = vadd.f32 %v246, %v261
  %v317 = vadd.f32 %v247, %v261
  %v318 = vadd.f32 %v248, %v261
  %v319 = vadd.f32 %v249, %v261
  %v320 = vadd.f32 %v250, %v261
  %v321 = vadd.f32 %v251, %v261
  %v322 = vadd.f32 %v252, %v261
  %v323 = vadd.f32 %v253, %v261
  %v324 = vadd.f32 %v254, %v261
  %v325 = vadd.f32 %v255, %v261
  %v326 = vadd.f32 %v256, %v261
  %v327 = vmax.f32 %v263, 0.0
  %v328 = vmax.f32 %v264, 0.0
  %v329 = vmax.f32 %v265, 0.0
  %v330 = vmax.f32 %v266, 0.0
  %v331 = vmax.f32 %v267, 0.0
  %v332 = vmax.f32 %v268, 0.0
  %v333 = vmax.f32 %v269, 0.0
  %v334 = vmax.f32 %v270, 0.0
  %v335 = vmax.f32 %v271, 0.0
  %v336 = vmax.f32 %v272, 0.0
  %v337 = vmax.f32 %v273, 0.0
  %v338 = vmax.f32 %v274, 0.0
  %v339 = vmax.f32 %v275, 0.0
  %v340 = vmax.f32 %v276, 0.0
  %v341 = vmax.f32 %v277, 0.0
  %v342 = vmax.f32 %v278, 0.0
  %v343 = vmax.f32 %v279, 0.0
  %v344 = vmax.f32 %v280, 0.0
  %v345 = vmax.f32 %v281, 0.0
  %v346 = vmax.f32 %v282, 0.0
  %v347 = vmax.f32 %v283, 0.0
  %v348 = vmax.f32 %v284, 0.0
  %v349 = vmax.f32 %v285, 0.0
  %v350 = vmax.f32 %v286, 0.0
  %v351 = vmax.f32 %v287, 0.0
  %v352 = vmax.f32 %v288, 0.0
  %v353 = vmax.f32 %v289, 0.0
  %v354 = vmax.f32 %v290, 0.0
  %v355 = vmax.f32 %v291, 0.0
  %v356 = vmax.f32 %v292, 0.0
  %v357 = vmax.f32 %v293, 0.0
  %v358 = vmax.f32 %v294, 0.0
  %v359 = vmax.f32 %v295, 0.0
  %v360 = vmax.f32 %v296, 0.0
  %v361 = vmax.f32 %v297, 0.0
  %v362 = vmax.f32 %v298, 0.0
  %v363 = vmax.f32 %v299, 0.0
  %v364 = vmax.f32 %v300, 0.0
  %v365 = vmax.f32 %v301, 0.0
  %v366 = vmax.f32 %v302, 0.0
  %v367 = vmax.f32 %v303, 0.0
  %v368 = vmax.f32 %v304, 0.0
  %v369 = vmax.f32 %v305, 0.0
  %v370 = vmax.f32 %v306, 0.0
  %v371 = vmax.f32 %v307, 0.0
  %v372 = vmax.f32 %v308, 0.0
  %v373 = vmax.f32 %v309, 0.0
  %v374 = vmax.f32 %v310, 0.0
  %v375 = vmax.f32 %v311, 0.0
  %v376 = vmax.f32 %v312, 0.0
  %v377 = vmax.f32 %v313, 0.0
  %v378 = vmax.f32 %v314, 0.0
  %v379 = vmax.f32 %v315, 0.0
  %v380 = vmax.f32 %v316, 0.0
  %v381 = vmax.f32 %v317, 0.0
  %v382 = vmax.f32 %v318, 0.0
  %v383 = vmax.f32 %v319, 0.0
  %v384 = vmax.f32 %v320, 0.0
  %v385 = vmax.f32 %v321, 0.0
  %v386 = vmax.f32 %v322, 0.0
  %v387 = vmax.f32 %v323, 0.0
  %v388 = vmax.f32 %v324, 0.0
  %v389 = vmax.f32 %v325, 0.0
  %v390 = vmax.f32 %v326, 0.0
  %v391 = vpack.c.bf16 %v328, %v327
  %v392 = vpack.c.bf16 %v330, %v329
  %v393 = vpack.c.bf16 %v332, %v331
  %v394 = vpack.c.bf16 %v334, %v333
  %v395 = vpack.c.bf16 %v336, %v335
  %v396 = vpack.c.bf16 %v338, %v337
  %v397 = vpack.c.bf16 %v340, %v339
  %v398 = vpack.c.bf16 %v342, %v341
  %v399 = vpack.c.bf16 %v344, %v343
  %v400 = vpack.c.bf16 %v346, %v345
  %v401 = vpack.c.bf16 %v348, %v347
  %v402 = vpack.c.bf16 %v350, %v349
  %v403 = vpack.c.bf16 %v352, %v351
  %v404 = vpack.c.bf16 %v354, %v353
  %v405 = vpack.c.bf16 %v356, %v355
  %v406 = vpack.c.bf16 %v358, %v357
  %v407 = vpack.c.bf16 %v360, %v359
  %v408 = vpack.c.bf16 %v362, %v361
  %v409 = vpack.c.bf16 %v364, %v363
  %v410 = vpack.c.bf16 %v366, %v365
  %v411 = vpack.c.bf16 %v368, %v367
  %v412 = vpack.c.bf16 %v370, %v369
  %v413 = vpack.c.bf16 %v372, %v371
  %v414 = vpack.c.bf16 %v374, %v373
  %v415 = vpack.c.bf16 %v376, %v375
  %v416 = vpack.c.bf16 %v378, %v377
  %v417 = vpack.c.bf16 %v380, %v379
  %v418 = vpack.c.bf16 %v382, %v381
  %v419 = vpack.c.bf16 %v384, %v383
  %v420 = vpack.c.bf16 %v386, %v385
  %v421 = vpack.c.bf16 %v388, %v387
  %v422 = vpack.c.bf16 %v390, %v389
  %v423 = vld [vmem:[%s4] sm:$0xf]
  %v424 = vld [vmem:[%s4 + $0x4] sm:$0xf]
  %v425 = vld [vmem:[%s4 + $0x8] sm:$0xf]
  %v426 = vld [vmem:[%s4 + $0xc] sm:$0xf]
  %v431 = vunpack.c.l.b16 %v423
  %v432 = vunpack.c.l.b16 %v424
  %v433 = vunpack.c.l.b16 %v425
  %v434 = vunpack.c.l.b16 %v426
  %v435 = vpack.c.b16 %v432, %v431
  %v436 = vpack.c.b16 %v434, %v433
  %vm439 = vcmask 261120
  %v441 = vsel %vm439, %v391, 0
  %v444 = vsel %vm439, %v392, 0
  %v447 = vsel %vm439, %v393, 0
  %v450 = vsel %vm439, %v394, 0
  %v453 = vsel %vm439, %v395, 0
  %v456 = vsel %vm439, %v396, 0
  %v459 = vsel %vm439, %v397, 0
  %v462 = vsel %vm439, %v398, 0
  %v465 = vsel %vm439, %v399, 0
  %v468 = vsel %vm439, %v400, 0
  %v471 = vsel %vm439, %v401, 0
  %v474 = vsel %vm439, %v402, 0
  %v477 = vsel %vm439, %v403, 0
  %v480 = vsel %vm439, %v404, 0
  %v483 = vsel %vm439, %v405, 0
  %v486 = vsel %vm439, %v406, 0
  %v489 = vsel %vm439, %v407, 0
  %v492 = vsel %vm439, %v408, 0
  %v495 = vsel %vm439, %v409, 0
  %v498 = vsel %vm439, %v410, 0
  %v501 = vsel %vm439, %v411, 0
  %v504 = vsel %vm439, %v412, 0
  %v507 = vsel %vm439, %v413, 0
  %v510 = vsel %vm439, %v414, 0
  %v513 = vsel %vm439, %v415, 0
  %v516 = vsel %vm439, %v416, 0
  %v519 = vsel %vm439, %v417, 0
  %v522 = vsel %vm439, %v418, 0
  %v525 = vsel %vm439, %v419, 0
  %v528 = vsel %vm439, %v420, 0
  %v531 = vsel %vm439, %v421, 0
  %v534 = vsel %vm439, %v422, 0
  %536 = vmatprep.subr.bf16.mxu0 0
  %537 = vmatpush1.bf16.msra.mxu0 %v435
  %538 = vmatprep.subr.bf16.mxu0 0
  %539 = vmatpush1.bf16.msra.mxu0 %v436
  %540 = vmatprep.subr.bf16.mxu0 0
  %541 = vmatpush1.bf16.msra.mxu0 0
  %542 = vmatprep.subr.bf16.mxu0 0
  %543 = vmatpush1.bf16.msra.mxu0 0
  %544 = vmatprep.subr.bf16.mxu0 0
  %545 = vmatpush1.bf16.msra.mxu0 0
  %546 = vmatprep.subr.bf16.mxu0 0
  %547 = vmatpush1.bf16.msra.mxu0 0
  %548 = vmatprep.subr.bf16.mxu0 0
  %549 = vmatpush1.bf16.msra.mxu0 0
  %550 = vmatprep.subr.bf16.mxu0 0
  %551 = vmatpush1.bf16.msra.mxu0 0
  %552 = vmatprep.subr.bf16.mxu0 0
  %553 = vmatpush1.bf16.msra.mxu0 0
  %554 = vmatprep.subr.bf16.mxu0 0
  %555 = vmatpush1.bf16.msra.mxu0 0
  %556 = vmatprep.subr.bf16.mxu0 0
  %557 = vmatpush1.bf16.msra.mxu0 0
  %558 = vmatprep.subr.bf16.mxu0 0
  %559 = vmatpush1.bf16.msra.mxu0 0
  %560 = vmatprep.subr.bf16.mxu0 0
  %561 = vmatpush1.bf16.msra.mxu0 0
  %562 = vmatprep.subr.bf16.mxu0 0
  %563 = vmatpush1.bf16.msra.mxu0 0
  %564 = vmatprep.subr.bf16.mxu0 0
  %565 = vmatpush1.bf16.msra.mxu0 0
  %566 = vmatprep.subr.bf16.mxu0 0
  %567 = vmatpush1.bf16.msra.mxu0 0
  %568 = vmatprep.mubr.bf16.mxu0 0
  %569 = vmatmul.mubr.bf16.gmra.mrb[0].mxu0 %v441
  %v570 = vpop.f32.mrb[0].mxu0
  %v571 = vadd.f32 0.0, %v570
  %v572 = vpop.f32.mrb[0].mxu0
  %v573 = vpop.f32.mrb[0].mxu0
  %v574 = vadd.f32 0.0, %v573
  %v575 = vpop.f32.mrb[0].mxu0
  %576 = vmatprep.mubr.bf16.mxu0 0
  %577 = vmatmul.mubr.bf16.gmra.mrb[0].mxu0 %v444
  %v578 = vpop.f32.mrb[0].mxu0
  %v579 = vadd.f32 0.0, %v578
  %v580 = vpop.f32.mrb[0].mxu0
  %v581 = vpop.f32.mrb[0].mxu0
  %v582 = vadd.f32 0.0, %v581
  %v583 = vpop.f32.mrb[0].mxu0
  %584 = vmatprep.mubr.bf16.mxu0 0
  %585 = vmatmul.mubr.bf16.gmra.mrb[0].mxu0 %v447
  %v586 = vpop.f32.mrb[0].mxu0
  %v587 = vadd.f32 0.0, %v586
  %v588 = vpop.f32.mrb[0].mxu0
  %v589 = vpop.f32.mrb[0].mxu0
  %v590 = vadd.f32 0.0, %v589
  %v591 = vpop.f32.mrb[0].mxu0
  %592 = vmatprep.mubr.bf16.mxu0 0
  %593 = vmatmul.mubr.bf16.gmra.mrb[0].mxu0 %v450
  %v594 = vpop.f32.mrb[0].mxu0
  %v595 = vadd.f32 0.0, %v594
  %v596 = vpop.f32.mrb[0].mxu0
  %v597 = vpop.f32.mrb[0].mxu0
  %v598 = vadd.f32 0.0, %v597
  %v599 = vpop.f32.mrb[0].mxu0
  %600 = vmatprep.mubr.bf16.mxu0 0
  %601 = vmatmul.mubr.bf16.gmra.mrb[0].mxu0 %v453
  %v602 = vpop.f32.mrb[0].mxu0
  %v603 = vadd.f32 0.0, %v602
  %v604 = vpop.f32.mrb[0].mxu0
  %v605 = vpop.f32.mrb[0].mxu0
  %v606 = vadd.f32 0.0, %v605
  %v607 = vpop.f32.mrb[0].mxu0
  %608 = vmatprep.mubr.bf16.mxu0 0
  %609 = vmatmul.mubr.bf16.gmra.mrb[0].mxu0 %v456
  %v610 = vpop.f32.mrb[0].mxu0
  %v611 = vadd.f32 0.0, %v610
  %v612 = vpop.f32.mrb[0].mxu0
  %v613 = vpop.f32.mrb[0].mxu0
  %v614 = vadd.f32 0.0, %v613
  %v615 = vpop.f32.mrb[0].mxu0
  %616 = vmatprep.mubr.bf16.mxu0 0
  %617 = vmatmul.mubr.bf16.gmra.mrb[0].mxu0 %v459
  %v618 = vpop.f32.mrb[0].mxu0
  %v619 = vadd.f32 0.0, %v618
  %v620 = vpop.f32.mrb[0].mxu0
  %v621 = vpop.f32.mrb[0].mxu0
  %v622 = vadd.f32 0.0, %v621
  %v623 = vpop.f32.mrb[0].mxu0
  %624 = vmatprep.mubr.bf16.mxu0 0
  %625 = vmatmul.mubr.bf16.gmra.mrb[0].mxu0 %v462
  %v626 = vpop.f32.mrb[0].mxu0
  %v627 = vadd.f32 0.0, %v626
  %v628 = vpop.f32.mrb[0].mxu0
  %v629 = vpop.f32.mrb[0].mxu0
  %v630 = vadd.f32 0.0, %v629
  %v631 = vpop.f32.mrb[0].mxu0
  %632 = vmatprep.mubr.bf16.mxu0 0
  %633 = vmatmul.mubr.bf16.gmra.mrb[0].mxu0 %v465
  %v634 = vpop.f32.mrb[0].mxu0
  %v635 = vadd.f32 0.0, %v634
  %v636 = vpop.f32.mrb[0].mxu0
  %v637 = vpop.f32.mrb[0].mxu0
  %v638 = vadd.f32 0.0, %v637
  %v639 = vpop.f32.mrb[0].mxu0
  %640 = vmatprep.mubr.bf16.mxu0 0
  %641 = vmatmul.mubr.bf16.gmra.mrb[0].mxu0 %v468
  %v642 = vpop.f32.mrb[0].mxu0
  %v643 = vadd.f32 0.0, %v642
  %v644 = vpop.f32.mrb[0].mxu0
  %v645 = vpop.f32.mrb[0].mxu0
  %v646 = vadd.f32 0.0, %v645
  %v647 = vpop.f32.mrb[0].mxu0
  %648 = vmatprep.mubr.bf16.mxu0 0
  %649 = vmatmul.mubr.bf16.gmra.mrb[0].mxu0 %v471
  %v650 = vpop.f32.mrb[0].mxu0
  %v651 = vadd.f32 0.0, %v650
  %v652 = vpop.f32.mrb[0].mxu0
  %v653 = vpop.f32.mrb[0].mxu0
  %v654 = vadd.f32 0.0, %v653
  %v655 = vpop.f32.mrb[0].mxu0
  %656 = vmatprep.mubr.bf16.mxu0 0
  %657 = vmatmul.mubr.bf16.gmra.mrb[0].mxu0 %v474
  %v658 = vpop.f32.mrb[0].mxu0
  %v659 = vadd.f32 0.0, %v658
  %v660 = vpop.f32.mrb[0].mxu0
  %v661 = vpop.f32.mrb[0].mxu0
  %v662 = vadd.f32 0.0, %v661
  %v663 = vpop.f32.mrb[0].mxu0
  %664 = vmatprep.mubr.bf16.mxu0 0
  %665 = vmatmul.mubr.bf16.gmra.mrb[0].mxu0 %v477
  %v666 = vpop.f32.mrb[0].mxu0
  %v667 = vadd.f32 0.0, %v666
  %v668 = vpop.f32.mrb[0].mxu0
  %v669 = vpop.f32.mrb[0].mxu0
  %v670 = vadd.f32 0.0, %v669
  %v671 = vpop.f32.mrb[0].mxu0
  %672 = vmatprep.mubr.bf16.mxu0 0
  %673 = vmatmul.mubr.bf16.gmra.mrb[0].mxu0 %v480
  %v674 = vpop.f32.mrb[0].mxu0
  %v675 = vadd.f32 0.0, %v674
  %v676 = vpop.f32.mrb[0].mxu0
  %v677 = vpop.f32.mrb[0].mxu0
  %v678 = vadd.f32 0.0, %v677
  %v679 = vpop.f32.mrb[0].mxu0
  %680 = vmatprep.mubr.bf16.mxu0 0
  %681 = vmatmul.mubr.bf16.gmra.mrb[0].mxu0 %v483
  %v682 = vpop.f32.mrb[0].mxu0
  %v683 = vadd.f32 0.0, %v682
  %v684 = vpop.f32.mrb[0].mxu0
  %v685 = vpop.f32.mrb[0].mxu0
  %v686 = vadd.f32 0.0, %v685
  %v687 = vpop.f32.mrb[0].mxu0
  %688 = vmatprep.mubr.bf16.mxu0 0
  %689 = vmatmul.mubr.bf16.gmra.mrb[0].mxu0 %v486
  %v690 = vpop.f32.mrb[0].mxu0
  %v691 = vadd.f32 0.0, %v690
  %v692 = vpop.f32.mrb[0].mxu0
  %v693 = vpop.f32.mrb[0].mxu0
  %v694 = vadd.f32 0.0, %v693
  %v695 = vpop.f32.mrb[0].mxu0
  %696 = vmatprep.mubr.bf16.mxu0 0
  %697 = vmatmul.mubr.bf16.gmra.mrb[0].mxu0 %v489
  %v698 = vpop.f32.mrb[0].mxu0
  %v699 = vadd.f32 0.0, %v698
  %v700 = vpop.f32.mrb[0].mxu0
  %v701 = vpop.f32.mrb[0].mxu0
  %v702 = vadd.f32 0.0, %v701
  %v703 = vpop.f32.mrb[0].mxu0
  %704 = vmatprep.mubr.bf16.mxu0 0
  %705 = vmatmul.mubr.bf16.gmra.mrb[0].mxu0 %v492
  %v706 = vpop.f32.mrb[0].mxu0
  %v707 = vadd.f32 0.0, %v706
  %v708 = vpop.f32.mrb[0].mxu0
  %v709 = vpop.f32.mrb[0].mxu0
  %v710 = vadd.f32 0.0, %v709
  %v711 = vpop.f32.mrb[0].mxu0
  %712 = vmatprep.mubr.bf16.mxu0 0
  %713 = vmatmul.mubr.bf16.gmra.mrb[0].mxu0 %v495
  %v714 = vpop.f32.mrb[0].mxu0
  %v715 = vadd.f32 0.0, %v714
  %v716 = vpop.f32.mrb[0].mxu0
  %v717 = vpop.f32.mrb[0].mxu0
  %v718 = vadd.f32 0.0, %v717
  %v719 = vpop.f32.mrb[0].mxu0
  %720 = vmatprep.mubr.bf16.mxu0 0
  %721 = vmatmul.mubr.bf16.gmra.mrb[0].mxu0 %v498
  %v722 = vpop.f32.mrb[0].mxu0
  %v723 = vadd.f32 0.0, %v722
  %v724 = vpop.f32.mrb[0].mxu0
  %v725 = vpop.f32.mrb[0].mxu0
  %v726 = vadd.f32 0.0, %v725
  %v727 = vpop.f32.mrb[0].mxu0
  %728 = vmatprep.mubr.bf16.mxu0 0
  %729 = vmatmul.mubr.bf16.gmra.mrb[0].mxu0 %v501
  %v730 = vpop.f32.mrb[0].mxu0
  %v731 = vadd.f32 0.0, %v730
  %v732 = vpop.f32.mrb[0].mxu0
  %v733 = vpop.f32.mrb[0].mxu0
  %v734 = vadd.f32 0.0, %v733
  %v735 = vpop.f32.mrb[0].mxu0
  %736 = vmatprep.mubr.bf16.mxu0 0
  %737 = vmatmul.mubr.bf16.gmra.mrb[0].mxu0 %v504
  %v738 = vpop.f32.mrb[0].mxu0
  %v739 = vadd.f32 0.0, %v738
  %v740 = vpop.f32.mrb[0].mxu0
  %v741 = vpop.f32.mrb[0].mxu0
  %v742 = vadd.f32 0.0, %v741
  %v743 = vpop.f32.mrb[0].mxu0
  %744 = vmatprep.mubr.bf16.mxu0 0
  %745 = vmatmul.mubr.bf16.gmra.mrb[0].mxu0 %v507
  %v746 = vpop.f32.mrb[0].mxu0
  %v747 = vadd.f32 0.0, %v746
  %v748 = vpop.f32.mrb[0].mxu0
  %v749 = vpop.f32.mrb[0].mxu0
  %v750 = vadd.f32 0.0, %v749
  %v751 = vpop.f32.mrb[0].mxu0
  %752 = vmatprep.mubr.bf16.mxu0 0
  %753 = vmatmul.mubr.bf16.gmra.mrb[0].mxu0 %v510
  %v754 = vpop.f32.mrb[0].mxu0
  %v755 = vadd.f32 0.0, %v754
  %v756 = vpop.f32.mrb[0].mxu0
  %v757 = vpop.f32.mrb[0].mxu0
  %v758 = vadd.f32 0.0, %v757
  %v759 = vpop.f32.mrb[0].mxu0
  %760 = vmatprep.mubr.bf16.mxu0 0
  %761 = vmatmul.mubr.bf16.gmra.mrb[0].mxu0 %v513
  %v762 = vpop.f32.mrb[0].mxu0
  %v763 = vadd.f32 0.0, %v762
  %v764 = vpop.f32.mrb[0].mxu0
  %v765 = vpop.f32.mrb[0].mxu0
  %v766 = vadd.f32 0.0, %v765
  %v767 = vpop.f32.mrb[0].mxu0
  %768 = vmatprep.mubr.bf16.mxu0 0
  %769 = vmatmul.mubr.bf16.gmra.mrb[0].mxu0 %v516
  %v770 = vpop.f32.mrb[0].mxu0
  %v771 = vadd.f32 0.0, %v770
  %v772 = vpop.f32.mrb[0].mxu0
  %v773 = vpop.f32.mrb[0].mxu0
  %v774 = vadd.f32 0.0, %v773
  %v775 = vpop.f32.mrb[0].mxu0
  %776 = vmatprep.mubr.bf16.mxu0 0
  %777 = vmatmul.mubr.bf16.gmra.mrb[0].mxu0 %v519
  %v778 = vpop.f32.mrb[0].mxu0
  %v779 = vadd.f32 0.0, %v778
  %v780 = vpop.f32.mrb[0].mxu0
  %v781 = vpop.f32.mrb[0].mxu0
  %v782 = vadd.f32 0.0, %v781
  %v783 = vpop.f32.mrb[0].mxu0
  %784 = vmatprep.mubr.bf16.mxu0 0
  %785 = vmatmul.mubr.bf16.gmra.mrb[0].mxu0 %v522
  %v786 = vpop.f32.mrb[0].mxu0
  %v787 = vadd.f32 0.0, %v786
  %v788 = vpop.f32.mrb[0].mxu0
  %v789 = vpop.f32.mrb[0].mxu0
  %v790 = vadd.f32 0.0, %v789
  %v791 = vpop.f32.mrb[0].mxu0
  %792 = vmatprep.mubr.bf16.mxu0 0
  %793 = vmatmul.mubr.bf16.gmra.mrb[0].mxu0 %v525
  %v794 = vpop.f32.mrb[0].mxu0
  %v795 = vadd.f32 0.0, %v794
  %v796 = vpop.f32.mrb[0].mxu0
  %v797 = vpop.f32.mrb[0].mxu0
  %v798 = vadd.f32 0.0, %v797
  %v799 = vpop.f32.mrb[0].mxu0
  %800 = vmatprep.mubr.bf16.mxu0 0
  %801 = vmatmul.mubr.bf16.gmra.mrb[0].mxu0 %v528
  %v802 = vpop.f32.mrb[0].mxu0
  %v803 = vadd.f32 0.0, %v802
  %v804 = vpop.f32.mrb[0].mxu0
  %v805 = vpop.f32.mrb[0].mxu0
  %v806 = vadd.f32 0.0, %v805
  %v807 = vpop.f32.mrb[0].mxu0
  %808 = vmatprep.mubr.bf16.mxu0 0
  %809 = vmatmul.mubr.bf16.gmra.mrb[0].mxu0 %v531
  %v810 = vpop.f32.mrb[0].mxu0
  %v811 = vadd.f32 0.0, %v810
  %v812 = vpop.f32.mrb[0].mxu0
  %v813 = vpop.f32.mrb[0].mxu0
  %v814 = vadd.f32 0.0, %v813
  %v815 = vpop.f32.mrb[0].mxu0
  %816 = vmatprep.mubr.bf16.mxu0 0
  %817 = vmatmul.mubr.bf16.gmra.mrb[0].mxu0 %v534
  %v818 = vpop.f32.mrb[0].mxu0
  %v819 = vadd.f32 0.0, %v818
  %v820 = vpop.f32.mrb[0].mxu0
  %v821 = vpop.f32.mrb[0].mxu0
  %v822 = vadd.f32 0.0, %v821
  %v823 = vpop.f32.mrb[0].mxu0
  %824 = vdwg.mxu0
  %v825 = vpack.c.bf16 %v574, %v571
  %v826 = vpack.c.bf16 %v582, %v579
  %v827 = vpack.c.bf16 %v590, %v587
  %v828 = vpack.c.bf16 %v598, %v595
  %v829 = vpack.c.bf16 %v606, %v603
  %v830 = vpack.c.bf16 %v614, %v611
  %v831 = vpack.c.bf16 %v622, %v619
  %v832 = vpack.c.bf16 %v630, %v627
  %v833 = vpack.c.bf16 %v638, %v635
  %v834 = vpack.c.bf16 %v646, %v643
  %v835 = vpack.c.bf16 %v654, %v651
  %v836 = vpack.c.bf16 %v662, %v659
  %v837 = vpack.c.bf16 %v670, %v667
  %v838 = vpack.c.bf16 %v678, %v675
  %v839 = vpack.c.bf16 %v686, %v683
  %v840 = vpack.c.bf16 %v694, %v691
  %v841 = vpack.c.bf16 %v702, %v699
  %v842 = vpack.c.bf16 %v710, %v707
  %v843 = vpack.c.bf16 %v718, %v715
  %v844 = vpack.c.bf16 %v726, %v723
  %v845 = vpack.c.bf16 %v734, %v731
  %v846 = vpack.c.bf16 %v742, %v739
  %v847 = vpack.c.bf16 %v750, %v747
  %v848 = vpack.c.bf16 %v758, %v755
  %v849 = vpack.c.bf16 %v766, %v763
  %v850 = vpack.c.bf16 %v774, %v771
  %v851 = vpack.c.bf16 %v782, %v779
  %v852 = vpack.c.bf16 %v790, %v787
  %v853 = vpack.c.bf16 %v798, %v795
  %v854 = vpack.c.bf16 %v806, %v803
  %v855 = vpack.c.bf16 %v814, %v811
  %v856 = vpack.c.bf16 %v822, %v819
  %v889 = vunpack.c.l.b16 %v825
  %v890 = vunpack.c.h.b16 %v825
  %v891 = vunpack.c.l.b16 %v826
  %v892 = vunpack.c.h.b16 %v826
  %v893 = vunpack.c.l.b16 %v827
  %v894 = vunpack.c.h.b16 %v827
  %v895 = vunpack.c.l.b16 %v828
  %v896 = vunpack.c.h.b16 %v828
  %v897 = vunpack.c.l.b16 %v829
  %v898 = vunpack.c.h.b16 %v829
  %v899 = vunpack.c.l.b16 %v830
  %v900 = vunpack.c.h.b16 %v830
  %v901 = vunpack.c.l.b16 %v831
  %v902 = vunpack.c.h.b16 %v831
  %v903 = vunpack.c.l.b16 %v832
  %v904 = vunpack.c.h.b16 %v832
  %v905 = vunpack.c.l.b16 %v833
  %v906 = vunpack.c.h.b16 %v833
  %v907 = vunpack.c.l.b16 %v834
  %v908 = vunpack.c.h.b16 %v834
  %v909 = vunpack.c.l.b16 %v835
  %v910 = vunpack.c.h.b16 %v835
  %v911 = vunpack.c.l.b16 %v836
  %v912 = vunpack.c.h.b16 %v836
  %v913 = vunpack.c.l.b16 %v837
  %v914 = vunpack.c.h.b16 %v837
  %v915 = vunpack.c.l.b16 %v838
  %v916 = vunpack.c.h.b16 %v838
  %v917 = vunpack.c.l.b16 %v839
  %v918 = vunpack.c.h.b16 %v839
  %v919 = vunpack.c.l.b16 %v840
  %v920 = vunpack.c.h.b16 %v840
  %v921 = vunpack.c.l.b16 %v841
  %v922 = vunpack.c.h.b16 %v841
  %v923 = vunpack.c.l.b16 %v842
  %v924 = vunpack.c.h.b16 %v842
  %v925 = vunpack.c.l.b16 %v843
  %v926 = vunpack.c.h.b16 %v843
  %v927 = vunpack.c.l.b16 %v844
  %v928 = vunpack.c.h.b16 %v844
  %v929 = vunpack.c.l.b16 %v845
  %v930 = vunpack.c.h.b16 %v845
  %v931 = vunpack.c.l.b16 %v846
  %v932 = vunpack.c.h.b16 %v846
  %v933 = vunpack.c.l.b16 %v847
  %v934 = vunpack.c.h.b16 %v847
  %v935 = vunpack.c.l.b16 %v848
  %v936 = vunpack.c.h.b16 %v848
  %v937 = vunpack.c.l.b16 %v849
  %v938 = vunpack.c.h.b16 %v849
  %v939 = vunpack.c.l.b16 %v850
  %v940 = vunpack.c.h.b16 %v850
  %v941 = vunpack.c.l.b16 %v851
  %v942 = vunpack.c.h.b16 %v851
  %v943 = vunpack.c.l.b16 %v852
  %v944 = vunpack.c.h.b16 %v852
  %v945 = vunpack.c.l.b16 %v853
  %v946 = vunpack.c.h.b16 %v853
  %v947 = vunpack.c.l.b16 %v854
  %v948 = vunpack.c.h.b16 %v854
  %v949 = vunpack.c.l.b16 %v855
  %v950 = vunpack.c.h.b16 %v855
  %v951 = vunpack.c.l.b16 %v856
  %v952 = vunpack.c.h.b16 %v856
  %v953 = vpack.c.b16 %v889, %v889
  %v954 = vpack.c.b16 %v890, %v890
  %v955 = vpack.c.b16 %v891, %v891
  %v956 = vpack.c.b16 %v892, %v892
  %v957 = vpack.c.b16 %v893, %v893
  %v958 = vpack.c.b16 %v894, %v894
  %v959 = vpack.c.b16 %v895, %v895
  %v960 = vpack.c.b16 %v896, %v896
  %v961 = vpack.c.b16 %v897, %v897
  %v962 = vpack.c.b16 %v898, %v898
  %v963 = vpack.c.b16 %v899, %v899
  %v964 = vpack.c.b16 %v900, %v900
  %v965 = vpack.c.b16 %v901, %v901
  %v966 = vpack.c.b16 %v902, %v902
  %v967 = vpack.c.b16 %v903, %v903
  %v968 = vpack.c.b16 %v904, %v904
  %v969 = vpack.c.b16 %v905, %v905
  %v970 = vpack.c.b16 %v906, %v906
  %v971 = vpack.c.b16 %v907, %v907
  %v972 = vpack.c.b16 %v908, %v908
  %v973 = vpack.c.b16 %v909, %v909
  %v974 = vpack.c.b16 %v910, %v910
  %v975 = vpack.c.b16 %v911, %v911
  %v976 = vpack.c.b16 %v912, %v912
  %v977 = vpack.c.b16 %v913, %v913
  %v978 = vpack.c.b16 %v914, %v914
  %v979 = vpack.c.b16 %v915, %v915
  %v980 = vpack.c.b16 %v916, %v916
  %v981 = vpack.c.b16 %v917, %v917
  %v982 = vpack.c.b16 %v918, %v918
  %v983 = vpack.c.b16 %v919, %v919
  %v984 = vpack.c.b16 %v920, %v920
  %v985 = vpack.c.b16 %v921, %v921
  %v986 = vpack.c.b16 %v922, %v922
  %v987 = vpack.c.b16 %v923, %v923
  %v988 = vpack.c.b16 %v924, %v924
  %v989 = vpack.c.b16 %v925, %v925
  %v990 = vpack.c.b16 %v926, %v926
  %v991 = vpack.c.b16 %v927, %v927
  %v992 = vpack.c.b16 %v928, %v928
  %v993 = vpack.c.b16 %v929, %v929
  %v994 = vpack.c.b16 %v930, %v930
  %v995 = vpack.c.b16 %v931, %v931
  %v996 = vpack.c.b16 %v932, %v932
  %v997 = vpack.c.b16 %v933, %v933
  %v998 = vpack.c.b16 %v934, %v934
  %v999 = vpack.c.b16 %v935, %v935
  %v1000 = vpack.c.b16 %v936, %v936
  %v1001 = vpack.c.b16 %v937, %v937
  %v1002 = vpack.c.b16 %v938, %v938
  %v1003 = vpack.c.b16 %v939, %v939
  %v1004 = vpack.c.b16 %v940, %v940
  %v1005 = vpack.c.b16 %v941, %v941
  %v1006 = vpack.c.b16 %v942, %v942
  %v1007 = vpack.c.b16 %v943, %v943
  %v1008 = vpack.c.b16 %v944, %v944
  %v1009 = vpack.c.b16 %v945, %v945
  %v1010 = vpack.c.b16 %v946, %v946
  %v1011 = vpack.c.b16 %v947, %v947
  %v1012 = vpack.c.b16 %v948, %v948
  %v1013 = vpack.c.b16 %v949, %v949
  %v1014 = vpack.c.b16 %v950, %v950
  %v1015 = vpack.c.b16 %v951, %v951
  %v1016 = vpack.c.b16 %v952, %v952
  %1081 = vst [vmem:[%s5] sm:$0xf] %v953
  %1082 = vst [vmem:[%s5 + $0x4] sm:$0xf] %v954
  %1083 = vst [vmem:[%s5 + $0x8] sm:$0xf] %v955
  %1084 = vst [vmem:[%s5 + $0xc] sm:$0xf] %v956
  %1085 = vst [vmem:[%s5 + $0x10] sm:$0xf] %v957
  %1086 = vst [vmem:[%s5 + $0x14] sm:$0xf] %v958
  %1087 = vst [vmem:[%s5 + $0x18] sm:$0xf] %v959
  %1088 = vst [vmem:[%s5 + $0x1c] sm:$0xf] %v960
  %1089 = vst [vmem:[%s5 + $0x20] sm:$0xf] %v961
  %1090 = vst [vmem:[%s5 + $0x24] sm:$0xf] %v962
  %1091 = vst [vmem:[%s5 + $0x28] sm:$0xf] %v963
  %1092 = vst [vmem:[%s5 + $0x2c] sm:$0xf] %v964
  %1093 = vst [vmem:[%s5 + $0x30] sm:$0xf] %v965
  %1094 = vst [vmem:[%s5 + $0x34] sm:$0xf] %v966
  %1095 = vst [vmem:[%s5 + $0x38] sm:$0xf] %v967
  %1096 = vst [vmem:[%s5 + $0x3c] sm:$0xf] %v968
  %1097 = vst [vmem:[%s5 + $0x40] sm:$0xf] %v969
  %1098 = vst [vmem:[%s5 + $0x44] sm:$0xf] %v970
  %1099 = vst [vmem:[%s5 + $0x48] sm:$0xf] %v971
  %1100 = vst [vmem:[%s5 + $0x4c] sm:$0xf] %v972
  %1101 = vst [vmem:[%s5 + $0x50] sm:$0xf] %v973
  %1102 = vst [vmem:[%s5 + $0x54] sm:$0xf] %v974
  %1103 = vst [vmem:[%s5 + $0x58] sm:$0xf] %v975
  %1104 = vst [vmem:[%s5 + $0x5c] sm:$0xf] %v976
  %1105 = vst [vmem:[%s5 + $0x60] sm:$0xf] %v977
  %1106 = vst [vmem:[%s5 + $0x64] sm:$0xf] %v978
  %1107 = vst [vmem:[%s5 + $0x68] sm:$0xf] %v979
  %1108 = vst [vmem:[%s5 + $0x6c] sm:$0xf] %v980
  %1109 = vst [vmem:[%s5 + $0x70] sm:$0xf] %v981
  %1110 = vst [vmem:[%s5 + $0x74] sm:$0xf] %v982
  %1111 = vst [vmem:[%s5 + $0x78] sm:$0xf] %v983
  %1112 = vst [vmem:[%s5 + $0x7c] sm:$0xf] %v984
  %1113 = vst [vmem:[%s5 + $0x80] sm:$0xf] %v985
  %1114 = vst [vmem:[%s5 + $0x84] sm:$0xf] %v986
  %1115 = vst [vmem:[%s5 + $0x88] sm:$0xf] %v987
  %1116 = vst [vmem:[%s5 + $0x8c] sm:$0xf] %v988
  %1117 = vst [vmem:[%s5 + $0x90] sm:$0xf] %v989
  %1118 = vst [vmem:[%s5 + $0x94] sm:$0xf] %v990
  %1119 = vst [vmem:[%s5 + $0x98] sm:$0xf] %v991
  %1120 = vst [vmem:[%s5 + $0x9c] sm:$0xf] %v992
  %1121 = vst [vmem:[%s5 + $0xa0] sm:$0xf] %v993
  %1122 = vst [vmem:[%s5 + $0xa4] sm:$0xf] %v994
  %1123 = vst [vmem:[%s5 + $0xa8] sm:$0xf] %v995
  %1124 = vst [vmem:[%s5 + $0xac] sm:$0xf] %v996
  %1125 = vst [vmem:[%s5 + $0xb0] sm:$0xf] %v997
  %1126 = vst [vmem:[%s5 + $0xb4] sm:$0xf] %v998
  %1127 = vst [vmem:[%s5 + $0xb8] sm:$0xf] %v999
  %1128 = vst [vmem:[%s5 + $0xbc] sm:$0xf] %v1000
  %1129 = vst [vmem:[%s5 + $0xc0] sm:$0xf] %v1001
  %1130 = vst [vmem:[%s5 + $0xc4] sm:$0xf] %v1002
  %1131 = vst [vmem:[%s5 + $0xc8] sm:$0xf] %v1003
  %1132 = vst [vmem:[%s5 + $0xcc] sm:$0xf] %v1004
  %1133 = vst [vmem:[%s5 + $0xd0] sm:$0xf] %v1005
  %1134 = vst [vmem:[%s5 + $0xd4] sm:$0xf] %v1006
  %1135 = vst [vmem:[%s5 + $0xd8] sm:$0xf] %v1007
  %1136 = vst [vmem:[%s5 + $0xdc] sm:$0xf] %v1008
  %1137 = vst [vmem:[%s5 + $0xe0] sm:$0xf] %v1009
  %1138 = vst [vmem:[%s5 + $0xe4] sm:$0xf] %v1010
  %1139 = vst [vmem:[%s5 + $0xe8] sm:$0xf] %v1011
  %1140 = vst [vmem:[%s5 + $0xec] sm:$0xf] %v1012
  %1141 = vst [vmem:[%s5 + $0xf0] sm:$0xf] %v1013
  %1142 = vst [vmem:[%s5 + $0xf4] sm:$0xf] %v1014
  %1143 = vst [vmem:[%s5 + $0xf8] sm:$0xf] %v1015
  %1144 = vst [vmem:[%s5 + $0xfc] sm:$0xf] %v1016
  %v1145 = vadd.f32 %v571, %v574
  %v1146 = vadd.f32 %v1145, %v579
  %v1147 = vadd.f32 %v1146, %v582
  %v1148 = vadd.f32 %v1147, %v587
  %v1149 = vadd.f32 %v1148, %v590
  %v1150 = vadd.f32 %v1149, %v595
  %v1151 = vadd.f32 %v1150, %v598
  %v1152 = vadd.f32 %v1151, %v603
  %v1153 = vadd.f32 %v1152, %v606
  %v1154 = vadd.f32 %v1153, %v611
  %v1155 = vadd.f32 %v1154, %v614
  %v1156 = vadd.f32 %v1155, %v619
  %v1157 = vadd.f32 %v1156, %v622
  %v1158 = vadd.f32 %v1157, %v627
  %v1159 = vadd.f32 %v1158, %v630
  %v1160 = vadd.f32 %v1159, %v635
  %v1161 = vadd.f32 %v1160, %v638
  %v1162 = vadd.f32 %v1161, %v643
  %v1163 = vadd.f32 %v1162, %v646
  %v1164 = vadd.f32 %v1163, %v651
  %v1165 = vadd.f32 %v1164, %v654
  %v1166 = vadd.f32 %v1165, %v659
  %v1167 = vadd.f32 %v1166, %v662
  %v1168 = vadd.f32 %v1167, %v667
  %v1169 = vadd.f32 %v1168, %v670
  %v1170 = vadd.f32 %v1169, %v675
  %v1171 = vadd.f32 %v1170, %v678
  %v1172 = vadd.f32 %v1171, %v683
  %v1173 = vadd.f32 %v1172, %v686
  %v1174 = vadd.f32 %v1173, %v691
  %v1175 = vadd.f32 %v1174, %v694
  %v1176 = vadd.f32 %v1175, %v699
  %v1177 = vadd.f32 %v1176, %v702
  %v1178 = vadd.f32 %v1177, %v707
  %v1179 = vadd.f32 %v1178, %v710
  %v1180 = vadd.f32 %v1179, %v715
  %v1181 = vadd.f32 %v1180, %v718
  %v1182 = vadd.f32 %v1181, %v723
  %v1183 = vadd.f32 %v1182, %v726
  %v1184 = vadd.f32 %v1183, %v731
  %v1185 = vadd.f32 %v1184, %v734
  %v1186 = vadd.f32 %v1185, %v739
  %v1187 = vadd.f32 %v1186, %v742
  %v1188 = vadd.f32 %v1187, %v747
  %v1189 = vadd.f32 %v1188, %v750
  %v1190 = vadd.f32 %v1189, %v755
  %v1191 = vadd.f32 %v1190, %v758
  %v1192 = vadd.f32 %v1191, %v763
  %v1193 = vadd.f32 %v1192, %v766
  %v1194 = vadd.f32 %v1193, %v771
  %v1195 = vadd.f32 %v1194, %v774
  %v1196 = vadd.f32 %v1195, %v779
  %v1197 = vadd.f32 %v1196, %v782
  %v1198 = vadd.f32 %v1197, %v787
  %v1199 = vadd.f32 %v1198, %v790
  %v1200 = vadd.f32 %v1199, %v795
  %v1201 = vadd.f32 %v1200, %v798
  %v1202 = vadd.f32 %v1201, %v803
  %v1203 = vadd.f32 %v1202, %v806
  %v1204 = vadd.f32 %v1203, %v811
  %v1205 = vadd.f32 %v1204, %v814
  %v1206 = vadd.f32 %v1205, %v819
  %v1207 = vadd.f32 %v1206, %v822
  %v1208 = vrot.slane %v1207, 4
  %v1209 = vadd.f32 %v1207, %v1208
  %v1210 = vrot.slane %v1209, 2
  %v1211 = vadd.f32 %v1209, %v1210
  %v1212 = vrot.slane %v1211, 1
  %v1213 = vadd.f32 %v1211, %v1212
  %v1214 = vmul.f32 %v571, %v571
  %v1215 = vmul.f32 %v574, %v574
  %v1216 = vmul.f32 %v579, %v579
  %v1217 = vmul.f32 %v582, %v582
  %v1218 = vmul.f32 %v587, %v587
  %v1219 = vmul.f32 %v590, %v590
  %v1220 = vmul.f32 %v595, %v595
  %v1221 = vmul.f32 %v598, %v598
  %v1222 = vmul.f32 %v603, %v603
  %v1223 = vmul.f32 %v606, %v606
  %v1224 = vmul.f32 %v611, %v611
  %v1225 = vmul.f32 %v614, %v614
  %v1226 = vmul.f32 %v619, %v619
  %v1227 = vmul.f32 %v622, %v622
  %v1228 = vmul.f32 %v627, %v627
  %v1229 = vmul.f32 %v630, %v630
  %v1230 = vmul.f32 %v635, %v635
  %v1231 = vmul.f32 %v638, %v638
  %v1232 = vmul.f32 %v643, %v643
  %v1233 = vmul.f32 %v646, %v646
  %v1234 = vmul.f32 %v651, %v651
  %v1235 = vmul.f32 %v654, %v654
  %v1236 = vmul.f32 %v659, %v659
  %v1237 = vmul.f32 %v662, %v662
  %v1238 = vmul.f32 %v667, %v667
  %v1239 = vmul.f32 %v670, %v670
  %v1240 = vmul.f32 %v675, %v675
  %v1241 = vmul.f32 %v678, %v678
  %v1242 = vmul.f32 %v683, %v683
  %v1243 = vmul.f32 %v686, %v686
  %v1244 = vmul.f32 %v691, %v691
  %v1245 = vmul.f32 %v694, %v694
  %v1246 = vmul.f32 %v699, %v699
  %v1247 = vmul.f32 %v702, %v702
  %v1248 = vmul.f32 %v707, %v707
  %v1249 = vmul.f32 %v710, %v710
  %v1250 = vmul.f32 %v715, %v715
  %v1251 = vmul.f32 %v718, %v718
  %v1252 = vmul.f32 %v723, %v723
  %v1253 = vmul.f32 %v726, %v726
  %v1254 = vmul.f32 %v731, %v731
  %v1255 = vmul.f32 %v734, %v734
  %v1256 = vmul.f32 %v739, %v739
  %v1257 = vmul.f32 %v742, %v742
  %v1258 = vmul.f32 %v747, %v747
  %v1259 = vmul.f32 %v750, %v750
  %v1260 = vmul.f32 %v755, %v755
  %v1261 = vmul.f32 %v758, %v758
  %v1262 = vmul.f32 %v763, %v763
  %v1263 = vmul.f32 %v766, %v766
  %v1264 = vmul.f32 %v771, %v771
  %v1265 = vmul.f32 %v774, %v774
  %v1266 = vmul.f32 %v779, %v779
  %v1267 = vmul.f32 %v782, %v782
  %v1268 = vmul.f32 %v787, %v787
  %v1269 = vmul.f32 %v790, %v790
  %v1270 = vmul.f32 %v795, %v795
  %v1271 = vmul.f32 %v798, %v798
  %v1272 = vmul.f32 %v803, %v803
  %v1273 = vmul.f32 %v806, %v806
  %v1274 = vmul.f32 %v811, %v811
  %v1275 = vmul.f32 %v814, %v814
  %v1276 = vmul.f32 %v819, %v819
  %v1277 = vmul.f32 %v822, %v822
  %v1278 = vadd.f32 %v1214, %v1215
  %v1279 = vadd.f32 %v1278, %v1216
  %v1280 = vadd.f32 %v1279, %v1217
  %v1281 = vadd.f32 %v1280, %v1218
  %v1282 = vadd.f32 %v1281, %v1219
  %v1283 = vadd.f32 %v1282, %v1220
  %v1284 = vadd.f32 %v1283, %v1221
  %v1285 = vadd.f32 %v1284, %v1222
  %v1286 = vadd.f32 %v1285, %v1223
  %v1287 = vadd.f32 %v1286, %v1224
  %v1288 = vadd.f32 %v1287, %v1225
  %v1289 = vadd.f32 %v1288, %v1226
  %v1290 = vadd.f32 %v1289, %v1227
  %v1291 = vadd.f32 %v1290, %v1228
  %v1292 = vadd.f32 %v1291, %v1229
  %v1293 = vadd.f32 %v1292, %v1230
  %v1294 = vadd.f32 %v1293, %v1231
  %v1295 = vadd.f32 %v1294, %v1232
  %v1296 = vadd.f32 %v1295, %v1233
  %v1297 = vadd.f32 %v1296, %v1234
  %v1298 = vadd.f32 %v1297, %v1235
  %v1299 = vadd.f32 %v1298, %v1236
  %v1300 = vadd.f32 %v1299, %v1237
  %v1301 = vadd.f32 %v1300, %v1238
  %v1302 = vadd.f32 %v1301, %v1239
  %v1303 = vadd.f32 %v1302, %v1240
  %v1304 = vadd.f32 %v1303, %v1241
  %v1305 = vadd.f32 %v1304, %v1242
  %v1306 = vadd.f32 %v1305, %v1243
  %v1307 = vadd.f32 %v1306, %v1244
  %v1308 = vadd.f32 %v1307, %v1245
  %v1309 = vadd.f32 %v1308, %v1246
  %v1310 = vadd.f32 %v1309, %v1247
  %v1311 = vadd.f32 %v1310, %v1248
  %v1312 = vadd.f32 %v1311, %v1249
  %v1313 = vadd.f32 %v1312, %v1250
  %v1314 = vadd.f32 %v1313, %v1251
  %v1315 = vadd.f32 %v1314, %v1252
  %v1316 = vadd.f32 %v1315, %v1253
  %v1317 = vadd.f32 %v1316, %v1254
  %v1318 = vadd.f32 %v1317, %v1255
  %v1319 = vadd.f32 %v1318, %v1256
  %v1320 = vadd.f32 %v1319, %v1257
  %v1321 = vadd.f32 %v1320, %v1258
  %v1322 = vadd.f32 %v1321, %v1259
  %v1323 = vadd.f32 %v1322, %v1260
  %v1324 = vadd.f32 %v1323, %v1261
  %v1325 = vadd.f32 %v1324, %v1262
  %v1326 = vadd.f32 %v1325, %v1263
  %v1327 = vadd.f32 %v1326, %v1264
  %v1328 = vadd.f32 %v1327, %v1265
  %v1329 = vadd.f32 %v1328, %v1266
  %v1330 = vadd.f32 %v1329, %v1267
  %v1331 = vadd.f32 %v1330, %v1268
  %v1332 = vadd.f32 %v1331, %v1269
  %v1333 = vadd.f32 %v1332, %v1270
  %v1334 = vadd.f32 %v1333, %v1271
  %v1335 = vadd.f32 %v1334, %v1272
  %v1336 = vadd.f32 %v1335, %v1273
  %v1337 = vadd.f32 %v1336, %v1274
  %v1338 = vadd.f32 %v1337, %v1275
  %v1339 = vadd.f32 %v1338, %v1276
  %v1340 = vadd.f32 %v1339, %v1277
  %v1341 = vrot.slane %v1340, 4
  %v1342 = vadd.f32 %v1340, %v1341
  %v1343 = vrot.slane %v1342, 2
  %v1344 = vadd.f32 %v1342, %v1343
  %v1345 = vrot.slane %v1344, 1
  %v1346 = vadd.f32 %v1344, %v1345
  %v1347 = vld [vmem:[%s6] sm:$0x3]
  %vm1348 = vcmask 1040384
  %v1349 = vsel %vm1348, %v1213, %v1346
  %v1350 = vadd.f32 %v1347, %v1349
  %1351 = vst [vmem:[%s6] sm:$0x3] %v1350
  // Predicated region
  $region26: #{bottleneck_forward.6} parent=0 // pred_check
    _
  $region27: #{bottleneck_forward.6} parent=0 // pred_check_branch
    %1353 = sbr.rel (0) target = $region29
  $region28: #{bottleneck_forward.6} parent=0 // pred_region
    _
  $region29: #{bottleneck_forward.6} parent=0 // pred_fallthru
    _
  // Predicated region
  $region30: #{bottleneck_forward.6} parent=0 // pred_check
    _
  $region31: #{bottleneck_forward.6} parent=0 // pred_check_branch
    %1355 = sbr.rel (0) target = $region33
  $region32: #{bottleneck_forward.6} parent=0 // pred_region
    _
  $region33: #{bottleneck_forward.6} parent=0 // pred_fallthru
    _
  // Predicated region
  $region34: #{bottleneck_forward.6} parent=0 // pred_check
    _
  $region35: #{bottleneck_forward.6} parent=0 // pred_check_branch
    %1357 = sbr.rel (0) target = $region37
  $region36: #{bottleneck_forward.6} parent=0 // pred_region
    _
  $region37: #{bottleneck_forward.6} parent=0 // pred_fallthru
    _
  // Predicated region
  $region38: #{bottleneck_forward.6} parent=0 // pred_check
    _
  $region39: #{bottleneck_forward.6} parent=0 // pred_check_branch
    %1359 = sbr.rel (0) target = $region41
  $region40: #{bottleneck_forward.6} parent=0 // pred_region
    _
  $region41: #{bottleneck_forward.6} parent=0 // pred_fallthru
    _

// kernel: bottleneck_forward.4
$region0: #{bottleneck_forward.4}
  #allocation0 [shape = 'u32[]', space=smem, size = 0x4, offset = 0x4, fixed_abs, tag = 'smem constant byte address 0x4 - core index']
  #allocation1 [shape = 'u32[144,128]{1,0:T(1,128)}', space=vmem, size = 0x12000, scoped, tag = 'internal scratch']
  %s0 = inlined_call_operand.vmem [shape: bf16[512,128], index: 0, kind: input, shape index: {}]
  %s1 = inlined_call_operand.vmem [shape: bf16[128,32], index: 1, kind: input, shape index: {}]
  %s2 = inlined_call_operand.vmem [shape: bf16[512,32], index: 2, kind: output, shape index: {0}]
  %s3 = inlined_call_operand.vmem [shape: f32[2,32], index: 3, kind: output, shape index: {1}]
  %4 = xla_tuple %s2, %s3
  %s5 = sld [smem:[#allocation0]]
  $region30: #{bottleneck_forward.4} parent=0
    _
  %s7 = ssub.s32 1, %s5
  %s8 = scalar_select 0, %s7, %s5
  // Predicated region
  $region2: #{bottleneck_forward.4} parent=0 // pred_check
    _
  $region3: #{bottleneck_forward.4} parent=0 // pred_check_branch
    %10 = sbr.rel (0) target = $region5
  $region4: #{bottleneck_forward.4} parent=0 // pred_region
    _
  $region5: #{bottleneck_forward.4} parent=0 // pred_fallthru
    _
  // Predicated region
  $region6: #{bottleneck_forward.4} parent=0 // pred_check
    _
  $region7: #{bottleneck_forward.4} parent=0 // pred_check_branch
    %12 = sbr.rel (0) target = $region9
  $region8: #{bottleneck_forward.4} parent=0 // pred_region
    _
  $region9: #{bottleneck_forward.4} parent=0 // pred_fallthru
    _
  %p14 = scmp.eq.s32.totalorder 0, 0
  // Predicated region
  $region10: #{bottleneck_forward.4} parent=0 // pred_check
    %p15 = pneg %p14
  $region11: #{bottleneck_forward.4} parent=0 // pred_check_branch
    %17 = sbr.rel (%p15) target = $region13
  $region12: #{bottleneck_forward.4} parent=0 // pred_region
    %vm18 = vcmask 254976
    %19 = vst.msk [vmem:[%s3] sm:$0x3] %vm18, 0.0
  $region13: #{bottleneck_forward.4} parent=0 // pred_fallthru
    _
  %v20 = vld [vmem:[%s0] sm:$0xf]
  %v21 = vld [vmem:[%s0 + $0x4] sm:$0xf]
  %v22 = vld [vmem:[%s0 + $0x8] sm:$0xf]
  %v23 = vld [vmem:[%s0 + $0xc] sm:$0xf]
  %v24 = vld [vmem:[%s0 + $0x10] sm:$0xf]
  %v25 = vld [vmem:[%s0 + $0x14] sm:$0xf]
  %v26 = vld [vmem:[%s0 + $0x18] sm:$0xf]
  %v27 = vld [vmem:[%s0 + $0x1c] sm:$0xf]
  %v28 = vld [vmem:[%s0 + $0x20] sm:$0xf]
  %v29 = vld [vmem:[%s0 + $0x24] sm:$0xf]
  %v30 = vld [vmem:[%s0 + $0x28] sm:$0xf]
  %v31 = vld [vmem:[%s0 + $0x2c] sm:$0xf]
  %v32 = vld [vmem:[%s0 + $0x30] sm:$0xf]
  %v33 = vld [vmem:[%s0 + $0x34] sm:$0xf]
  %v34 = vld [vmem:[%s0 + $0x38] sm:$0xf]
  %v35 = vld [vmem:[%s0 + $0x3c] sm:$0xf]
  %v36 = vld [vmem:[%s0 + $0x40] sm:$0xf]
  %v37 = vld [vmem:[%s0 + $0x44] sm:$0xf]
  %v38 = vld [vmem:[%s0 + $0x48] sm:$0xf]
  %v39 = vld [vmem:[%s0 + $0x4c] sm:$0xf]
  %v40 = vld [vmem:[%s0 + $0x50] sm:$0xf]
  %v41 = vld [vmem:[%s0 + $0x54] sm:$0xf]
  %v42 = vld [vmem:[%s0 + $0x58] sm:$0xf]
  %v43 = vld [vmem:[%s0 + $0x5c] sm:$0xf]
  %v44 = vld [vmem:[%s0 + $0x60] sm:$0xf]
  %v45 = vld [vmem:[%s0 + $0x64] sm:$0xf]
  %v46 = vld [vmem:[%s0 + $0x68] sm:$0xf]
  %v47 = vld [vmem:[%s0 + $0x6c] sm:$0xf]
  %v48 = vld [vmem:[%s0 + $0x70] sm:$0xf]
  %v49 = vld [vmem:[%s0 + $0x74] sm:$0xf]
  %v50 = vld [vmem:[%s0 + $0x78] sm:$0xf]
  %v51 = vld [vmem:[%s0 + $0x7c] sm:$0xf]
  %v52 = vld [vmem:[%s0 + $0x80] sm:$0xf]
  %v53 = vld [vmem:[%s0 + $0x84] sm:$0xf]
  %v54 = vld [vmem:[%s0 + $0x88] sm:$0xf]
  %v55 = vld [vmem:[%s0 + $0x8c] sm:$0xf]
  %v56 = vld [vmem:[%s0 + $0x90] sm:$0xf]
  %v57 = vld [vmem:[%s0 + $0x94] sm:$0xf]
  %v58 = vld [vmem:[%s0 + $0x98] sm:$0xf]
  %v59 = vld [vmem:[%s0 + $0x9c] sm:$0xf]
  %v60 = vld [vmem:[%s0 + $0xa0] sm:$0xf]
  %v61 = vld [vmem:[%s0 + $0xa4] sm:$0xf]
  %v62 = vld [vmem:[%s0 + $0xa8] sm:$0xf]
  %v63 = vld [vmem:[%s0 + $0xac] sm:$0xf]
  %v64 = vld [vmem:[%s0 + $0xb0] sm:$0xf]
  %v65 = vld [vmem:[%s0 + $0xb4] sm:$0xf]
  %v66 = vld [vmem:[%s0 + $0xb8] sm:$0xf]
  %v67 = vld [vmem:[%s0 + $0xbc] sm:$0xf]
  %v68 = vld [vmem:[%s0 + $0xc0] sm:$0xf]
  %v69 = vld [vmem:[%s0 + $0xc4] sm:$0xf]
  %v70 = vld [vmem:[%s0 + $0xc8] sm:$0xf]
  %v71 = vld [vmem:[%s0 + $0xcc] sm:$0xf]
  %v72 = vld [vmem:[%s0 + $0xd0] sm:$0xf]
  %v73 = vld [vmem:[%s0 + $0xd4] sm:$0xf]
  %v74 = vld [vmem:[%s0 + $0xd8] sm:$0xf]
  %v75 = vld [vmem:[%s0 + $0xdc] sm:$0xf]
  %v76 = vld [vmem:[%s0 + $0xe0] sm:$0xf]
  %v77 = vld [vmem:[%s0 + $0xe4] sm:$0xf]
  %v78 = vld [vmem:[%s0 + $0xe8] sm:$0xf]
  %v79 = vld [vmem:[%s0 + $0xec] sm:$0xf]
  %v80 = vld [vmem:[%s0 + $0xf0] sm:$0xf]
  %v81 = vld [vmem:[%s0 + $0xf4] sm:$0xf]
  %v82 = vld [vmem:[%s0 + $0xf8] sm:$0xf]
  %v83 = vld [vmem:[%s0 + $0xfc] sm:$0xf]
  %v84 = vld [vmem:[%s1] sm:$0xf]
  %v85 = vld [vmem:[%s1 + $0x4] sm:$0xf]
  %v86 = vld [vmem:[%s1 + $0x8] sm:$0xf]
  %v87 = vld [vmem:[%s1 + $0xc] sm:$0xf]
  %v88 = vld [vmem:[%s1 + $0x10] sm:$0xf]
  %v89 = vld [vmem:[%s1 + $0x14] sm:$0xf]
  %v90 = vld [vmem:[%s1 + $0x18] sm:$0xf]
  %v91 = vld [vmem:[%s1 + $0x1c] sm:$0xf]
  %v92 = vld [vmem:[%s1 + $0x20] sm:$0xf]
  %v93 = vld [vmem:[%s1 + $0x24] sm:$0xf]
  %v94 = vld [vmem:[%s1 + $0x28] sm:$0xf]
  %v95 = vld [vmem:[%s1 + $0x2c] sm:$0xf]
  %v96 = vld [vmem:[%s1 + $0x30] sm:$0xf]
  %v97 = vld [vmem:[%s1 + $0x34] sm:$0xf]
  %v98 = vld [vmem:[%s1 + $0x38] sm:$0xf]
  %v99 = vld [vmem:[%s1 + $0x3c] sm:$0xf]
  %v164 = vunpack.c.l.b16 %v20
  %v165 = vunpack.c.l.b16 %v21
  %v166 = vunpack.c.l.b16 %v22
  %v167 = vunpack.c.l.b16 %v23
  %v168 = vunpack.c.l.b16 %v24
  %v169 = vunpack.c.l.b16 %v25
  %v170 = vunpack.c.l.b16 %v26
  %v171 = vunpack.c.l.b16 %v27
  %v172 = vunpack.c.l.b16 %v28
  %v173 = vunpack.c.l.b16 %v29
  %v174 = vunpack.c.l.b16 %v30
  %v175 = vunpack.c.l.b16 %v31
  %v176 = vunpack.c.l.b16 %v32
  %v177 = vunpack.c.l.b16 %v33
  %v178 = vunpack.c.l.b16 %v34
  %v179 = vunpack.c.l.b16 %v35
  %v180 = vunpack.c.l.b16 %v36
  %v181 = vunpack.c.l.b16 %v37
  %v182 = vunpack.c.l.b16 %v38
  %v183 = vunpack.c.l.b16 %v39
  %v184 = vunpack.c.l.b16 %v40
  %v185 = vunpack.c.l.b16 %v41
  %v186 = vunpack.c.l.b16 %v42
  %v187 = vunpack.c.l.b16 %v43
  %v188 = vunpack.c.l.b16 %v44
  %v189 = vunpack.c.l.b16 %v45
  %v190 = vunpack.c.l.b16 %v46
  %v191 = vunpack.c.l.b16 %v47
  %v192 = vunpack.c.l.b16 %v48
  %v193 = vunpack.c.l.b16 %v49
  %v194 = vunpack.c.l.b16 %v50
  %v195 = vunpack.c.l.b16 %v51
  %v196 = vunpack.c.l.b16 %v52
  %v197 = vunpack.c.l.b16 %v53
  %v198 = vunpack.c.l.b16 %v54
  %v199 = vunpack.c.l.b16 %v55
  %v200 = vunpack.c.l.b16 %v56
  %v201 = vunpack.c.l.b16 %v57
  %v202 = vunpack.c.l.b16 %v58
  %v203 = vunpack.c.l.b16 %v59
  %v204 = vunpack.c.l.b16 %v60
  %v205 = vunpack.c.l.b16 %v61
  %v206 = vunpack.c.l.b16 %v62
  %v207 = vunpack.c.l.b16 %v63
  %v208 = vunpack.c.l.b16 %v64
  %v209 = vunpack.c.l.b16 %v65
  %v210 = vunpack.c.l.b16 %v66
  %v211 = vunpack.c.l.b16 %v67
  %v212 = vunpack.c.l.b16 %v68
  %v213 = vunpack.c.l.b16 %v69
  %v214 = vunpack.c.l.b16 %v70
  %v215 = vunpack.c.l.b16 %v71
  %v216 = vunpack.c.l.b16 %v72
  %v217 = vunpack.c.l.b16 %v73
  %v218 = vunpack.c.l.b16 %v74
  %v219 = vunpack.c.l.b16 %v75
  %v220 = vunpack.c.l.b16 %v76
  %v221 = vunpack.c.l.b16 %v77
  %v222 = vunpack.c.l.b16 %v78
  %v223 = vunpack.c.l.b16 %v79
  %v224 = vunpack.c.l.b16 %v80
  %v225 = vunpack.c.l.b16 %v81
  %v226 = vunpack.c.l.b16 %v82
  %v227 = vunpack.c.l.b16 %v83
  %v228 = vpack.c.b16 %v165, %v164
  %v229 = vpack.c.b16 %v167, %v166
  %v230 = vpack.c.b16 %v169, %v168
  %v231 = vpack.c.b16 %v171, %v170
  %v232 = vpack.c.b16 %v173, %v172
  %v233 = vpack.c.b16 %v175, %v174
  %v234 = vpack.c.b16 %v177, %v176
  %v235 = vpack.c.b16 %v179, %v178
  %v236 = vpack.c.b16 %v181, %v180
  %v237 = vpack.c.b16 %v183, %v182
  %v238 = vpack.c.b16 %v185, %v184
  %v239 = vpack.c.b16 %v187, %v186
  %v240 = vpack.c.b16 %v189, %v188
  %v241 = vpack.c.b16 %v191, %v190
  %v242 = vpack.c.b16 %v193, %v192
  %v243 = vpack.c.b16 %v195, %v194
  %v244 = vpack.c.b16 %v197, %v196
  %v245 = vpack.c.b16 %v199, %v198
  %v246 = vpack.c.b16 %v201, %v200
  %v247 = vpack.c.b16 %v203, %v202
  %v248 = vpack.c.b16 %v205, %v204
  %v249 = vpack.c.b16 %v207, %v206
  %v250 = vpack.c.b16 %v209, %v208
  %v251 = vpack.c.b16 %v211, %v210
  %v252 = vpack.c.b16 %v213, %v212
  %v253 = vpack.c.b16 %v215, %v214
  %v254 = vpack.c.b16 %v217, %v216
  %v255 = vpack.c.b16 %v219, %v218
  %v256 = vpack.c.b16 %v221, %v220
  %v257 = vpack.c.b16 %v223, %v222
  %v258 = vpack.c.b16 %v225, %v224
  %v259 = vpack.c.b16 %v227, %v226
  %v308 = vunpack.c.l.b16 %v84
  %v309 = vunpack.c.l.b16 %v85
  %v310 = vunpack.c.l.b16 %v86
  %v311 = vunpack.c.l.b16 %v87
  %v312 = vunpack.c.l.b16 %v88
  %v313 = vunpack.c.l.b16 %v89
  %v314 = vunpack.c.l.b16 %v90
  %v315 = vunpack.c.l.b16 %v91
  %v316 = vunpack.c.l.b16 %v92
  %v317 = vunpack.c.l.b16 %v93
  %v318 = vunpack.c.l.b16 %v94
  %v319 = vunpack.c.l.b16 %v95
  %v320 = vunpack.c.l.b16 %v96
  %v321 = vunpack.c.l.b16 %v97
  %v322 = vunpack.c.l.b16 %v98
  %v323 = vunpack.c.l.b16 %v99
  %v324 = vpack.c.b16 %v309, %v308
  %v325 = vpack.c.b16 %v311, %v310
  %v326 = vpack.c.b16 %v313, %v312
  %v327 = vpack.c.b16 %v315, %v314
  %v328 = vpack.c.b16 %v317, %v316
  %v329 = vpack.c.b16 %v319, %v318
  %v330 = vpack.c.b16 %v321, %v320
  %v331 = vpack.c.b16 %v323, %v322
  %340 = vmatprep.subr.bf16.mxu0 0
  %341 = vmatpush1.bf16.msra.mxu0 %v324
  %342 = vmatprep.subr.bf16.mxu0 0
  %343 = vmatpush1.bf16.msra.mxu0 %v325
  %344 = vmatprep.subr.bf16.mxu0 0
  %345 = vmatpush1.bf16.msra.mxu0 %v326
  %346 = vmatprep.subr.bf16.mxu0 0
  %347 = vmatpush1.bf16.msra.mxu0 %v327
  %348 = vmatprep.subr.bf16.mxu0 0
  %349 = vmatpush1.bf16.msra.mxu0 %v328
  %350 = vmatprep.subr.bf16.mxu0 0
  %351 = vmatpush1.bf16.msra.mxu0 %v329
  %352 = vmatprep.subr.bf16.mxu0 0
  %353 = vmatpush1.bf16.msra.mxu0 %v330
  %354 = vmatprep.subr.bf16.mxu0 0
  %355 = vmatpush1.bf16.msra.mxu0 %v331
  %356 = vmatprep.subr.bf16.mxu0 0
  %357 = vmatpush1.bf16.msra.mxu0 0
  %358 = vmatprep.subr.bf16.mxu0 0
  %359 = vmatpush1.bf16.msra.mxu0 0
  %360 = vmatprep.subr.bf16.mxu0 0
  %361 = vmatpush1.bf16.msra.mxu0 0
  %362 = vmatprep.subr.bf16.mxu0 0
  %363 = vmatpush1.bf16.msra.mxu0 0
  %364 = vmatprep.subr.bf16.mxu0 0
  %365 = vmatpush1.bf16.msra.mxu0 0
  %366 = vmatprep.subr.bf16.mxu0 0
  %367 = vmatpush1.bf16.msra.mxu0 0
  %368 = vmatprep.subr.bf16.mxu0 0
  %369 = vmatpush1.bf16.msra.mxu0 0
  %370 = vmatprep.subr.bf16.mxu0 0
  %371 = vmatpush1.bf16.msra.mxu0 0
  %372 = vmatprep.mubr.bf16.mxu0 0
  %373 = vmatmul.mubr.bf16.gmra.mrb[0].mxu0 %v228
  %v374 = vpop.f32.mrb[0].mxu0
  %v375 = vadd.f32 0.0, %v374
  %v376 = vpop.f32.mrb[0].mxu0
  %v377 = vpop.f32.mrb[0].mxu0
  %v378 = vadd.f32 0.0, %v377
  %v379 = vpop.f32.mrb[0].mxu0
  %380 = vmatprep.mubr.bf16.mxu0 0
  %381 = vmatmul.mubr.bf16.gmra.mrb[0].mxu0 %v229
  %v382 = vpop.f32.mrb[0].mxu0
  %v383 = vadd.f32 0.0, %v382
  %v384 = vpop.f32.mrb[0].mxu0
  %v385 = vpop.f32.mrb[0].mxu0
  %v386 = vadd.f32 0.0, %v385
  %v387 = vpop.f32.mrb[0].mxu0
  %388 = vmatprep.mubr.bf16.mxu0 0
  %389 = vmatmul.mubr.bf16.gmra.mrb[0].mxu0 %v230
  %v390 = vpop.f32.mrb[0].mxu0
  %v391 = vadd.f32 0.0, %v390
  %v392 = vpop.f32.mrb[0].mxu0
  %v393 = vpop.f32.mrb[0].mxu0
  %v394 = vadd.f32 0.0, %v393
  %v395 = vpop.f32.mrb[0].mxu0
  %396 = vmatprep.mubr.bf16.mxu0 0
  %397 = vmatmul.mubr.bf16.gmra.mrb[0].mxu0 %v231
  %v398 = vpop.f32.mrb[0].mxu0
  %v399 = vadd.f32 0.0, %v398
  %v400 = vpop.f32.mrb[0].mxu0
  %v401 = vpop.f32.mrb[0].mxu0
  %v402 = vadd.f32 0.0, %v401
  %v403 = vpop.f32.mrb[0].mxu0
  %404 = vmatprep.mubr.bf16.mxu0 0
  %405 = vmatmul.mubr.bf16.gmra.mrb[0].mxu0 %v232
  %v406 = vpop.f32.mrb[0].mxu0
  %v407 = vadd.f32 0.0, %v406
  %v408 = vpop.f32.mrb[0].mxu0
  %v409 = vpop.f32.mrb[0].mxu0
  %v410 = vadd.f32 0.0, %v409
  %v411 = vpop.f32.mrb[0].mxu0
  %412 = vmatprep.mubr.bf16.mxu0 0
  %413 = vmatmul.mubr.bf16.gmra.mrb[0].mxu0 %v233
  %v414 = vpop.f32.mrb[0].mxu0
  %v415 = vadd.f32 0.0, %v414
  %v416 = vpop.f32.mrb[0].mxu0
  %v417 = vpop.f32.mrb[0].mxu0
  %v418 = vadd.f32 0.0, %v417
  %v419 = vpop.f32.mrb[0].mxu0
  %420 = vmatprep.mubr.bf16.mxu0 0
  %421 = vmatmul.mubr.bf16.gmra.mrb[0].mxu0 %v234
  %v422 = vpop.f32.mrb[0].mxu0
  %v423 = vadd.f32 0.0, %v422
  %v424 = vpop.f32.mrb[0].mxu0
  %v425 = vpop.f32.mrb[0].mxu0
  %v426 = vadd.f32 0.0, %v425
  %v427 = vpop.f32.mrb[0].mxu0
  %428 = vmatprep.mubr.bf16.mxu0 0
  %429 = vmatmul.mubr.bf16.gmra.mrb[0].mxu0 %v235
  %v430 = vpop.f32.mrb[0].mxu0
  %v431 = vadd.f32 0.0, %v430
  %v432 = vpop.f32.mrb[0].mxu0
  %v433 = vpop.f32.mrb[0].mxu0
  %v434 = vadd.f32 0.0, %v433
  %v435 = vpop.f32.mrb[0].mxu0
  %436 = vmatprep.mubr.bf16.mxu0 0
  %437 = vmatmul.mubr.bf16.gmra.mrb[0].mxu0 %v236
  %v438 = vpop.f32.mrb[0].mxu0
  %v439 = vadd.f32 0.0, %v438
  %v440 = vpop.f32.mrb[0].mxu0
  %v441 = vpop.f32.mrb[0].mxu0
  %v442 = vadd.f32 0.0, %v441
  %v443 = vpop.f32.mrb[0].mxu0
  %444 = vmatprep.mubr.bf16.mxu0 0
  %445 = vmatmul.mubr.bf16.gmra.mrb[0].mxu0 %v237
  %v446 = vpop.f32.mrb[0].mxu0
  %v447 = vadd.f32 0.0, %v446
  %v448 = vpop.f32.mrb[0].mxu0
  %v449 = vpop.f32.mrb[0].mxu0
  %v450 = vadd.f32 0.0, %v449
  %v451 = vpop.f32.mrb[0].mxu0
  %452 = vmatprep.mubr.bf16.mxu0 0
  %453 = vmatmul.mubr.bf16.gmra.mrb[0].mxu0 %v238
  %v454 = vpop.f32.mrb[0].mxu0
  %v455 = vadd.f32 0.0, %v454
  %v456 = vpop.f32.mrb[0].mxu0
  %v457 = vpop.f32.mrb[0].mxu0
  %v458 = vadd.f32 0.0, %v457
  %v459 = vpop.f32.mrb[0].mxu0
  %460 = vmatprep.mubr.bf16.mxu0 0
  %461 = vmatmul.mubr.bf16.gmra.mrb[0].mxu0 %v239
  %v462 = vpop.f32.mrb[0].mxu0
  %v463 = vadd.f32 0.0, %v462
  %v464 = vpop.f32.mrb[0].mxu0
  %v465 = vpop.f32.mrb[0].mxu0
  %v466 = vadd.f32 0.0, %v465
  %v467 = vpop.f32.mrb[0].mxu0
  %468 = vmatprep.mubr.bf16.mxu0 0
  %469 = vmatmul.mubr.bf16.gmra.mrb[0].mxu0 %v240
  %v470 = vpop.f32.mrb[0].mxu0
  %v471 = vadd.f32 0.0, %v470
  %v472 = vpop.f32.mrb[0].mxu0
  %v473 = vpop.f32.mrb[0].mxu0
  %v474 = vadd.f32 0.0, %v473
  %v475 = vpop.f32.mrb[0].mxu0
  %476 = vmatprep.mubr.bf16.mxu0 0
  %477 = vmatmul.mubr.bf16.gmra.mrb[0].mxu0 %v241
  %v478 = vpop.f32.mrb[0].mxu0
  %v479 = vadd.f32 0.0, %v478
  %v480 = vpop.f32.mrb[0].mxu0
  %v481 = vpop.f32.mrb[0].mxu0
  %v482 = vadd.f32 0.0, %v481
  %v483 = vpop.f32.mrb[0].mxu0
  %484 = vmatprep.mubr.bf16.mxu0 0
  %485 = vmatmul.mubr.bf16.gmra.mrb[0].mxu0 %v242
  %v486 = vpop.f32.mrb[0].mxu0
  %v487 = vadd.f32 0.0, %v486
  %v488 = vpop.f32.mrb[0].mxu0
  %v489 = vpop.f32.mrb[0].mxu0
  %v490 = vadd.f32 0.0, %v489
  %v491 = vpop.f32.mrb[0].mxu0
  %492 = vmatprep.mubr.bf16.mxu0 0
  %493 = vmatmul.mubr.bf16.gmra.mrb[0].mxu0 %v243
  %v494 = vpop.f32.mrb[0].mxu0
  %v495 = vadd.f32 0.0, %v494
  %v496 = vpop.f32.mrb[0].mxu0
  %v497 = vpop.f32.mrb[0].mxu0
  %v498 = vadd.f32 0.0, %v497
  %v499 = vpop.f32.mrb[0].mxu0
  %500 = vmatprep.mubr.bf16.mxu0 0
  %501 = vmatmul.mubr.bf16.gmra.mrb[0].mxu0 %v244
  %v502 = vpop.f32.mrb[0].mxu0
  %v503 = vadd.f32 0.0, %v502
  %v504 = vpop.f32.mrb[0].mxu0
  %v505 = vpop.f32.mrb[0].mxu0
  %v506 = vadd.f32 0.0, %v505
  %v507 = vpop.f32.mrb[0].mxu0
  %508 = vmatprep.mubr.bf16.mxu0 0
  %509 = vmatmul.mubr.bf16.gmra.mrb[0].mxu0 %v245
  %v510 = vpop.f32.mrb[0].mxu0
  %v511 = vadd.f32 0.0, %v510
  %v512 = vpop.f32.mrb[0].mxu0
  %v513 = vpop.f32.mrb[0].mxu0
  %v514 = vadd.f32 0.0, %v513
  %v515 = vpop.f32.mrb[0].mxu0
  %516 = vmatprep.mubr.bf16.mxu0 0
  %517 = vmatmul.mubr.bf16.gmra.mrb[0].mxu0 %v246
  %v518 = vpop.f32.mrb[0].mxu0
  %v519 = vadd.f32 0.0, %v518
  %v520 = vpop.f32.mrb[0].mxu0
  %v521 = vpop.f32.mrb[0].mxu0
  %v522 = vadd.f32 0.0, %v521
  %v523 = vpop.f32.mrb[0].mxu0
  %524 = vmatprep.mubr.bf16.mxu0 0
  %525 = vmatmul.mubr.bf16.gmra.mrb[0].mxu0 %v247
  %v526 = vpop.f32.mrb[0].mxu0
  %v527 = vadd.f32 0.0, %v526
  %v528 = vpop.f32.mrb[0].mxu0
  %v529 = vpop.f32.mrb[0].mxu0
  %v530 = vadd.f32 0.0, %v529
  %v531 = vpop.f32.mrb[0].mxu0
  %532 = vmatprep.mubr.bf16.mxu0 0
  %533 = vmatmul.mubr.bf16.gmra.mrb[0].mxu0 %v248
  %v534 = vpop.f32.mrb[0].mxu0
  %v535 = vadd.f32 0.0, %v534
  %v536 = vpop.f32.mrb[0].mxu0
  %v537 = vpop.f32.mrb[0].mxu0
  %v538 = vadd.f32 0.0, %v537
  %v539 = vpop.f32.mrb[0].mxu0
  %540 = vmatprep.mubr.bf16.mxu0 0
  %541 = vmatmul.mubr.bf16.gmra.mrb[0].mxu0 %v249
  %v542 = vpop.f32.mrb[0].mxu0
  %v543 = vadd.f32 0.0, %v542
  %v544 = vpop.f32.mrb[0].mxu0
  %v545 = vpop.f32.mrb[0].mxu0
  %v546 = vadd.f32 0.0, %v545
  %v547 = vpop.f32.mrb[0].mxu0
  %548 = vmatprep.mubr.bf16.mxu0 0
  %549 = vmatmul.mubr.bf16.gmra.mrb[0].mxu0 %v250
  %v550 = vpop.f32.mrb[0].mxu0
  %v551 = vadd.f32 0.0, %v550
  %v552 = vpop.f32.mrb[0].mxu0
  %v553 = vpop.f32.mrb[0].mxu0
  %v554 = vadd.f32 0.0, %v553
  %v555 = vpop.f32.mrb[0].mxu0
  %556 = vmatprep.mubr.bf16.mxu0 0
  %557 = vmatmul.mubr.bf16.gmra.mrb[0].mxu0 %v251
  %v558 = vpop.f32.mrb[0].mxu0
  %v559 = vadd.f32 0.0, %v558
  %v560 = vpop.f32.mrb[0].mxu0
  %v561 = vpop.f32.mrb[0].mxu0
  %v562 = vadd.f32 0.0, %v561
  %v563 = vpop.f32.mrb[0].mxu0
  %564 = vmatprep.mubr.bf16.mxu0 0
  %565 = vmatmul.mubr.bf16.gmra.mrb[0].mxu0 %v252
  %v566 = vpop.f32.mrb[0].mxu0
  %v567 = vadd.f32 0.0, %v566
  %v568 = vpop.f32.mrb[0].mxu0
  %v569 = vpop.f32.mrb[0].mxu0
  %v570 = vadd.f32 0.0, %v569
  %v571 = vpop.f32.mrb[0].mxu0
  %572 = vmatprep.mubr.bf16.mxu0 0
  %573 = vmatmul.mubr.bf16.gmra.mrb[0].mxu0 %v253
  %v574 = vpop.f32.mrb[0].mxu0
  %v575 = vadd.f32 0.0, %v574
  %v576 = vpop.f32.mrb[0].mxu0
  %v577 = vpop.f32.mrb[0].mxu0
  %v578 = vadd.f32 0.0, %v577
  %v579 = vpop.f32.mrb[0].mxu0
  %580 = vmatprep.mubr.bf16.mxu0 0
  %581 = vmatmul.mubr.bf16.gmra.mrb[0].mxu0 %v254
  %v582 = vpop.f32.mrb[0].mxu0
  %v583 = vadd.f32 0.0, %v582
  %v584 = vpop.f32.mrb[0].mxu0
  %v585 = vpop.f32.mrb[0].mxu0
  %v586 = vadd.f32 0.0, %v585
  %v587 = vpop.f32.mrb[0].mxu0
  %588 = vmatprep.mubr.bf16.mxu0 0
  %589 = vmatmul.mubr.bf16.gmra.mrb[0].mxu0 %v255
  %v590 = vpop.f32.mrb[0].mxu0
  %v591 = vadd.f32 0.0, %v590
  %v592 = vpop.f32.mrb[0].mxu0
  %v593 = vpop.f32.mrb[0].mxu0
  %v594 = vadd.f32 0.0, %v593
  %v595 = vpop.f32.mrb[0].mxu0
  %596 = vmatprep.mubr.bf16.mxu0 0
  %597 = vmatmul.mubr.bf16.gmra.mrb[0].mxu0 %v256
  %v598 = vpop.f32.mrb[0].mxu0
  %v599 = vadd.f32 0.0, %v598
  %v600 = vpop.f32.mrb[0].mxu0
  %v601 = vpop.f32.mrb[0].mxu0
  %v602 = vadd.f32 0.0, %v601
  %v603 = vpop.f32.mrb[0].mxu0
  %604 = vmatprep.mubr.bf16.mxu0 0
  %605 = vmatmul.mubr.bf16.gmra.mrb[0].mxu0 %v257
  %v606 = vpop.f32.mrb[0].mxu0
  %v607 = vadd.f32 0.0, %v606
  %v608 = vpop.f32.mrb[0].mxu0
  %v609 = vpop.f32.mrb[0].mxu0
  %v610 = vadd.f32 0.0, %v609
  %v611 = vpop.f32.mrb[0].mxu0
  %612 = vmatprep.mubr.bf16.mxu0 0
  %613 = vmatmul.mubr.bf16.gmra.mrb[0].mxu0 %v258
  %v614 = vpop.f32.mrb[0].mxu0
  %v615 = vadd.f32 0.0, %v614
  %v616 = vpop.f32.mrb[0].mxu0
  %v617 = vpop.f32.mrb[0].mxu0
  %v618 = vadd.f32 0.0, %v617
  %v619 = vpop.f32.mrb[0].mxu0
  %620 = vmatprep.mubr.bf16.mxu0 0
  %621 = vmatmul.mubr.bf16.gmra.mrb[0].mxu0 %v259
  %v622 = vpop.f32.mrb[0].mxu0
  %v623 = vadd.f32 0.0, %v622
  %v624 = vpop.f32.mrb[0].mxu0
  %v625 = vpop.f32.mrb[0].mxu0
  %v626 = vadd.f32 0.0, %v625
  %v627 = vpop.f32.mrb[0].mxu0
  %628 = vdwg.mxu0
  %v629 = vpack.c.bf16 %v378, %v375
  %v630 = vpack.c.bf16 %v386, %v383
  %v631 = vpack.c.bf16 %v394, %v391
  %v632 = vpack.c.bf16 %v402, %v399
  %v633 = vpack.c.bf16 %v410, %v407
  %v634 = vpack.c.bf16 %v418, %v415
  %v635 = vpack.c.bf16 %v426, %v423
  %v636 = vpack.c.bf16 %v434, %v431
  %v637 = vpack.c.bf16 %v442, %v439
  %v638 = vpack.c.bf16 %v450, %v447
  %v639 = vpack.c.bf16 %v458, %v455
  %v640 = vpack.c.bf16 %v466, %v463
  %v641 = vpack.c.bf16 %v474, %v471
  %v642 = vpack.c.bf16 %v482, %v479
  %v643 = vpack.c.bf16 %v490, %v487
  %v644 = vpack.c.bf16 %v498, %v495
  %v645 = vpack.c.bf16 %v506, %v503
  %v646 = vpack.c.bf16 %v514, %v511
  %v647 = vpack.c.bf16 %v522, %v519
  %v648 = vpack.c.bf16 %v530, %v527
  %v649 = vpack.c.bf16 %v538, %v535
  %v650 = vpack.c.bf16 %v546, %v543
  %v651 = vpack.c.bf16 %v554, %v551
  %v652 = vpack.c.bf16 %v562, %v559
  %v653 = vpack.c.bf16 %v570, %v567
  %v654 = vpack.c.bf16 %v578, %v575
  %v655 = vpack.c.bf16 %v586, %v583
  %v656 = vpack.c.bf16 %v594, %v591
  %v657 = vpack.c.bf16 %v602, %v599
  %v658 = vpack.c.bf16 %v610, %v607
  %v659 = vpack.c.bf16 %v618, %v615
  %v660 = vpack.c.bf16 %v626, %v623
  %v693 = vunpack.c.l.b16 %v629
  %v694 = vunpack.c.h.b16 %v629
  %v695 = vunpack.c.l.b16 %v630
  %v696 = vunpack.c.h.b16 %v630
  %v697 = vunpack.c.l.b16 %v631
  %v698 = vunpack.c.h.b16 %v631
  %v699 = vunpack.c.l.b16 %v632
  %v700 = vunpack.c.h.b16 %v632
  %v701 = vunpack.c.l.b16 %v633
  %v702 = vunpack.c.h.b16 %v633
  %v703 = vunpack.c.l.b16 %v634
  %v704 = vunpack.c.h.b16 %v634
  %v705 = vunpack.c.l.b16 %v635
  %v706 = vunpack.c.h.b16 %v635
  %v707 = vunpack.c.l.b16 %v636
  %v708 = vunpack.c.h.b16 %v636
  %v709 = vunpack.c.l.b16 %v637
  %v710 = vunpack.c.h.b16 %v637
  %v711 = vunpack.c.l.b16 %v638
  %v712 = vunpack.c.h.b16 %v638
  %v713 = vunpack.c.l.b16 %v639
  %v714 = vunpack.c.h.b16 %v639
  %v715 = vunpack.c.l.b16 %v640
  %v716 = vunpack.c.h.b16 %v640
  %v717 = vunpack.c.l.b16 %v641
  %v718 = vunpack.c.h.b16 %v641
  %v719 = vunpack.c.l.b16 %v642
  %v720 = vunpack.c.h.b16 %v642
  %v721 = vunpack.c.l.b16 %v643
  %v722 = vunpack.c.h.b16 %v643
  %v723 = vunpack.c.l.b16 %v644
  %v724 = vunpack.c.h.b16 %v644
  %v725 = vunpack.c.l.b16 %v645
  %v726 = vunpack.c.h.b16 %v645
  %v727 = vunpack.c.l.b16 %v646
  %v728 = vunpack.c.h.b16 %v646
  %v729 = vunpack.c.l.b16 %v647
  %v730 = vunpack.c.h.b16 %v647
  %v731 = vunpack.c.l.b16 %v648
  %v732 = vunpack.c.h.b16 %v648
  %v733 = vunpack.c.l.b16 %v649
  %v734 = vunpack.c.h.b16 %v649
  %v735 = vunpack.c.l.b16 %v650
  %v736 = vunpack.c.h.b16 %v650
  %v737 = vunpack.c.l.b16 %v651
  %v738 = vunpack.c.h.b16 %v651
  %v739 = vunpack.c.l.b16 %v652
  %v740 = vunpack.c.h.b16 %v652
  %v741 = vunpack.c.l.b16 %v653
  %v742 = vunpack.c.h.b16 %v653
  %v743 = vunpack.c.l.b16 %v654
  %v744 = vunpack.c.h.b16 %v654
  %v745 = vunpack.c.l.b16 %v655
  %v746 = vunpack.c.h.b16 %v655
  %v747 = vunpack.c.l.b16 %v656
  %v748 = vunpack.c.h.b16 %v656
  %v749 = vunpack.c.l.b16 %v657
  %v750 = vunpack.c.h.b16 %v657
  %v751 = vunpack.c.l.b16 %v658
  %v752 = vunpack.c.h.b16 %v658
  %v753 = vunpack.c.l.b16 %v659
  %v754 = vunpack.c.h.b16 %v659
  %v755 = vunpack.c.l.b16 %v660
  %v756 = vunpack.c.h.b16 %v660
  %v757 = vpack.c.b16 %v693, %v693
  %v758 = vpack.c.b16 %v694, %v694
  %v759 = vpack.c.b16 %v695, %v695
  %v760 = vpack.c.b16 %v696, %v696
  %v761 = vpack.c.b16 %v697, %v697
  %v762 = vpack.c.b16 %v698, %v698
  %v763 = vpack.c.b16 %v699, %v699
  %v764 = vpack.c.b16 %v700, %v700
  %v765 = vpack.c.b16 %v701, %v701
  %v766 = vpack.c.b16 %v702, %v702
  %v767 = vpack.c.b16 %v703, %v703
  %v768 = vpack.c.b16 %v704, %v704
  %v769 = vpack.c.b16 %v705, %v705
  %v770 = vpack.c.b16 %v706, %v706
  %v771 = vpack.c.b16 %v707, %v707
  %v772 = vpack.c.b16 %v708, %v708
  %v773 = vpack.c.b16 %v709, %v709
  %v774 = vpack.c.b16 %v710, %v710
  %v775 = vpack.c.b16 %v711, %v711
  %v776 = vpack.c.b16 %v712, %v712
  %v777 = vpack.c.b16 %v713, %v713
  %v778 = vpack.c.b16 %v714, %v714
  %v779 = vpack.c.b16 %v715, %v715
  %v780 = vpack.c.b16 %v716, %v716
  %v781 = vpack.c.b16 %v717, %v717
  %v782 = vpack.c.b16 %v718, %v718
  %v783 = vpack.c.b16 %v719, %v719
  %v784 = vpack.c.b16 %v720, %v720
  %v785 = vpack.c.b16 %v721, %v721
  %v786 = vpack.c.b16 %v722, %v722
  %v787 = vpack.c.b16 %v723, %v723
  %v788 = vpack.c.b16 %v724, %v724
  %v789 = vpack.c.b16 %v725, %v725
  %v790 = vpack.c.b16 %v726, %v726
  %v791 = vpack.c.b16 %v727, %v727
  %v792 = vpack.c.b16 %v728, %v728
  %v793 = vpack.c.b16 %v729, %v729
  %v794 = vpack.c.b16 %v730, %v730
  %v795 = vpack.c.b16 %v731, %v731
  %v796 = vpack.c.b16 %v732, %v732
  %v797 = vpack.c.b16 %v733, %v733
  %v798 = vpack.c.b16 %v734, %v734
  %v799 = vpack.c.b16 %v735, %v735
  %v800 = vpack.c.b16 %v736, %v736
  %v801 = vpack.c.b16 %v737, %v737
  %v802 = vpack.c.b16 %v738, %v738
  %v803 = vpack.c.b16 %v739, %v739
  %v804 = vpack.c.b16 %v740, %v740
  %v805 = vpack.c.b16 %v741, %v741
  %v806 = vpack.c.b16 %v742, %v742
  %v807 = vpack.c.b16 %v743, %v743
  %v808 = vpack.c.b16 %v744, %v744
  %v809 = vpack.c.b16 %v745, %v745
  %v810 = vpack.c.b16 %v746, %v746
  %v811 = vpack.c.b16 %v747, %v747
  %v812 = vpack.c.b16 %v748, %v748
  %v813 = vpack.c.b16 %v749, %v749
  %v814 = vpack.c.b16 %v750, %v750
  %v815 = vpack.c.b16 %v751, %v751
  %v816 = vpack.c.b16 %v752, %v752
  %v817 = vpack.c.b16 %v753, %v753
  %v818 = vpack.c.b16 %v754, %v754
  %v819 = vpack.c.b16 %v755, %v755
  %v820 = vpack.c.b16 %v756, %v756
  %vm885 = vcmask 257024
  %886 = vst.msk [vmem:[%s2] sm:$0xf] %vm885, %v757
  %887 = vst.msk [vmem:[%s2 + $0x4] sm:$0xf] %vm885, %v758
  %888 = vst.msk [vmem:[%s2 + $0x8] sm:$0xf] %vm885, %v759
  %889 = vst.msk [vmem:[%s2 + $0xc] sm:$0xf] %vm885, %v760
  %890 = vst.msk [vmem:[%s2 + $0x10] sm:$0xf] %vm885, %v761
  %891 = vst.msk [vmem:[%s2 + $0x14] sm:$0xf] %vm885, %v762
  %892 = vst.msk [vmem:[%s2 + $0x18] sm:$0xf] %vm885, %v763
  %893 = vst.msk [vmem:[%s2 + $0x1c] sm:$0xf] %vm885, %v764
  %894 = vst.msk [vmem:[%s2 + $0x20] sm:$0xf] %vm885, %v765
  %895 = vst.msk [vmem:[%s2 + $0x24] sm:$0xf] %vm885, %v766
  %896 = vst.msk [vmem:[%s2 + $0x28] sm:$0xf] %vm885, %v767
  %897 = vst.msk [vmem:[%s2 + $0x2c] sm:$0xf] %vm885, %v768
  %898 = vst.msk [vmem:[%s2 + $0x30] sm:$0xf] %vm885, %v769
  %899 = vst.msk [vmem:[%s2 + $0x34] sm:$0xf] %vm885, %v770
  %900 = vst.msk [vmem:[%s2 + $0x38] sm:$0xf] %vm885, %v771
  %901 = vst.msk [vmem:[%s2 + $0x3c] sm:$0xf] %vm885, %v772
  %902 = vst.msk [vmem:[%s2 + $0x40] sm:$0xf] %vm885, %v773
  %903 = vst.msk [vmem:[%s2 + $0x44] sm:$0xf] %vm885, %v774
  %904 = vst.msk [vmem:[%s2 + $0x48] sm:$0xf] %vm885, %v775
  %905 = vst.msk [vmem:[%s2 + $0x4c] sm:$0xf] %vm885, %v776
  %906 = vst.msk [vmem:[%s2 + $0x50] sm:$0xf] %vm885, %v777
  %907 = vst.msk [vmem:[%s2 + $0x54] sm:$0xf] %vm885, %v778
  %908 = vst.msk [vmem:[%s2 + $0x58] sm:$0xf] %vm885, %v779
  %909 = vst.msk [vmem:[%s2 + $0x5c] sm:$0xf] %vm885, %v780
  %910 = vst.msk [vmem:[%s2 + $0x60] sm:$0xf] %vm885, %v781
  %911 = vst.msk [vmem:[%s2 + $0x64] sm:$0xf] %vm885, %v782
  %912 = vst.msk [vmem:[%s2 + $0x68] sm:$0xf] %vm885, %v783
  %913 = vst.msk [vmem:[%s2 + $0x6c] sm:$0xf] %vm885, %v784
  %914 = vst.msk [vmem:[%s2 + $0x70] sm:$0xf] %vm885, %v785
  %915 = vst.msk [vmem:[%s2 + $0x74] sm:$0xf] %vm885, %v786
  %916 = vst.msk [vmem:[%s2 + $0x78] sm:$0xf] %vm885, %v787
  %917 = vst.msk [vmem:[%s2 + $0x7c] sm:$0xf] %vm885, %v788
  %918 = vst.msk [vmem:[%s2 + $0x80] sm:$0xf] %vm885, %v789
  %919 = vst.msk [vmem:[%s2 + $0x84] sm:$0xf] %vm885, %v790
  %920 = vst.msk [vmem:[%s2 + $0x88] sm:$0xf] %vm885, %v791
  %921 = vst.msk [vmem:[%s2 + $0x8c] sm:$0xf] %vm885, %v792
  %922 = vst.msk [vmem:[%s2 + $0x90] sm:$0xf] %vm885, %v793
  %923 = vst.msk [vmem:[%s2 + $0x94] sm:$0xf] %vm885, %v794
  %924 = vst.msk [vmem:[%s2 + $0x98] sm:$0xf] %vm885, %v795
  %925 = vst.msk [vmem:[%s2 + $0x9c] sm:$0xf] %vm885, %v796
  %926 = vst.msk [vmem:[%s2 + $0xa0] sm:$0xf] %vm885, %v797
  %927 = vst.msk [vmem:[%s2 + $0xa4] sm:$0xf] %vm885, %v798
  %928 = vst.msk [vmem:[%s2 + $0xa8] sm:$0xf] %vm885, %v799
  %929 = vst.msk [vmem:[%s2 + $0xac] sm:$0xf] %vm885, %v800
  %930 = vst.msk [vmem:[%s2 + $0xb0] sm:$0xf] %vm885, %v801
  %931 = vst.msk [vmem:[%s2 + $0xb4] sm:$0xf] %vm885, %v802
  %932 = vst.msk [vmem:[%s2 + $0xb8] sm:$0xf] %vm885, %v803
  %933 = vst.msk [vmem:[%s2 + $0xbc] sm:$0xf] %vm885, %v804
  %934 = vst.msk [vmem:[%s2 + $0xc0] sm:$0xf] %vm885, %v805
  %935 = vst.msk [vmem:[%s2 + $0xc4] sm:$0xf] %vm885, %v806
  %936 = vst.msk [vmem:[%s2 + $0xc8] sm:$0xf] %vm885, %v807
  %937 = vst.msk [vmem:[%s2 + $0xcc] sm:$0xf] %vm885, %v808
  %938 = vst.msk [vmem:[%s2 + $0xd0] sm:$0xf] %vm885, %v809
  %939 = vst.msk [vmem:[%s2 + $0xd4] sm:$0xf] %vm885, %v810
  %940 = vst.msk [vmem:[%s2 + $0xd8] sm:$0xf] %vm885, %v811
  %941 = vst.msk [vmem:[%s2 + $0xdc] sm:$0xf] %vm885, %v812
  %942 = vst.msk [vmem:[%s2 + $0xe0] sm:$0xf] %vm885, %v813
  %943 = vst.msk [vmem:[%s2 + $0xe4] sm:$0xf] %vm885, %v814
  %944 = vst.msk [vmem:[%s2 + $0xe8] sm:$0xf] %vm885, %v815
  %945 = vst.msk [vmem:[%s2 + $0xec] sm:$0xf] %vm885, %v816
  %946 = vst.msk [vmem:[%s2 + $0xf0] sm:$0xf] %vm885, %v817
  %947 = vst.msk [vmem:[%s2 + $0xf4] sm:$0xf] %vm885, %v818
  %948 = vst.msk [vmem:[%s2 + $0xf8] sm:$0xf] %vm885, %v819
  %949 = vst.msk [vmem:[%s2 + $0xfc] sm:$0xf] %vm885, %v820
  %vm950 = vcmask 261120
  %v951 = vsel %vm950, %v375, 0.0
  %v952 = vsel %vm950, %v378, 0.0
  %v953 = vadd.f32 %v951, %v952
  %v954 = vsel %vm950, %v383, 0.0
  %v955 = vadd.f32 %v953, %v954
  %v956 = vsel %vm950, %v386, 0.0
  %v957 = vadd.f32 %v955, %v956
  %v958 = vsel %vm950, %v391, 0.0
  %v959 = vadd.f32 %v957, %v958
  %v960 = vsel %vm950, %v394, 0.0
  %v961 = vadd.f32 %v959, %v960
  %v962 = vsel %vm950, %v399, 0.0
  %v963 = vadd.f32 %v961, %v962
  %v964 = vsel %vm950, %v402, 0.0
  %v965 = vadd.f32 %v963, %v964
  %v966 = vsel %vm950, %v407, 0.0
  %v967 = vadd.f32 %v965, %v966
  %v968 = vsel %vm950, %v410, 0.0
  %v969 = vadd.f32 %v967, %v968
  %v970 = vsel %vm950, %v415, 0.0
  %v971 = vadd.f32 %v969, %v970
  %v972 = vsel %vm950, %v418, 0.0
  %v973 = vadd.f32 %v971, %v972
  %v974 = vsel %vm950, %v423, 0.0
  %v975 = vadd.f32 %v973, %v974
  %v976 = vsel %vm950, %v426, 0.0
  %v977 = vadd.f32 %v975, %v976
  %v978 = vsel %vm950, %v431, 0.0
  %v979 = vadd.f32 %v977, %v978
  %v980 = vsel %vm950, %v434, 0.0
  %v981 = vadd.f32 %v979, %v980
  %v982 = vsel %vm950, %v439, 0.0
  %v983 = vadd.f32 %v981, %v982
  %v984 = vsel %vm950, %v442, 0.0
  %v985 = vadd.f32 %v983, %v984
  %v986 = vsel %vm950, %v447, 0.0
  %v987 = vadd.f32 %v985, %v986
  %v988 = vsel %vm950, %v450, 0.0
  %v989 = vadd.f32 %v987, %v988
  %v990 = vsel %vm950, %v455, 0.0
  %v991 = vadd.f32 %v989, %v990
  %v992 = vsel %vm950, %v458, 0.0
  %v993 = vadd.f32 %v991, %v992
  %v994 = vsel %vm950, %v463, 0.0
  %v995 = vadd.f32 %v993, %v994
  %v996 = vsel %vm950, %v466, 0.0
  %v997 = vadd.f32 %v995, %v996
  %v998 = vsel %vm950, %v471, 0.0
  %v999 = vadd.f32 %v997, %v998
  %v1000 = vsel %vm950, %v474, 0.0
  %v1001 = vadd.f32 %v999, %v1000
  %v1002 = vsel %vm950, %v479, 0.0
  %v1003 = vadd.f32 %v1001, %v1002
  %v1004 = vsel %vm950, %v482, 0.0
  %v1005 = vadd.f32 %v1003, %v1004
  %v1006 = vsel %vm950, %v487, 0.0
  %v1007 = vadd.f32 %v1005, %v1006
  %v1008 = vsel %vm950, %v490, 0.0
  %v1009 = vadd.f32 %v1007, %v1008
  %v1010 = vsel %vm950, %v495, 0.0
  %v1011 = vadd.f32 %v1009, %v1010
  %v1012 = vsel %vm950, %v498, 0.0
  %v1013 = vadd.f32 %v1011, %v1012
  %v1014 = vsel %vm950, %v503, 0.0
  %v1015 = vadd.f32 %v1013, %v1014
  %v1016 = vsel %vm950, %v506, 0.0
  %v1017 = vadd.f32 %v1015, %v1016
  %v1018 = vsel %vm950, %v511, 0.0
  %v1019 = vadd.f32 %v1017, %v1018
  %v1020 = vsel %vm950, %v514, 0.0
  %v1021 = vadd.f32 %v1019, %v1020
  %v1022 = vsel %vm950, %v519, 0.0
  %v1023 = vadd.f32 %v1021, %v1022
  %v1024 = vsel %vm950, %v522, 0.0
  %v1025 = vadd.f32 %v1023, %v1024
  %v1026 = vsel %vm950, %v527, 0.0
  %v1027 = vadd.f32 %v1025, %v1026
  %v1028 = vsel %vm950, %v530, 0.0
  %v1029 = vadd.f32 %v1027, %v1028
  %v1030 = vsel %vm950, %v535, 0.0
  %v1031 = vadd.f32 %v1029, %v1030
  %v1032 = vsel %vm950, %v538, 0.0
  %v1033 = vadd.f32 %v1031, %v1032
  %v1034 = vsel %vm950, %v543, 0.0
  %v1035 = vadd.f32 %v1033, %v1034
  %v1036 = vsel %vm950, %v546, 0.0
  %v1037 = vadd.f32 %v1035, %v1036
  %v1038 = vsel %vm950, %v551, 0.0
  %v1039 = vadd.f32 %v1037, %v1038
  %v1040 = vsel %vm950, %v554, 0.0
  %v1041 = vadd.f32 %v1039, %v1040
  %v1042 = vsel %vm950, %v559, 0.0
  %v1043 = vadd.f32 %v1041, %v1042
  %v1044 = vsel %vm950, %v562, 0.0
  %v1045 = vadd.f32 %v1043, %v1044
  %v1046 = vsel %vm950, %v567, 0.0
  %v1047 = vadd.f32 %v1045, %v1046
  %v1048 = vsel %vm950, %v570, 0.0
  %v1049 = vadd.f32 %v1047, %v1048
  %v1050 = vsel %vm950, %v575, 0.0
  %v1051 = vadd.f32 %v1049, %v1050
  %v1052 = vsel %vm950, %v578, 0.0
  %v1053 = vadd.f32 %v1051, %v1052
  %v1054 = vsel %vm950, %v583, 0.0
  %v1055 = vadd.f32 %v1053, %v1054
  %v1056 = vsel %vm950, %v586, 0.0
  %v1057 = vadd.f32 %v1055, %v1056
  %v1058 = vsel %vm950, %v591, 0.0
  %v1059 = vadd.f32 %v1057, %v1058
  %v1060 = vsel %vm950, %v594, 0.0
  %v1061 = vadd.f32 %v1059, %v1060
  %v1062 = vsel %vm950, %v599, 0.0
  %v1063 = vadd.f32 %v1061, %v1062
  %v1064 = vsel %vm950, %v602, 0.0
  %v1065 = vadd.f32 %v1063, %v1064
  %v1066 = vsel %vm950, %v607, 0.0
  %v1067 = vadd.f32 %v1065, %v1066
  %v1068 = vsel %vm950, %v610, 0.0
  %v1069 = vadd.f32 %v1067, %v1068
  %v1070 = vsel %vm950, %v615, 0.0
  %v1071 = vadd.f32 %v1069, %v1070
  %v1072 = vsel %vm950, %v618, 0.0
  %v1073 = vadd.f32 %v1071, %v1072
  %v1074 = vsel %vm950, %v623, 0.0
  %v1075 = vadd.f32 %v1073, %v1074
  %v1076 = vsel %vm950, %v626, 0.0
  %v1077 = vadd.f32 %v1075, %v1076
  %v1078 = vrot.slane %v1077, 4
  %v1079 = vadd.f32 %v1077, %v1078
  %v1080 = vrot.slane %v1079, 2
  %v1081 = vadd.f32 %v1079, %v1080
  %v1082 = vrot.slane %v1081, 1
  %v1083 = vadd.f32 %v1081, %v1082
  %v1084 = vmul.f32 %v375, %v375
  %v1085 = vmul.f32 %v378, %v378
  %v1086 = vmul.f32 %v383, %v383
  %v1087 = vmul.f32 %v386, %v386
  %v1088 = vmul.f32 %v391, %v391
  %v1089 = vmul.f32 %v394, %v394
  %v1090 = vmul.f32 %v399, %v399
  %v1091 = vmul.f32 %v402, %v402
  %v1092 = vmul.f32 %v407, %v407
  %v1093 = vmul.f32 %v410, %v410
  %v1094 = vmul.f32 %v415, %v415
  %v1095 = vmul.f32 %v418, %v418
  %v1096 = vmul.f32 %v423, %v423
  %v1097 = vmul.f32 %v426, %v426
  %v1098 = vmul.f32 %v431, %v431
  %v1099 = vmul.f32 %v434, %v434
  %v1100 = vmul.f32 %v439, %v439
  %v1101 = vmul.f32 %v442, %v442
  %v1102 = vmul.f32 %v447, %v447
  %v1103 = vmul.f32 %v450, %v450
  %v1104 = vmul.f32 %v455, %v455
  %v1105 = vmul.f32 %v458, %v458
  %v1106 = vmul.f32 %v463, %v463
  %v1107 = vmul.f32 %v466, %v466
  %v1108 = vmul.f32 %v471, %v471
  %v1109 = vmul.f32 %v474, %v474
  %v1110 = vmul.f32 %v479, %v479
  %v1111 = vmul.f32 %v482, %v482
  %v1112 = vmul.f32 %v487, %v487
  %v1113 = vmul.f32 %v490, %v490
  %v1114 = vmul.f32 %v495, %v495
  %v1115 = vmul.f32 %v498, %v498
  %v1116 = vmul.f32 %v503, %v503
  %v1117 = vmul.f32 %v506, %v506
  %v1118 = vmul.f32 %v511, %v511
  %v1119 = vmul.f32 %v514, %v514
  %v1120 = vmul.f32 %v519, %v519
  %v1121 = vmul.f32 %v522, %v522
  %v1122 = vmul.f32 %v527, %v527
  %v1123 = vmul.f32 %v530, %v530
  %v1124 = vmul.f32 %v535, %v535
  %v1125 = vmul.f32 %v538, %v538
  %v1126 = vmul.f32 %v543, %v543
  %v1127 = vmul.f32 %v546, %v546
  %v1128 = vmul.f32 %v551, %v551
  %v1129 = vmul.f32 %v554, %v554
  %v1130 = vmul.f32 %v559, %v559
  %v1131 = vmul.f32 %v562, %v562
  %v1132 = vmul.f32 %v567, %v567
  %v1133 = vmul.f32 %v570, %v570
  %v1134 = vmul.f32 %v575, %v575
  %v1135 = vmul.f32 %v578, %v578
  %v1136 = vmul.f32 %v583, %v583
  %v1137 = vmul.f32 %v586, %v586
  %v1138 = vmul.f32 %v591, %v591
  %v1139 = vmul.f32 %v594, %v594
  %v1140 = vmul.f32 %v599, %v599
  %v1141 = vmul.f32 %v602, %v602
  %v1142 = vmul.f32 %v607, %v607
  %v1143 = vmul.f32 %v610, %v610
  %v1144 = vmul.f32 %v615, %v615
  %v1145 = vmul.f32 %v618, %v618
  %v1146 = vmul.f32 %v623, %v623
  %v1147 = vmul.f32 %v626, %v626
  %v1148 = vsel %vm950, %v1084, 0.0
  %v1149 = vsel %vm950, %v1085, 0.0
  %v1150 = vadd.f32 %v1148, %v1149
  %v1151 = vsel %vm950, %v1086, 0.0
  %v1152 = vadd.f32 %v1150, %v1151
  %v1153 = vsel %vm950, %v1087, 0.0
  %v1154 = vadd.f32 %v1152, %v1153
  %v1155 = vsel %vm950, %v1088, 0.0
  %v1156 = vadd.f32 %v1154, %v1155
  %v1157 = vsel %vm950, %v1089, 0.0
  %v1158 = vadd.f32 %v1156, %v1157
  %v1159 = vsel %vm950, %v1090, 0.0
  %v1160 = vadd.f32 %v1158, %v1159
  %v1161 = vsel %vm950, %v1091, 0.0
  %v1162 = vadd.f32 %v1160, %v1161
  %v1163 = vsel %vm950, %v1092, 0.0
  %v1164 = vadd.f32 %v1162, %v1163
  %v1165 = vsel %vm950, %v1093, 0.0
  %v1166 = vadd.f32 %v1164, %v1165
  %v1167 = vsel %vm950, %v1094, 0.0
  %v1168 = vadd.f32 %v1166, %v1167
  %v1169 = vsel %vm950, %v1095, 0.0
  %v1170 = vadd.f32 %v1168, %v1169
  %v1171 = vsel %vm950, %v1096, 0.0
  %v1172 = vadd.f32 %v1170, %v1171
  %v1173 = vsel %vm950, %v1097, 0.0
  %v1174 = vadd.f32 %v1172, %v1173
  %v1175 = vsel %vm950, %v1098, 0.0
  %v1176 = vadd.f32 %v1174, %v1175
  %v1177 = vsel %vm950, %v1099, 0.0
  %v1178 = vadd.f32 %v1176, %v1177
  %v1179 = vsel %vm950, %v1100, 0.0
  %v1180 = vadd.f32 %v1178, %v1179
  %v1181 = vsel %vm950, %v1101, 0.0
  %v1182 = vadd.f32 %v1180, %v1181
  %v1183 = vsel %vm950, %v1102, 0.0
  %v1184 = vadd.f32 %v1182, %v1183
  %v1185 = vsel %vm950, %v1103, 0.0
  %v1186 = vadd.f32 %v1184, %v1185
  %v1187 = vsel %vm950, %v1104, 0.0
  %v1188 = vadd.f32 %v1186, %v1187
  %v1189 = vsel %vm950, %v1105, 0.0
  %v1190 = vadd.f32 %v1188, %v1189
  %v1191 = vsel %vm950, %v1106, 0.0
  %v1192 = vadd.f32 %v1190, %v1191
  %v1193 = vsel %vm950, %v1107, 0.0
  %v1194 = vadd.f32 %v1192, %v1193
  %v1195 = vsel %vm950, %v1108, 0.0
  %v1196 = vadd.f32 %v1194, %v1195
  %v1197 = vsel %vm950, %v1109, 0.0
  %v1198 = vadd.f32 %v1196, %v1197
  %v1199 = vsel %vm950, %v1110, 0.0
  %v1200 = vadd.f32 %v1198, %v1199
  %v1201 = vsel %vm950, %v1111, 0.0
  %v1202 = vadd.f32 %v1200, %v1201
  %v1203 = vsel %vm950, %v1112, 0.0
  %v1204 = vadd.f32 %v1202, %v1203
  %v1205 = vsel %vm950, %v1113, 0.0
  %v1206 = vadd.f32 %v1204, %v1205
  %v1207 = vsel %vm950, %v1114, 0.0
  %v1208 = vadd.f32 %v1206, %v1207
  %v1209 = vsel %vm950, %v1115, 0.0
  %v1210 = vadd.f32 %v1208, %v1209
  %v1211 = vsel %vm950, %v1116, 0.0
  %v1212 = vadd.f32 %v1210, %v1211
  %v1213 = vsel %vm950, %v1117, 0.0
  %v1214 = vadd.f32 %v1212, %v1213
  %v1215 = vsel %vm950, %v1118, 0.0
  %v1216 = vadd.f32 %v1214, %v1215
  %v1217 = vsel %vm950, %v1119, 0.0
  %v1218 = vadd.f32 %v1216, %v1217
  %v1219 = vsel %vm950, %v1120, 0.0
  %v1220 = vadd.f32 %v1218, %v1219
  %v1221 = vsel %vm950, %v1121, 0.0
  %v1222 = vadd.f32 %v1220, %v1221
  %v1223 = vsel %vm950, %v1122, 0.0
  %v1224 = vadd.f32 %v1222, %v1223
  %v1225 = vsel %vm950, %v1123, 0.0
  %v1226 = vadd.f32 %v1224, %v1225
  %v1227 = vsel %vm950, %v1124, 0.0
  %v1228 = vadd.f32 %v1226, %v1227
  %v1229 = vsel %vm950, %v1125, 0.0
  %v1230 = vadd.f32 %v1228, %v1229
  %v1231 = vsel %vm950, %v1126, 0.0
  %v1232 = vadd.f32 %v1230, %v1231
  %v1233 = vsel %vm950, %v1127, 0.0
  %v1234 = vadd.f32 %v1232, %v1233
  %v1235 = vsel %vm950, %v1128, 0.0
  %v1236 = vadd.f32 %v1234, %v1235
  %v1237 = vsel %vm950, %v1129, 0.0
  %v1238 = vadd.f32 %v1236, %v1237
  %v1239 = vsel %vm950, %v1130, 0.0
  %v1240 = vadd.f32 %v1238, %v1239
  %v1241 = vsel %vm950, %v1131, 0.0
  %v1242 = vadd.f32 %v1240, %v1241
  %v1243 = vsel %vm950, %v1132, 0.0
  %v1244 = vadd.f32 %v1242, %v1243
  %v1245 = vsel %vm950, %v1133, 0.0
  %v1246 = vadd.f32 %v1244, %v1245
  %v1247 = vsel %vm950, %v1134, 0.0
  %v1248 = vadd.f32 %v1246, %v1247
  %v1249 = vsel %vm950, %v1135, 0.0
  %v1250 = vadd.f32 %v1248, %v1249
  %v1251 = vsel %vm950, %v1136, 0.0
  %v1252 = vadd.f32 %v1250, %v1251
  %v1253 = vsel %vm950, %v1137, 0.0
  %v1254 = vadd.f32 %v1252, %v1253
  %v1255 = vsel %vm950, %v1138, 0.0
  %v1256 = vadd.f32 %v1254, %v1255
  %v1257 = vsel %vm950, %v1139, 0.0
  %v1258 = vadd.f32 %v1256, %v1257
  %v1259 = vsel %vm950, %v1140, 0.0
  %v1260 = vadd.f32 %v1258, %v1259
  %v1261 = vsel %vm950, %v1141, 0.0
  %v1262 = vadd.f32 %v1260, %v1261
  %v1263 = vsel %vm950, %v1142, 0.0
  %v1264 = vadd.f32 %v1262, %v1263
  %v1265 = vsel %vm950, %v1143, 0.0
  %v1266 = vadd.f32 %v1264, %v1265
  %v1267 = vsel %vm950, %v1144, 0.0
  %v1268 = vadd.f32 %v1266, %v1267
  %v1269 = vsel %vm950, %v1145, 0.0
  %v1270 = vadd.f32 %v1268, %v1269
  %v1271 = vsel %vm950, %v1146, 0.0
  %v1272 = vadd.f32 %v1270, %v1271
  %v1273 = vsel %vm950, %v1147, 0.0
  %v1274 = vadd.f32 %v1272, %v1273
  %v1275 = vrot.slane %v1274, 4
  %v1276 = vadd.f32 %v1274, %v1275
  %v1277 = vrot.slane %v1276, 2
  %v1278 = vadd.f32 %v1276, %v1277
  %v1279 = vrot.slane %v1278, 1
  %v1280 = vadd.f32 %v1278, %v1279
  %v1281 = vld [vmem:[%s3] sm:$0x3]
  %vm1282 = vcmask 1040384
  %v1283 = vsel %vm1282, %v1083, %v1280
  %v1284 = vadd.f32 %v1281, %v1283
  %vm1285 = vcmask 254976
  %1286 = vst.msk [vmem:[%s3] sm:$0x3] %vm1285, %v1284
  // Predicated region
  $region14: #{bottleneck_forward.4} parent=0 // pred_check
    _
  $region15: #{bottleneck_forward.4} parent=0 // pred_check_branch
    %1288 = sbr.rel (0) target = $region17
  $region16: #{bottleneck_forward.4} parent=0 // pred_region
    _
  $region17: #{bottleneck_forward.4} parent=0 // pred_fallthru
    _
  // Predicated region
  $region18: #{bottleneck_forward.4} parent=0 // pred_check
    _
  $region19: #{bottleneck_forward.4} parent=0 // pred_check_branch
    %1290 = sbr.rel (0) target = $region21
  $region20: #{bottleneck_forward.4} parent=0 // pred_region
    _
  $region21: #{bottleneck_forward.4} parent=0 // pred_fallthru
    _
  // Predicated region
  $region22: #{bottleneck_forward.4} parent=0 // pred_check
    _
  $region23: #{bottleneck_forward.4} parent=0 // pred_check_branch
    %1292 = sbr.rel (0) target = $region25
  $region24: #{bottleneck_forward.4} parent=0 // pred_region
    _
  $region25: #{bottleneck_forward.4} parent=0 // pred_fallthru
    _
  // Predicated region
  $region26: #{bottleneck_forward.4} parent=0 // pred_check
    _
  $region27: #{bottleneck_forward.4} parent=0 // pred_check_branch
    %1294 = sbr.rel (0) target = $region29
  $region28: #{bottleneck_forward.4} parent=0 // pred_region
    _
  $region29: #{bottleneck_forward.4} parent=0 // pred_fallthru
    _

// kernel: bottleneck_forward.7
$region0: #{bottleneck_forward.7}
  #allocation0 [shape = 'u32[]', space=smem, size = 0x4, offset = 0x4, fixed_abs, tag = 'smem constant byte address 0x4 - core index']
  #allocation1 [shape = 'u32[144,128]{1,0:T(1,128)}', space=vmem, size = 0x12000, scoped, tag = 'internal scratch']
  %s0 = inlined_call_operand.vmem [shape: bf16[512,128], index: 0, kind: input, shape index: {}]
  %s1 = inlined_call_operand.vmem [shape: f32[2,128], index: 1, kind: input, shape index: {}]
  %s2 = inlined_call_operand.vmem [shape: f32[1,128], index: 2, kind: input, shape index: {}]
  %s3 = inlined_call_operand.vmem [shape: f32[1,128], index: 3, kind: input, shape index: {}]
  %s4 = inlined_call_operand.vmem [shape: f32[512,128], index: 4, kind: input, shape index: {}]
  %s5 = inlined_call_operand.hbm [shape: f32[512,128], index: 5, kind: output, shape index: {}]
  %s6 = sld [smem:[#allocation0]]
  $region30: #{bottleneck_forward.7} parent=0
    _
  %s8 = ssub.s32 1, %s6
  %s9 = scalar_select 0, %s8, %s6
  $region1: #{bottleneck_forward.7} parent=0
    #allocation2 [shape = 'u8[262144]{0}', space=vmem, size = 0x40000, scoped, tag = 'output window, operand 0, single buffered']
    #allocation3 [shape = 's32[1]{0}', space=sflag, size = 0x4, scoped, tag = 'scoped memory for bottleneck_forward.7']
    %10 = vsyncpa [#allocation3], 0
    // Predicated region
    $region2: #{bottleneck_forward.7} parent=1 // pred_check
      _
    $region3: #{bottleneck_forward.7} parent=1 // pred_check_branch
      %12 = sbr.rel (0) target = $region5
    $region4: #{bottleneck_forward.7} parent=1 // pred_region
      _
    $region5: #{bottleneck_forward.7} parent=1 // pred_fallthru
      _
    // Predicated region
    $region6: #{bottleneck_forward.7} parent=1 // pred_check
      _
    $region7: #{bottleneck_forward.7} parent=1 // pred_check_branch
      %14 = sbr.rel (0) target = $region9
    $region8: #{bottleneck_forward.7} parent=1 // pred_region
      _
    $region9: #{bottleneck_forward.7} parent=1 // pred_fallthru
      _
    // Predicated region
    $region10: #{bottleneck_forward.7} parent=1 // pred_check
      _
    $region11: #{bottleneck_forward.7} parent=1 // pred_check_branch
      %16 = sbr.rel (0) target = $region13
    $region12: #{bottleneck_forward.7} parent=1 // pred_region
      _
    $region13: #{bottleneck_forward.7} parent=1 // pred_fallthru
      _
    // Predicated region
    $region14: #{bottleneck_forward.7} parent=1 // pred_check
      _
    $region15: #{bottleneck_forward.7} parent=1 // pred_check_branch
      %18 = sbr.rel (0) target = $region17
    $region16: #{bottleneck_forward.7} parent=1 // pred_region
      _
    $region17: #{bottleneck_forward.7} parent=1 // pred_fallthru
      _
    // Predicated region
    $region18: #{bottleneck_forward.7} parent=1 // pred_check
      _
    $region19: #{bottleneck_forward.7} parent=1 // pred_check_branch
      %20 = sbr.rel (0) target = $region21
    $region20: #{bottleneck_forward.7} parent=1 // pred_region
      _
    $region21: #{bottleneck_forward.7} parent=1 // pred_fallthru
      _
    %v21 = vld [vmem:[%s1] sm:$0x3]
    %v22 = vld [vmem:[%s2] sm:$0x1]
    %v23 = vld [vmem:[%s3] sm:$0x1]
    %v24 = vmul.f32 %v21, 0.001953125
    %v25 = vmul.f32 %v24, %v24
    %v27 = vrot.slane %v25, 7
    %v29 = vsub.f32 %v24, %v27
    %v30 = vadd.f32 %v29, 1e-05
    %v31 = vrsqrt.pop %v30
    %v34 = vunpack.c.l.s4 1966171168
    %v35 = vunpack.c.0.s8 %v34
    %v36 = vlaneseq
    %v37 = vshrl.u32 %v36, 7
    %v38 = vsub.s32 %v35, %v37
    %v39 = vrot.slane %v31, %v38
    %v40 = vcombine.high %v39, %v39
    %v42 = vunpack.c.l.s4 1966171168
    %v43 = vunpack.c.0.s8 %v42
    %v44 = vlaneseq
    %v45 = vshrl.u32 %v44, 7
    %v46 = vsub.s32 %v43, %v45
    %v47 = vrot.slane %v40, %v46
    %v49 = vmul.f32 %v22, %v47
    %v50 = vmul.f32 %v24, %v49
    %v51 = vsub.f32 %v23, %v50
    %v52 = vld [vmem:[%s0] sm:$0xf]
    %v53 = vld [vmem:[%s0 + $0x4] sm:$0xf]
    %v54 = vld [vmem:[%s0 + $0x8] sm:$0xf]
    %v55 = vld [vmem:[%s0 + $0xc] sm:$0xf]
    %v56 = vld [vmem:[%s0 + $0x10] sm:$0xf]
    %v57 = vld [vmem:[%s0 + $0x14] sm:$0xf]
    %v58 = vld [vmem:[%s0 + $0x18] sm:$0xf]
    %v59 = vld [vmem:[%s0 + $0x1c] sm:$0xf]
    %v60 = vld [vmem:[%s0 + $0x20] sm:$0xf]
    %v61 = vld [vmem:[%s0 + $0x24] sm:$0xf]
    %v62 = vld [vmem:[%s0 + $0x28] sm:$0xf]
    %v63 = vld [vmem:[%s0 + $0x2c] sm:$0xf]
    %v64 = vld [vmem:[%s0 + $0x30] sm:$0xf]
    %v65 = vld [vmem:[%s0 + $0x34] sm:$0xf]
    %v66 = vld [vmem:[%s0 + $0x38] sm:$0xf]
    %v67 = vld [vmem:[%s0 + $0x3c] sm:$0xf]
    %v68 = vld [vmem:[%s0 + $0x40] sm:$0xf]
    %v69 = vld [vmem:[%s0 + $0x44] sm:$0xf]
    %v70 = vld [vmem:[%s0 + $0x48] sm:$0xf]
    %v71 = vld [vmem:[%s0 + $0x4c] sm:$0xf]
    %v72 = vld [vmem:[%s0 + $0x50] sm:$0xf]
    %v73 = vld [vmem:[%s0 + $0x54] sm:$0xf]
    %v74 = vld [vmem:[%s0 + $0x58] sm:$0xf]
    %v75 = vld [vmem:[%s0 + $0x5c] sm:$0xf]
    %v76 = vld [vmem:[%s0 + $0x60] sm:$0xf]
    %v77 = vld [vmem:[%s0 + $0x64] sm:$0xf]
    %v78 = vld [vmem:[%s0 + $0x68] sm:$0xf]
    %v79 = vld [vmem:[%s0 + $0x6c] sm:$0xf]
    %v80 = vld [vmem:[%s0 + $0x70] sm:$0xf]
    %v81 = vld [vmem:[%s0 + $0x74] sm:$0xf]
    %v82 = vld [vmem:[%s0 + $0x78] sm:$0xf]
    %v83 = vld [vmem:[%s0 + $0x7c] sm:$0xf]
    %v84 = vld [vmem:[%s0 + $0x80] sm:$0xf]
    %v85 = vld [vmem:[%s0 + $0x84] sm:$0xf]
    %v86 = vld [vmem:[%s0 + $0x88] sm:$0xf]
    %v87 = vld [vmem:[%s0 + $0x8c] sm:$0xf]
    %v88 = vld [vmem:[%s0 + $0x90] sm:$0xf]
    %v89 = vld [vmem:[%s0 + $0x94] sm:$0xf]
    %v90 = vld [vmem:[%s0 + $0x98] sm:$0xf]
    %v91 = vld [vmem:[%s0 + $0x9c] sm:$0xf]
    %v92 = vld [vmem:[%s0 + $0xa0] sm:$0xf]
    %v93 = vld [vmem:[%s0 + $0xa4] sm:$0xf]
    %v94 = vld [vmem:[%s0 + $0xa8] sm:$0xf]
    %v95 = vld [vmem:[%s0 + $0xac] sm:$0xf]
    %v96 = vld [vmem:[%s0 + $0xb0] sm:$0xf]
    %v97 = vld [vmem:[%s0 + $0xb4] sm:$0xf]
    %v98 = vld [vmem:[%s0 + $0xb8] sm:$0xf]
    %v99 = vld [vmem:[%s0 + $0xbc] sm:$0xf]
    %v100 = vld [vmem:[%s0 + $0xc0] sm:$0xf]
    %v101 = vld [vmem:[%s0 + $0xc4] sm:$0xf]
    %v102 = vld [vmem:[%s0 + $0xc8] sm:$0xf]
    %v103 = vld [vmem:[%s0 + $0xcc] sm:$0xf]
    %v104 = vld [vmem:[%s0 + $0xd0] sm:$0xf]
    %v105 = vld [vmem:[%s0 + $0xd4] sm:$0xf]
    %v106 = vld [vmem:[%s0 + $0xd8] sm:$0xf]
    %v107 = vld [vmem:[%s0 + $0xdc] sm:$0xf]
    %v108 = vld [vmem:[%s0 + $0xe0] sm:$0xf]
    %v109 = vld [vmem:[%s0 + $0xe4] sm:$0xf]
    %v110 = vld [vmem:[%s0 + $0xe8] sm:$0xf]
    %v111 = vld [vmem:[%s0 + $0xec] sm:$0xf]
    %v112 = vld [vmem:[%s0 + $0xf0] sm:$0xf]
    %v113 = vld [vmem:[%s0 + $0xf4] sm:$0xf]
    %v114 = vld [vmem:[%s0 + $0xf8] sm:$0xf]
    %v115 = vld [vmem:[%s0 + $0xfc] sm:$0xf]
    %v116 = vunpack.c.l.bf16 %v52
    %v117 = vunpack.c.l.bf16 %v53
    %v118 = vunpack.c.l.bf16 %v54
    %v119 = vunpack.c.l.bf16 %v55
    %v120 = vunpack.c.l.bf16 %v56
    %v121 = vunpack.c.l.bf16 %v57
    %v122 = vunpack.c.l.bf16 %v58
    %v123 = vunpack.c.l.bf16 %v59
    %v124 = vunpack.c.l.bf16 %v60
    %v125 = vunpack.c.l.bf16 %v61
    %v126 = vunpack.c.l.bf16 %v62
    %v127 = vunpack.c.l.bf16 %v63
    %v128 = vunpack.c.l.bf16 %v64
    %v129 = vunpack.c.l.bf16 %v65
    %v130 = vunpack.c.l.bf16 %v66
    %v131 = vunpack.c.l.bf16 %v67
    %v132 = vunpack.c.l.bf16 %v68
    %v133 = vunpack.c.l.bf16 %v69
    %v134 = vunpack.c.l.bf16 %v70
    %v135 = vunpack.c.l.bf16 %v71
    %v136 = vunpack.c.l.bf16 %v72
    %v137 = vunpack.c.l.bf16 %v73
    %v138 = vunpack.c.l.bf16 %v74
    %v139 = vunpack.c.l.bf16 %v75
    %v140 = vunpack.c.l.bf16 %v76
    %v141 = vunpack.c.l.bf16 %v77
    %v142 = vunpack.c.l.bf16 %v78
    %v143 = vunpack.c.l.bf16 %v79
    %v144 = vunpack.c.l.bf16 %v80
    %v145 = vunpack.c.l.bf16 %v81
    %v146 = vunpack.c.l.bf16 %v82
    %v147 = vunpack.c.l.bf16 %v83
    %v148 = vunpack.c.l.bf16 %v84
    %v149 = vunpack.c.l.bf16 %v85
    %v150 = vunpack.c.l.bf16 %v86
    %v151 = vunpack.c.l.bf16 %v87
    %v152 = vunpack.c.l.bf16 %v88
    %v153 = vunpack.c.l.bf16 %v89
    %v154 = vunpack.c.l.bf16 %v90
    %v155 = vunpack.c.l.bf16 %v91
    %v156 = vunpack.c.l.bf16 %v92
    %v157 = vunpack.c.l.bf16 %v93
    %v158 = vunpack.c.l.bf16 %v94
    %v159 = vunpack.c.l.bf16 %v95
    %v160 = vunpack.c.l.bf16 %v96
    %v161 = vunpack.c.l.bf16 %v97
    %v162 = vunpack.c.l.bf16 %v98
    %v163 = vunpack.c.l.bf16 %v99
    %v164 = vunpack.c.l.bf16 %v100
    %v165 = vunpack.c.l.bf16 %v101
    %v166 = vunpack.c.l.bf16 %v102
    %v167 = vunpack.c.l.bf16 %v103
    %v168 = vunpack.c.l.bf16 %v104
    %v169 = vunpack.c.l.bf16 %v105
    %v170 = vunpack.c.l.bf16 %v106
    %v171 = vunpack.c.l.bf16 %v107
    %v172 = vunpack.c.l.bf16 %v108
    %v173 = vunpack.c.l.bf16 %v109
    %v174 = vunpack.c.l.bf16 %v110
    %v175 = vunpack.c.l.bf16 %v111
    %v176 = vunpack.c.l.bf16 %v112
    %v177 = vunpack.c.l.bf16 %v113
    %v178 = vunpack.c.l.bf16 %v114
    %v179 = vunpack.c.l.bf16 %v115
    %v181 = vlaneseq
    %v182 = vshrl.u32 %v181, 7
    %v183 = vsub.s32 0, %v182
    %v184 = vrot.slane %v49, %v183
    %v186 = vmul.f32 %v116, %v184
    %v187 = vmul.f32 %v117, %v184
    %v188 = vmul.f32 %v118, %v184
    %v189 = vmul.f32 %v119, %v184
    %v190 = vmul.f32 %v120, %v184
    %v191 = vmul.f32 %v121, %v184
    %v192 = vmul.f32 %v122, %v184
    %v193 = vmul.f32 %v123, %v184
    %v194 = vmul.f32 %v124, %v184
    %v195 = vmul.f32 %v125, %v184
    %v196 = vmul.f32 %v126, %v184
    %v197 = vmul.f32 %v127, %v184
    %v198 = vmul.f32 %v128, %v184
    %v199 = vmul.f32 %v129, %v184
    %v200 = vmul.f32 %v130, %v184
    %v201 = vmul.f32 %v131, %v184
    %v202 = vmul.f32 %v132, %v184
    %v203 = vmul.f32 %v133, %v184
    %v204 = vmul.f32 %v134, %v184
    %v205 = vmul.f32 %v135, %v184
    %v206 = vmul.f32 %v136, %v184
    %v207 = vmul.f32 %v137, %v184
    %v208 = vmul.f32 %v138, %v184
    %v209 = vmul.f32 %v139, %v184
    %v210 = vmul.f32 %v140, %v184
    %v211 = vmul.f32 %v141, %v184
    %v212 = vmul.f32 %v142, %v184
    %v213 = vmul.f32 %v143, %v184
    %v214 = vmul.f32 %v144, %v184
    %v215 = vmul.f32 %v145, %v184
    %v216 = vmul.f32 %v146, %v184
    %v217 = vmul.f32 %v147, %v184
    %v218 = vmul.f32 %v148, %v184
    %v219 = vmul.f32 %v149, %v184
    %v220 = vmul.f32 %v150, %v184
    %v221 = vmul.f32 %v151, %v184
    %v222 = vmul.f32 %v152, %v184
    %v223 = vmul.f32 %v153, %v184
    %v224 = vmul.f32 %v154, %v184
    %v225 = vmul.f32 %v155, %v184
    %v226 = vmul.f32 %v156, %v184
    %v227 = vmul.f32 %v157, %v184
    %v228 = vmul.f32 %v158, %v184
    %v229 = vmul.f32 %v159, %v184
    %v230 = vmul.f32 %v160, %v184
    %v231 = vmul.f32 %v161, %v184
    %v232 = vmul.f32 %v162, %v184
    %v233 = vmul.f32 %v163, %v184
    %v234 = vmul.f32 %v164, %v184
    %v235 = vmul.f32 %v165, %v184
    %v236 = vmul.f32 %v166, %v184
    %v237 = vmul.f32 %v167, %v184
    %v238 = vmul.f32 %v168, %v184
    %v239 = vmul.f32 %v169, %v184
    %v240 = vmul.f32 %v170, %v184
    %v241 = vmul.f32 %v171, %v184
    %v242 = vmul.f32 %v172, %v184
    %v243 = vmul.f32 %v173, %v184
    %v244 = vmul.f32 %v174, %v184
    %v245 = vmul.f32 %v175, %v184
    %v246 = vmul.f32 %v176, %v184
    %v247 = vmul.f32 %v177, %v184
    %v248 = vmul.f32 %v178, %v184
    %v249 = vmul.f32 %v179, %v184
    %v251 = vlaneseq
    %v252 = vshrl.u32 %v251, 7
    %v253 = vsub.s32 0, %v252
    %v254 = vrot.slane %v51, %v253
    %v256 = vadd.f32 %v186, %v254
    %v257 = vadd.f32 %v187, %v254
    %v258 = vadd.f32 %v188, %v254
    %v259 = vadd.f32 %v189, %v254
    %v260 = vadd.f32 %v190, %v254
    %v261 = vadd.f32 %v191, %v254
    %v262 = vadd.f32 %v192, %v254
    %v263 = vadd.f32 %v193, %v254
    %v264 = vadd.f32 %v194, %v254
    %v265 = vadd.f32 %v195, %v254
    %v266 = vadd.f32 %v196, %v254
    %v267 = vadd.f32 %v197, %v254
    %v268 = vadd.f32 %v198, %v254
    %v269 = vadd.f32 %v199, %v254
    %v270 = vadd.f32 %v200, %v254
    %v271 = vadd.f32 %v201, %v254
    %v272 = vadd.f32 %v202, %v254
    %v273 = vadd.f32 %v203, %v254
    %v274 = vadd.f32 %v204, %v254
    %v275 = vadd.f32 %v205, %v254
    %v276 = vadd.f32 %v206, %v254
    %v277 = vadd.f32 %v207, %v254
    %v278 = vadd.f32 %v208, %v254
    %v279 = vadd.f32 %v209, %v254
    %v280 = vadd.f32 %v210, %v254
    %v281 = vadd.f32 %v211, %v254
    %v282 = vadd.f32 %v212, %v254
    %v283 = vadd.f32 %v213, %v254
    %v284 = vadd.f32 %v214, %v254
    %v285 = vadd.f32 %v215, %v254
    %v286 = vadd.f32 %v216, %v254
    %v287 = vadd.f32 %v217, %v254
    %v288 = vadd.f32 %v218, %v254
    %v289 = vadd.f32 %v219, %v254
    %v290 = vadd.f32 %v220, %v254
    %v291 = vadd.f32 %v221, %v254
    %v292 = vadd.f32 %v222, %v254
    %v293 = vadd.f32 %v223, %v254
    %v294 = vadd.f32 %v224, %v254
    %v295 = vadd.f32 %v225, %v254
    %v296 = vadd.f32 %v226, %v254
    %v297 = vadd.f32 %v227, %v254
    %v298 = vadd.f32 %v228, %v254
    %v299 = vadd.f32 %v229, %v254
    %v300 = vadd.f32 %v230, %v254
    %v301 = vadd.f32 %v231, %v254
    %v302 = vadd.f32 %v232, %v254
    %v303 = vadd.f32 %v233, %v254
    %v304 = vadd.f32 %v234, %v254
    %v305 = vadd.f32 %v235, %v254
    %v306 = vadd.f32 %v236, %v254
    %v307 = vadd.f32 %v237, %v254
    %v308 = vadd.f32 %v238, %v254
    %v309 = vadd.f32 %v239, %v254
    %v310 = vadd.f32 %v240, %v254
    %v311 = vadd.f32 %v241, %v254
    %v312 = vadd.f32 %v242, %v254
    %v313 = vadd.f32 %v243, %v254
    %v314 = vadd.f32 %v244, %v254
    %v315 = vadd.f32 %v245, %v254
    %v316 = vadd.f32 %v246, %v254
    %v317 = vadd.f32 %v247, %v254
    %v318 = vadd.f32 %v248, %v254
    %v319 = vadd.f32 %v249, %v254
    %v320 = vld [vmem:[%s4] sm:$0xff]
    %v321 = vld [vmem:[%s4 + $0x8] sm:$0xff]
    %v322 = vld [vmem:[%s4 + $0x10] sm:$0xff]
    %v323 = vld [vmem:[%s4 + $0x18] sm:$0xff]
    %v324 = vld [vmem:[%s4 + $0x20] sm:$0xff]
    %v325 = vld [vmem:[%s4 + $0x28] sm:$0xff]
    %v326 = vld [vmem:[%s4 + $0x30] sm:$0xff]
    %v327 = vld [vmem:[%s4 + $0x38] sm:$0xff]
    %v328 = vld [vmem:[%s4 + $0x40] sm:$0xff]
    %v329 = vld [vmem:[%s4 + $0x48] sm:$0xff]
    %v330 = vld [vmem:[%s4 + $0x50] sm:$0xff]
    %v331 = vld [vmem:[%s4 + $0x58] sm:$0xff]
    %v332 = vld [vmem:[%s4 + $0x60] sm:$0xff]
    %v333 = vld [vmem:[%s4 + $0x68] sm:$0xff]
    %v334 = vld [vmem:[%s4 + $0x70] sm:$0xff]
    %v335 = vld [vmem:[%s4 + $0x78] sm:$0xff]
    %v336 = vld [vmem:[%s4 + $0x80] sm:$0xff]
    %v337 = vld [vmem:[%s4 + $0x88] sm:$0xff]
    %v338 = vld [vmem:[%s4 + $0x90] sm:$0xff]
    %v339 = vld [vmem:[%s4 + $0x98] sm:$0xff]
    %v340 = vld [vmem:[%s4 + $0xa0] sm:$0xff]
    %v341 = vld [vmem:[%s4 + $0xa8] sm:$0xff]
    %v342 = vld [vmem:[%s4 + $0xb0] sm:$0xff]
    %v343 = vld [vmem:[%s4 + $0xb8] sm:$0xff]
    %v344 = vld [vmem:[%s4 + $0xc0] sm:$0xff]
    %v345 = vld [vmem:[%s4 + $0xc8] sm:$0xff]
    %v346 = vld [vmem:[%s4 + $0xd0] sm:$0xff]
    %v347 = vld [vmem:[%s4 + $0xd8] sm:$0xff]
    %v348 = vld [vmem:[%s4 + $0xe0] sm:$0xff]
    %v349 = vld [vmem:[%s4 + $0xe8] sm:$0xff]
    %v350 = vld [vmem:[%s4 + $0xf0] sm:$0xff]
    %v351 = vld [vmem:[%s4 + $0xf8] sm:$0xff]
    %v352 = vld [vmem:[%s4 + $0x100] sm:$0xff]
    %v353 = vld [vmem:[%s4 + $0x108] sm:$0xff]
    %v354 = vld [vmem:[%s4 + $0x110] sm:$0xff]
    %v355 = vld [vmem:[%s4 + $0x118] sm:$0xff]
    %v356 = vld [vmem:[%s4 + $0x120] sm:$0xff]
    %v357 = vld [vmem:[%s4 + $0x128] sm:$0xff]
    %v358 = vld [vmem:[%s4 + $0x130] sm:$0xff]
    %v359 = vld [vmem:[%s4 + $0x138] sm:$0xff]
    %v360 = vld [vmem:[%s4 + $0x140] sm:$0xff]
    %v361 = vld [vmem:[%s4 + $0x148] sm:$0xff]
    %v362 = vld [vmem:[%s4 + $0x150] sm:$0xff]
    %v363 = vld [vmem:[%s4 + $0x158] sm:$0xff]
    %v364 = vld [vmem:[%s4 + $0x160] sm:$0xff]
    %v365 = vld [vmem:[%s4 + $0x168] sm:$0xff]
    %v366 = vld [vmem:[%s4 + $0x170] sm:$0xff]
    %v367 = vld [vmem:[%s4 + $0x178] sm:$0xff]
    %v368 = vld [vmem:[%s4 + $0x180] sm:$0xff]
    %v369 = vld [vmem:[%s4 + $0x188] sm:$0xff]
    %v370 = vld [vmem:[%s4 + $0x190] sm:$0xff]
    %v371 = vld [vmem:[%s4 + $0x198] sm:$0xff]
    %v372 = vld [vmem:[%s4 + $0x1a0] sm:$0xff]
    %v373 = vld [vmem:[%s4 + $0x1a8] sm:$0xff]
    %v374 = vld [vmem:[%s4 + $0x1b0] sm:$0xff]
    %v375 = vld [vmem:[%s4 + $0x1b8] sm:$0xff]
    %v376 = vld [vmem:[%s4 + $0x1c0] sm:$0xff]
    %v377 = vld [vmem:[%s4 + $0x1c8] sm:$0xff]
    %v378 = vld [vmem:[%s4 + $0x1d0] sm:$0xff]
    %v379 = vld [vmem:[%s4 + $0x1d8] sm:$0xff]
    %v380 = vld [vmem:[%s4 + $0x1e0] sm:$0xff]
    %v381 = vld [vmem:[%s4 + $0x1e8] sm:$0xff]
    %v382 = vld [vmem:[%s4 + $0x1f0] sm:$0xff]
    %v383 = vld [vmem:[%s4 + $0x1f8] sm:$0xff]
    %v384 = vadd.f32 %v256, %v320
    %v385 = vadd.f32 %v257, %v321
    %v386 = vadd.f32 %v258, %v322
    %v387 = vadd.f32 %v259, %v323
    %v388 = vadd.f32 %v260, %v324
    %v389 = vadd.f32 %v261, %v325
    %v390 = vadd.f32 %v262, %v326
    %v391 = vadd.f32 %v263, %v327
    %v392 = vadd.f32 %v264, %v328
    %v393 = vadd.f32 %v265, %v329
    %v394 = vadd.f32 %v266, %v330
    %v395 = vadd.f32 %v267, %v331
    %v396 = vadd.f32 %v268, %v332
    %v397 = vadd.f32 %v269, %v333
    %v398 = vadd.f32 %v270, %v334
    %v399 = vadd.f32 %v271, %v335
    %v400 = vadd.f32 %v272, %v336
    %v401 = vadd.f32 %v273, %v337
    %v402 = vadd.f32 %v274, %v338
    %v403 = vadd.f32 %v275, %v339
    %v404 = vadd.f32 %v276, %v340
    %v405 = vadd.f32 %v277, %v341
    %v406 = vadd.f32 %v278, %v342
    %v407 = vadd.f32 %v279, %v343
    %v408 = vadd.f32 %v280, %v344
    %v409 = vadd.f32 %v281, %v345
    %v410 = vadd.f32 %v282, %v346
    %v411 = vadd.f32 %v283, %v347
    %v412 = vadd.f32 %v284, %v348
    %v413 = vadd.f32 %v285, %v349
    %v414 = vadd.f32 %v286, %v350
    %v415 = vadd.f32 %v287, %v351
    %v416 = vadd.f32 %v288, %v352
    %v417 = vadd.f32 %v289, %v353
    %v418 = vadd.f32 %v290, %v354
    %v419 = vadd.f32 %v291, %v355
    %v420 = vadd.f32 %v292, %v356
    %v421 = vadd.f32 %v293, %v357
    %v422 = vadd.f32 %v294, %v358
    %v423 = vadd.f32 %v295, %v359
    %v424 = vadd.f32 %v296, %v360
    %v425 = vadd.f32 %v297, %v361
    %v426 = vadd.f32 %v298, %v362
    %v427 = vadd.f32 %v299, %v363
    %v428 = vadd.f32 %v300, %v364
    %v429 = vadd.f32 %v301, %v365
    %v430 = vadd.f32 %v302, %v366
    %v431 = vadd.f32 %v303, %v367
    %v432 = vadd.f32 %v304, %v368
    %v433 = vadd.f32 %v305, %v369
    %v434 = vadd.f32 %v306, %v370
    %v435 = vadd.f32 %v307, %v371
    %v436 = vadd.f32 %v308, %v372
    %v437 = vadd.f32 %v309, %v373
    %v438 = vadd.f32 %v310, %v374
    %v439 = vadd.f32 %v311, %v375
    %v440 = vadd.f32 %v312, %v376
    %v441 = vadd.f32 %v313, %v377
    %v442 = vadd.f32 %v314, %v378
    %v443 = vadd.f32 %v315, %v379
    %v444 = vadd.f32 %v316, %v380
    %v445 = vadd.f32 %v317, %v381
    %v446 = vadd.f32 %v318, %v382
    %v447 = vadd.f32 %v319, %v383
    %v448 = vmax.f32 %v384, 0.0
    %v449 = vmax.f32 %v385, 0.0
    %v450 = vmax.f32 %v386, 0.0
    %v451 = vmax.f32 %v387, 0.0
    %v452 = vmax.f32 %v388, 0.0
    %v453 = vmax.f32 %v389, 0.0
    %v454 = vmax.f32 %v390, 0.0
    %v455 = vmax.f32 %v391, 0.0
    %v456 = vmax.f32 %v392, 0.0
    %v457 = vmax.f32 %v393, 0.0
    %v458 = vmax.f32 %v394, 0.0
    %v459 = vmax.f32 %v395, 0.0
    %v460 = vmax.f32 %v396, 0.0
    %v461 = vmax.f32 %v397, 0.0
    %v462 = vmax.f32 %v398, 0.0
    %v463 = vmax.f32 %v399, 0.0
    %v464 = vmax.f32 %v400, 0.0
    %v465 = vmax.f32 %v401, 0.0
    %v466 = vmax.f32 %v402, 0.0
    %v467 = vmax.f32 %v403, 0.0
    %v468 = vmax.f32 %v404, 0.0
    %v469 = vmax.f32 %v405, 0.0
    %v470 = vmax.f32 %v406, 0.0
    %v471 = vmax.f32 %v407, 0.0
    %v472 = vmax.f32 %v408, 0.0
    %v473 = vmax.f32 %v409, 0.0
    %v474 = vmax.f32 %v410, 0.0
    %v475 = vmax.f32 %v411, 0.0
    %v476 = vmax.f32 %v412, 0.0
    %v477 = vmax.f32 %v413, 0.0
    %v478 = vmax.f32 %v414, 0.0
    %v479 = vmax.f32 %v415, 0.0
    %v480 = vmax.f32 %v416, 0.0
    %v481 = vmax.f32 %v417, 0.0
    %v482 = vmax.f32 %v418, 0.0
    %v483 = vmax.f32 %v419, 0.0
    %v484 = vmax.f32 %v420, 0.0
    %v485 = vmax.f32 %v421, 0.0
    %v486 = vmax.f32 %v422, 0.0
    %v487 = vmax.f32 %v423, 0.0
    %v488 = vmax.f32 %v424, 0.0
    %v489 = vmax.f32 %v425, 0.0
    %v490 = vmax.f32 %v426, 0.0
    %v491 = vmax.f32 %v427, 0.0
    %v492 = vmax.f32 %v428, 0.0
    %v493 = vmax.f32 %v429, 0.0
    %v494 = vmax.f32 %v430, 0.0
    %v495 = vmax.f32 %v431, 0.0
    %v496 = vmax.f32 %v432, 0.0
    %v497 = vmax.f32 %v433, 0.0
    %v498 = vmax.f32 %v434, 0.0
    %v499 = vmax.f32 %v435, 0.0
    %v500 = vmax.f32 %v436, 0.0
    %v501 = vmax.f32 %v437, 0.0
    %v502 = vmax.f32 %v438, 0.0
    %v503 = vmax.f32 %v439, 0.0
    %v504 = vmax.f32 %v440, 0.0
    %v505 = vmax.f32 %v441, 0.0
    %v506 = vmax.f32 %v442, 0.0
    %v507 = vmax.f32 %v443, 0.0
    %v508 = vmax.f32 %v444, 0.0
    %v509 = vmax.f32 %v445, 0.0
    %v510 = vmax.f32 %v446, 0.0
    %v511 = vmax.f32 %v447, 0.0
    %512 = vst [vmem:[#allocation2] sm:$0xff] %v448
    %513 = vst [vmem:[#allocation2 + $0x8] sm:$0xff] %v449
    %514 = vst [vmem:[#allocation2 + $0x10] sm:$0xff] %v450
    %515 = vst [vmem:[#allocation2 + $0x18] sm:$0xff] %v451
    %516 = vst [vmem:[#allocation2 + $0x20] sm:$0xff] %v452
    %517 = vst [vmem:[#allocation2 + $0x28] sm:$0xff] %v453
    %518 = vst [vmem:[#allocation2 + $0x30] sm:$0xff] %v454
    %519 = vst [vmem:[#allocation2 + $0x38] sm:$0xff] %v455
    %520 = vst [vmem:[#allocation2 + $0x40] sm:$0xff] %v456
    %521 = vst [vmem:[#allocation2 + $0x48] sm:$0xff] %v457
    %522 = vst [vmem:[#allocation2 + $0x50] sm:$0xff] %v458
    %523 = vst [vmem:[#allocation2 + $0x58] sm:$0xff] %v459
    %524 = vst [vmem:[#allocation2 + $0x60] sm:$0xff] %v460
    %525 = vst [vmem:[#allocation2 + $0x68] sm:$0xff] %v461
    %526 = vst [vmem:[#allocation2 + $0x70] sm:$0xff] %v462
    %527 = vst [vmem:[#allocation2 + $0x78] sm:$0xff] %v463
    %528 = vst [vmem:[#allocation2 + $0x80] sm:$0xff] %v464
    %529 = vst [vmem:[#allocation2 + $0x88] sm:$0xff] %v465
    %530 = vst [vmem:[#allocation2 + $0x90] sm:$0xff] %v466
    %531 = vst [vmem:[#allocation2 + $0x98] sm:$0xff] %v467
    %532 = vst [vmem:[#allocation2 + $0xa0] sm:$0xff] %v468
    %533 = vst [vmem:[#allocation2 + $0xa8] sm:$0xff] %v469
    %534 = vst [vmem:[#allocation2 + $0xb0] sm:$0xff] %v470
    %535 = vst [vmem:[#allocation2 + $0xb8] sm:$0xff] %v471
    %536 = vst [vmem:[#allocation2 + $0xc0] sm:$0xff] %v472
    %537 = vst [vmem:[#allocation2 + $0xc8] sm:$0xff] %v473
    %538 = vst [vmem:[#allocation2 + $0xd0] sm:$0xff] %v474
    %539 = vst [vmem:[#allocation2 + $0xd8] sm:$0xff] %v475
    %540 = vst [vmem:[#allocation2 + $0xe0] sm:$0xff] %v476
    %541 = vst [vmem:[#allocation2 + $0xe8] sm:$0xff] %v477
    %542 = vst [vmem:[#allocation2 + $0xf0] sm:$0xff] %v478
    %543 = vst [vmem:[#allocation2 + $0xf8] sm:$0xff] %v479
    %544 = vst [vmem:[#allocation2 + $0x100] sm:$0xff] %v480
    %545 = vst [vmem:[#allocation2 + $0x108] sm:$0xff] %v481
    %546 = vst [vmem:[#allocation2 + $0x110] sm:$0xff] %v482
    %547 = vst [vmem:[#allocation2 + $0x118] sm:$0xff] %v483
    %548 = vst [vmem:[#allocation2 + $0x120] sm:$0xff] %v484
    %549 = vst [vmem:[#allocation2 + $0x128] sm:$0xff] %v485
    %550 = vst [vmem:[#allocation2 + $0x130] sm:$0xff] %v486
    %551 = vst [vmem:[#allocation2 + $0x138] sm:$0xff] %v487
    %552 = vst [vmem:[#allocation2 + $0x140] sm:$0xff] %v488
    %553 = vst [vmem:[#allocation2 + $0x148] sm:$0xff] %v489
    %554 = vst [vmem:[#allocation2 + $0x150] sm:$0xff] %v490
    %555 = vst [vmem:[#allocation2 + $0x158] sm:$0xff] %v491
    %556 = vst [vmem:[#allocation2 + $0x160] sm:$0xff] %v492
    %557 = vst [vmem:[#allocation2 + $0x168] sm:$0xff] %v493
    %558 = vst [vmem:[#allocation2 + $0x170] sm:$0xff] %v494
    %559 = vst [vmem:[#allocation2 + $0x178] sm:$0xff] %v495
    %560 = vst [vmem:[#allocation2 + $0x180] sm:$0xff] %v496
    %561 = vst [vmem:[#allocation2 + $0x188] sm:$0xff] %v497
    %562 = vst [vmem:[#allocation2 + $0x190] sm:$0xff] %v498
    %563 = vst [vmem:[#allocation2 + $0x198] sm:$0xff] %v499
    %564 = vst [vmem:[#allocation2 + $0x1a0] sm:$0xff] %v500
    %565 = vst [vmem:[#allocation2 + $0x1a8] sm:$0xff] %v501
    %566 = vst [vmem:[#allocation2 + $0x1b0] sm:$0xff] %v502
    %567 = vst [vmem:[#allocation2 + $0x1b8] sm:$0xff] %v503
    %568 = vst [vmem:[#allocation2 + $0x1c0] sm:$0xff] %v504
    %569 = vst [vmem:[#allocation2 + $0x1c8] sm:$0xff] %v505
    %570 = vst [vmem:[#allocation2 + $0x1d0] sm:$0xff] %v506
    %571 = vst [vmem:[#allocation2 + $0x1d8] sm:$0xff] %v507
    %572 = vst [vmem:[#allocation2 + $0x1e0] sm:$0xff] %v508
    %573 = vst [vmem:[#allocation2 + $0x1e8] sm:$0xff] %v509
    %574 = vst [vmem:[#allocation2 + $0x1f0] sm:$0xff] %v510
    %575 = vst [vmem:[#allocation2 + $0x1f8] sm:$0xff] %v511
    // Predicated region
    $region22: #{bottleneck_forward.7} parent=1 // pred_check
      _
    $region23: #{bottleneck_forward.7} parent=1 // pred_check_branch
      %577 = sbr.rel (0) target = $region25
    $region24: #{bottleneck_forward.7} parent=1 // pred_region
      %s579 = ssub.s32 8192, 8192
      %580 = vsyncadd [#allocation3], %s579
      %s581 = sshll.u32 [#allocation2], 4
      %s582 = int_to_ptr.vmem [resolvable:$true] %s581
      %587 = dma.vmem_to_hbm [thread:$0]  %s582, 8192, %s5, [#allocation3], 128, 128, 8
    $region25: #{bottleneck_forward.7} parent=1 // pred_fallthru
      _
    // Predicated region
    $region26: #{bottleneck_forward.7} parent=1 // pred_check
      _
    $region27: #{bottleneck_forward.7} parent=1 // pred_check_branch
      %589 = sbr.rel (0) target = $region29
    $region28: #{bottleneck_forward.7} parent=1 // pred_region
      %590 = dma.done [#allocation3], 8192
    $region29: #{bottleneck_forward.7} parent=1 // pred_fallthru
      _
    %591 = vsyncpa [#allocation3], 1

// kernel: bottleneck_forward.5
$region0: #{bottleneck_forward.5}
  #allocation0 [shape = 'u32[]', space=smem, size = 0x4, offset = 0x4, fixed_abs, tag = 'smem constant byte address 0x4 - core index']
  #allocation1 [shape = 'u32[144,128]{1,0:T(1,128)}', space=vmem, size = 0x12000, scoped, tag = 'internal scratch']
  %s0 = inlined_call_operand.vmem [shape: bf16[512,32], index: 0, kind: input, shape index: {}]
  %s1 = inlined_call_operand.vmem [shape: f32[2,32], index: 1, kind: input, shape index: {}]
  %s2 = inlined_call_operand.vmem [shape: f32[1,32], index: 2, kind: input, shape index: {}]
  %s3 = inlined_call_operand.vmem [shape: f32[1,32], index: 3, kind: input, shape index: {}]
  %s4 = inlined_call_operand.vmem [shape: bf16[288,32], index: 4, kind: input, shape index: {}]
  %s5 = inlined_call_operand.vmem [shape: bf16[512,32], index: 5, kind: output, shape index: {0}]
  %s6 = inlined_call_operand.vmem [shape: f32[2,32], index: 6, kind: output, shape index: {1}]
  %7 = xla_tuple %s5, %s6
  %s8 = sld [smem:[#allocation0]]
  $region65: #{bottleneck_forward.5} parent=0
    _
  %s10 = ssub.s32 1, %s8
  %s11 = scalar_select 0, %s10, %s8
  loop: start=0, step=1, limit=4
  $region2: #{bottleneck_forward.5} parent=0 // loop_pre_header
    _
  $region3: #{bottleneck_forward.5} parent=0 // loop_header
    %s13 = sphi 0, %s17
    %p14 = scmp.ge.s32.totalorder %s13, 4
    %s23 = sphi 0, %s25
    %s26 = sphi 0, %s23
    %s27 = sphi 0, %s26
    %s43 = sphi 0, %s27
    %s47 = sphi 0, %s47
    %s49 = sphi 0, %s47
    %s50 = sphi 0, %s49
    %s64 = sphi 0, %s50
    %s68 = sphi 0, %s68
    %s70 = sphi 0, %s68
    %s71 = sphi 0, %s70
    %s85 = sphi 0, %s71
    %s89 = sphi 0, %s89
    %s91 = sphi 0, %s89
    %s92 = sphi 0, %s91
    %s106 = sphi 0, %s92
    %s110 = sphi 0, %s110
    %s112 = sphi 0, %s110
    %s113 = sphi 0, %s112
    %s127 = sphi 0, %s113
    %s133 = sphi 0, %s135
    %s136 = sphi 0, %s133
    %s137 = sphi 0, %s136
    %s153 = sphi 0, %s137
    %s157 = sphi 0, %s157
    %s159 = sphi 0, %s157
    %s160 = sphi 0, %s159
    %s174 = sphi 0, %s160
  $region4: #{bottleneck_forward.5} parent=0 // loop_header_branch
    %16 = sbr.rel (%p14) target = $region8
  $region5: #{bottleneck_forward.5} parent=0 // loop_body
    %s18 = ssub.s32 %s13, 1
    %s19 = ssub.s32 %s13, 2
    %s20 = sadd.s32 %s13, 1
    %s21 = ssub.s32 %s13, %s20
    %p22 = scmp.eq.s32.totalorder %s21, 0
    %s24 = sadd.s32 %s23, 1
    %s25 = scalar_select %p22, %s23, %s24
    %p28 = pneg %p22
    %p29 = scmp.eq.s32.totalorder %s13, 1
    %p30 = por %p28, %p29
    %p31 = scmp.ne.s32.totalorder %s23, %s26
    %p32 = scmp.eq.s32.totalorder %s13, 0
    %p33 = por %p31, %p32
    %p34 = scmp.ne.s32.totalorder %s23, %s26
    %p35 = scmp.eq.s32.totalorder %s18, 1
    %p36 = por %p34, %p35
    %p37 = scmp.ne.s32.totalorder %s26, %s27
    %p38 = scmp.eq.s32.totalorder %s18, 0
    %p39 = por %p37, %p38
    %p40 = scmp.ne.s32.totalorder %s26, %s27
    %p41 = scmp.eq.s32.totalorder %s19, 1
    %p42 = por %p40, %p41
    %p44 = scmp.ne.s32.totalorder %s27, %s43
    %p45 = scmp.eq.s32.totalorder %s19, 0
    %p46 = por %p44, %p45
    %s48 = sadd.s32 %s47, 1
    %p51 = scmp.eq.s32.totalorder %s13, 1
    %p52 = scmp.ne.s32.totalorder %s47, %s49
    %p53 = scmp.eq.s32.totalorder %s13, 0
    %p54 = por %p52, %p53
    %p55 = scmp.ne.s32.totalorder %s47, %s49
    %p56 = scmp.eq.s32.totalorder %s18, 1
    %p57 = por %p55, %p56
    %p58 = scmp.ne.s32.totalorder %s49, %s50
    %p59 = scmp.eq.s32.totalorder %s18, 0
    %p60 = por %p58, %p59
    %p61 = scmp.ne.s32.totalorder %s49, %s50
    %p62 = scmp.eq.s32.totalorder %s19, 1
    %p63 = por %p61, %p62
    %p65 = scmp.ne.s32.totalorder %s50, %s64
    %p66 = scmp.eq.s32.totalorder %s19, 0
    %p67 = por %p65, %p66
    %s69 = sadd.s32 %s68, 1
    %p72 = scmp.eq.s32.totalorder %s13, 1
    %p73 = scmp.ne.s32.totalorder %s68, %s70
    %p74 = scmp.eq.s32.totalorder %s13, 0
    %p75 = por %p73, %p74
    %p76 = scmp.ne.s32.totalorder %s68, %s70
    %p77 = scmp.eq.s32.totalorder %s18, 1
    %p78 = por %p76, %p77
    %p79 = scmp.ne.s32.totalorder %s70, %s71
    %p80 = scmp.eq.s32.totalorder %s18, 0
    %p81 = por %p79, %p80
    %p82 = scmp.ne.s32.totalorder %s70, %s71
    %p83 = scmp.eq.s32.totalorder %s19, 1
    %p84 = por %p82, %p83
    %p86 = scmp.ne.s32.totalorder %s71, %s85
    %p87 = scmp.eq.s32.totalorder %s19, 0
    %p88 = por %p86, %p87
    %s90 = sadd.s32 %s89, 1
    %p93 = scmp.eq.s32.totalorder %s13, 1
    %p94 = scmp.ne.s32.totalorder %s89, %s91
    %p95 = scmp.eq.s32.totalorder %s13, 0
    %p96 = por %p94, %p95
    %p97 = scmp.ne.s32.totalorder %s89, %s91
    %p98 = scmp.eq.s32.totalorder %s18, 1
    %p99 = por %p97, %p98
    %p100 = scmp.ne.s32.totalorder %s91, %s92
    %p101 = scmp.eq.s32.totalorder %s18, 0
    %p102 = por %p100, %p101
    %p103 = scmp.ne.s32.totalorder %s91, %s92
    %p104 = scmp.eq.s32.totalorder %s19, 1
    %p105 = por %p103, %p104
    %p107 = scmp.ne.s32.totalorder %s92, %s106
    %p108 = scmp.eq.s32.totalorder %s19, 0
    %p109 = por %p107, %p108
    %s111 = sadd.s32 %s110, 1
    %p114 = scmp.eq.s32.totalorder %s13, 1
    %p115 = scmp.ne.s32.totalorder %s110, %s112
    %p116 = scmp.eq.s32.totalorder %s13, 0
    %p117 = por %p115, %p116
    %p118 = scmp.ne.s32.totalorder %s110, %s112
    %p119 = scmp.eq.s32.totalorder %s18, 1
    %p120 = por %p118, %p119
    %p121 = scmp.ne.s32.totalorder %s112, %s113
    %p122 = scmp.eq.s32.totalorder %s18, 0
    %p123 = por %p121, %p122
    %p124 = scmp.ne.s32.totalorder %s112, %s113
    %p125 = scmp.eq.s32.totalorder %s19, 1
    %p126 = por %p124, %p125
    %p128 = scmp.ne.s32.totalorder %s113, %s127
    %p129 = scmp.eq.s32.totalorder %s19, 0
    %p130 = por %p128, %p129
    %s131 = ssub.s32 %s13, %s20
    %p132 = scmp.eq.s32.totalorder %s131, 0
    %s134 = sadd.s32 %s133, 1
    %s135 = scalar_select %p132, %s133, %s134
    %p138 = pneg %p132
    %p139 = scmp.eq.s32.totalorder %s13, 1
    %p140 = por %p138, %p139
    %p141 = scmp.ne.s32.totalorder %s133, %s136
    %p142 = scmp.eq.s32.totalorder %s13, 0
    %p143 = por %p141, %p142
    %p144 = scmp.ne.s32.totalorder %s133, %s136
    %p145 = scmp.eq.s32.totalorder %s18, 1
    %p146 = por %p144, %p145
    %p147 = scmp.ne.s32.totalorder %s136, %s137
    %p148 = scmp.eq.s32.totalorder %s18, 0
    %p149 = por %p147, %p148
    %p150 = scmp.ne.s32.totalorder %s136, %s137
    %p151 = scmp.eq.s32.totalorder %s19, 1
    %p152 = por %p150, %p151
    %p154 = scmp.ne.s32.totalorder %s137, %s153
    %p155 = scmp.eq.s32.totalorder %s19, 0
    %p156 = por %p154, %p155
    %s158 = sadd.s32 %s157, 1
    %p161 = scmp.eq.s32.totalorder %s13, 1
    %p162 = scmp.ne.s32.totalorder %s157, %s159
    %p163 = scmp.eq.s32.totalorder %s13, 0
    %p164 = por %p162, %p163
    %p165 = scmp.ne.s32.totalorder %s157, %s159
    %p166 = scmp.eq.s32.totalorder %s18, 1
    %p167 = por %p165, %p166
    %p168 = scmp.ne.s32.totalorder %s159, %s160
    %p169 = scmp.eq.s32.totalorder %s18, 0
    %p170 = por %p168, %p169
    %p171 = scmp.ne.s32.totalorder %s159, %s160
    %p172 = scmp.eq.s32.totalorder %s19, 1
    %p173 = por %p171, %p172
    %p175 = scmp.ne.s32.totalorder %s160, %s174
    %p176 = scmp.eq.s32.totalorder %s19, 0
    %p177 = por %p175, %p176
    %p178 = scmp.le.s32.totalorder 1, %s13
    %p179 = scmp.lt.s32.totalorder %s13, 3
    %p180 = pnand %p178, %p179
    %p181 = pneg %p180
    // Predicated region
    $region9: #{bottleneck_forward.5} parent=5 // pred_check
      _
    $region10: #{bottleneck_forward.5} parent=5 // pred_check_branch
      %183 = sbr.rel (%p180) target = $region12
    $region11: #{bottleneck_forward.5} parent=5 // pred_region
      %s184 = ssub.s32 %s13, 1
      // Predicated region
      $region13: #{bottleneck_forward.5} parent=11 // pred_check
        %p185 = pneg %p60
      $region14: #{bottleneck_forward.5} parent=11 // pred_check_branch
        %187 = sbr.rel (%p185) target = $region16
      $region15: #{bottleneck_forward.5} parent=11 // pred_region
        _
      $region16: #{bottleneck_forward.5} parent=11 // pred_fallthru
        _
      // Predicated region
      $region17: #{bottleneck_forward.5} parent=11 // pred_check
        %p188 = pneg %p81
      $region18: #{bottleneck_forward.5} parent=11 // pred_check_branch
        %190 = sbr.rel (%p188) target = $region20
      $region19: #{bottleneck_forward.5} parent=11 // pred_region
        _
      $region20: #{bottleneck_forward.5} parent=11 // pred_fallthru
        _
      // Predicated region
      $region21: #{bottleneck_forward.5} parent=11 // pred_check
        %p191 = pneg %p102
      $region22: #{bottleneck_forward.5} parent=11 // pred_check_branch
        %193 = sbr.rel (%p191) target = $region24
      $region23: #{bottleneck_forward.5} parent=11 // pred_region
        _
      $region24: #{bottleneck_forward.5} parent=11 // pred_fallthru
        _
      // Predicated region
      $region25: #{bottleneck_forward.5} parent=11 // pred_check
        %p194 = pneg %p123
      $region26: #{bottleneck_forward.5} parent=11 // pred_check_branch
        %196 = sbr.rel (%p194) target = $region28
      $region27: #{bottleneck_forward.5} parent=11 // pred_region
        _
      $region28: #{bottleneck_forward.5} parent=11 // pred_fallthru
        _
    $region12: #{bottleneck_forward.5} parent=5 // pred_fallthru
      _
    %p197 = scmp.lt.s32.totalorder %s13, 2
    // Predicated region
    $region29: #{bottleneck_forward.5} parent=5 // pred_check
      %p198 = pneg %p197
    $region30: #{bottleneck_forward.5} parent=5 // pred_check_branch
      %200 = sbr.rel (%p198) target = $region32
    $region31: #{bottleneck_forward.5} parent=5 // pred_region
      // Predicated region
      $region33: #{bottleneck_forward.5} parent=31 // pred_check
        %p201 = pneg %p33
      $region34: #{bottleneck_forward.5} parent=31 // pred_check_branch
        %203 = sbr.rel (%p201) target = $region36
      $region35: #{bottleneck_forward.5} parent=31 // pred_region
        %s204 = smul.u32 32, %s13
        %p205 = scmp.lt.s32.totalorder %s204, 63
        %s206 = scalar_select %p205, %s204, 63
        %s207 = smul.addr %s206, 4
        %s208 = scalar_lea.vmem %s0, %s207
        %s209 = smul.u32 32, %s13
      $region36: #{bottleneck_forward.5} parent=31 // pred_fallthru
        _
    $region32: #{bottleneck_forward.5} parent=5 // pred_fallthru
      _
    %p210 = scmp.le.s32.totalorder 1, %s13
    %p211 = scmp.lt.s32.totalorder %s13, 3
    %p212 = pnand %p210, %p211
    %p213 = pneg %p212
    // Predicated region
    $region37: #{bottleneck_forward.5} parent=5 // pred_check
      _
    $region38: #{bottleneck_forward.5} parent=5 // pred_check_branch
      %215 = sbr.rel (%p212) target = $region40
    $region39: #{bottleneck_forward.5} parent=5 // pred_region
      %s216 = ssub.s32 %s13, 1
      %s217 = smul.u32 32, %s18
      %p218 = scmp.lt.s32.totalorder %s217, 63
      %s219 = scalar_select %p218, %s217, 63
      %s220 = smul.addr %s219, 4
      %s221 = scalar_lea.vmem %s0, %s220
      %p222 = pneg %p39
      %p223 = pneg %p36
      %p224 = pneg %p60
      %p225 = pneg %p57
      %p226 = pneg %p81
      %p227 = pneg %p78
      %p228 = pneg %p102
      %p229 = pneg %p99
      %p230 = pneg %p123
      %p231 = pneg %p120
      %p232 = pneg %p149
      %p233 = pneg %p146
      %s234 = smul.u32 32, %s18
      %p235 = scmp.lt.s32.totalorder %s234, 63
      %s236 = scalar_select %p235, %s234, 63
      %s237 = smul.addr %s236, 4
      %s238 = scalar_lea.vmem %s5, %s237
      %p239 = pneg %p170
      %p240 = pneg %p167
      %s241 = smul.u32 32, %s18
      %p242 = scmp.lt.s32.totalorder %s241, 63
      %s243 = scalar_select %p242, %s241, 63
      %s244 = smul.addr %s243, 4
      %s245 = scalar_lea.vmem %s0, %s244
      %s246 = smul.u32 32, %s18
      %s247 = smul.u32 32, %s18
      %p248 = scmp.lt.s32.totalorder %s247, 63
      %s249 = scalar_select %p248, %s247, 63
      %s250 = smul.addr %s249, 4
      %s251 = scalar_lea.vmem %s5, %s250
      %s252 = smul.u32 32, %s18
      %p254 = scmp.eq.s32.totalorder %s18, 0
      // Predicated region
      $region41: #{bottleneck_forward.5} parent=39 // pred_check
        %p255 = pneg %p254
      $region42: #{bottleneck_forward.5} parent=39 // pred_check_branch
        %257 = sbr.rel (%p255) target = $region44
      $region43: #{bottleneck_forward.5} parent=39 // pred_region
        %vm258 = vcmask 254976
        %259 = vst.msk [vmem:[%s6] sm:$0x3] %vm258, 0.0
      $region44: #{bottleneck_forward.5} parent=39 // pred_fallthru
        _
      %v260 = vld [vmem:[%s1] sm:$0x3]
      %v261 = vld [vmem:[%s2] sm:$0x1]
      %v262 = vld [vmem:[%s3] sm:$0x1]
      %v263 = vmul.f32 %v260, 0.001953125
      %v264 = vmul.f32 %v263, %v263
      %v266 = vrot.slane %v264, 7
      %v268 = vsub.f32 %v263, %v266
      %v269 = vadd.f32 %v268, 1e-05
      %v270 = vrsqrt.pop %v269
      %v273 = vunpack.c.l.s4 1966171168
      %v274 = vunpack.c.0.s8 %v273
      %v275 = vlaneseq
      %v276 = vshrl.u32 %v275, 7
      %v277 = vsub.s32 %v274, %v276
      %v278 = vrot.slane %v270, %v277
      %v279 = vcombine.high %v278, %v278
      %v281 = vunpack.c.l.s4 1966171168
      %v282 = vunpack.c.0.s8 %v281
      %v283 = vlaneseq
      %v284 = vshrl.u32 %v283, 7
      %v285 = vsub.s32 %v282, %v284
      %v286 = vrot.slane %v279, %v285
      %v288 = vmul.f32 %v261, %v286
      %v289 = vmul.f32 %v263, %v288
      %v290 = vsub.f32 %v262, %v289
      %v291 = vld [vmem:[%s245] sm:$0xf]
      %v292 = vld [vmem:[%s245 + $0x4] sm:$0xf]
      %v293 = vld [vmem:[%s245 + $0x8] sm:$0xf]
      %v294 = vld [vmem:[%s245 + $0xc] sm:$0xf]
      %v295 = vld [vmem:[%s245 + $0x10] sm:$0xf]
      %v296 = vld [vmem:[%s245 + $0x14] sm:$0xf]
      %v297 = vld [vmem:[%s245 + $0x18] sm:$0xf]
      %v298 = vld [vmem:[%s245 + $0x1c] sm:$0xf]
      %v299 = vld [vmem:[%s245 + $0x20] sm:$0xf]
      %v300 = vld [vmem:[%s245 + $0x24] sm:$0xf]
      %v301 = vld [vmem:[%s245 + $0x28] sm:$0xf]
      %v302 = vld [vmem:[%s245 + $0x2c] sm:$0xf]
      %v303 = vld [vmem:[%s245 + $0x30] sm:$0xf]
      %v304 = vld [vmem:[%s245 + $0x34] sm:$0xf]
      %v305 = vld [vmem:[%s245 + $0x38] sm:$0xf]
      %v306 = vld [vmem:[%s245 + $0x3c] sm:$0xf]
      %v307 = vld [vmem:[%s245 + $0x40] sm:$0xf]
      %v308 = vld [vmem:[%s245 + $0x44] sm:$0xf]
      %v309 = vld [vmem:[%s245 + $0x48] sm:$0xf]
      %v310 = vld [vmem:[%s245 + $0x4c] sm:$0xf]
      %v311 = vld [vmem:[%s245 + $0x50] sm:$0xf]
      %v312 = vld [vmem:[%s245 + $0x54] sm:$0xf]
      %v313 = vld [vmem:[%s245 + $0x58] sm:$0xf]
      %v314 = vld [vmem:[%s245 + $0x5c] sm:$0xf]
      %v315 = vld [vmem:[%s245 + $0x60] sm:$0xf]
      %v316 = vld [vmem:[%s245 + $0x64] sm:$0xf]
      %v317 = vld [vmem:[%s245 + $0x68] sm:$0xf]
      %v318 = vld [vmem:[%s245 + $0x6c] sm:$0xf]
      %v319 = vld [vmem:[%s245 + $0x70] sm:$0xf]
      %v320 = vld [vmem:[%s245 + $0x74] sm:$0xf]
      %v321 = vld [vmem:[%s245 + $0x78] sm:$0xf]
      %v322 = vld [vmem:[%s245 + $0x7c] sm:$0xf]
      %v323 = vunpack.c.l.bf16 %v291
      %v324 = vunpack.c.l.bf16 %v292
      %v325 = vunpack.c.l.bf16 %v293
      %v326 = vunpack.c.l.bf16 %v294
      %v327 = vunpack.c.l.bf16 %v295
      %v328 = vunpack.c.l.bf16 %v296
      %v329 = vunpack.c.l.bf16 %v297
      %v330 = vunpack.c.l.bf16 %v298
      %v331 = vunpack.c.l.bf16 %v299
      %v332 = vunpack.c.l.bf16 %v300
      %v333 = vunpack.c.l.bf16 %v301
      %v334 = vunpack.c.l.bf16 %v302
      %v335 = vunpack.c.l.bf16 %v303
      %v336 = vunpack.c.l.bf16 %v304
      %v337 = vunpack.c.l.bf16 %v305
      %v338 = vunpack.c.l.bf16 %v306
      %v339 = vunpack.c.l.bf16 %v307
      %v340 = vunpack.c.l.bf16 %v308
      %v341 = vunpack.c.l.bf16 %v309
      %v342 = vunpack.c.l.bf16 %v310
      %v343 = vunpack.c.l.bf16 %v311
      %v344 = vunpack.c.l.bf16 %v312
      %v345 = vunpack.c.l.bf16 %v313
      %v346 = vunpack.c.l.bf16 %v314
      %v347 = vunpack.c.l.bf16 %v315
      %v348 = vunpack.c.l.bf16 %v316
      %v349 = vunpack.c.l.bf16 %v317
      %v350 = vunpack.c.l.bf16 %v318
      %v351 = vunpack.c.l.bf16 %v319
      %v352 = vunpack.c.l.bf16 %v320
      %v353 = vunpack.c.l.bf16 %v321
      %v354 = vunpack.c.l.bf16 %v322
      %v356 = vlaneseq
      %v357 = vshrl.u32 %v356, 7
      %v358 = vsub.s32 0, %v357
      %v359 = vrot.slane %v288, %v358
      %v361 = vmul.f32 %v323, %v359
      %v362 = vmul.f32 %v324, %v359
      %v363 = vmul.f32 %v325, %v359
      %v364 = vmul.f32 %v326, %v359
      %v365 = vmul.f32 %v327, %v359
      %v366 = vmul.f32 %v328, %v359
      %v367 = vmul.f32 %v329, %v359
      %v368 = vmul.f32 %v330, %v359
      %v369 = vmul.f32 %v331, %v359
      %v370 = vmul.f32 %v332, %v359
      %v371 = vmul.f32 %v333, %v359
      %v372 = vmul.f32 %v334, %v359
      %v373 = vmul.f32 %v335, %v359
      %v374 = vmul.f32 %v336, %v359
      %v375 = vmul.f32 %v337, %v359
      %v376 = vmul.f32 %v338, %v359
      %v377 = vmul.f32 %v339, %v359
      %v378 = vmul.f32 %v340, %v359
      %v379 = vmul.f32 %v341, %v359
      %v380 = vmul.f32 %v342, %v359
      %v381 = vmul.f32 %v343, %v359
      %v382 = vmul.f32 %v344, %v359
      %v383 = vmul.f32 %v345, %v359
      %v384 = vmul.f32 %v346, %v359
      %v385 = vmul.f32 %v347, %v359
      %v386 = vmul.f32 %v348, %v359
      %v387 = vmul.f32 %v349, %v359
      %v388 = vmul.f32 %v350, %v359
      %v389 = vmul.f32 %v351, %v359
      %v390 = vmul.f32 %v352, %v359
      %v391 = vmul.f32 %v353, %v359
      %v392 = vmul.f32 %v354, %v359
      %v394 = vlaneseq
      %v395 = vshrl.u32 %v394, 7
      %v396 = vsub.s32 0, %v395
      %v397 = vrot.slane %v290, %v396
      %v399 = vadd.f32 %v361, %v397
      %v400 = vadd.f32 %v362, %v397
      %v401 = vadd.f32 %v363, %v397
      %v402 = vadd.f32 %v364, %v397
      %v403 = vadd.f32 %v365, %v397
      %v404 = vadd.f32 %v366, %v397
      %v405 = vadd.f32 %v367, %v397
      %v406 = vadd.f32 %v368, %v397
      %v407 = vadd.f32 %v369, %v397
      %v408 = vadd.f32 %v370, %v397
      %v409 = vadd.f32 %v371, %v397
      %v410 = vadd.f32 %v372, %v397
      %v411 = vadd.f32 %v373, %v397
      %v412 = vadd.f32 %v374, %v397
      %v413 = vadd.f32 %v375, %v397
      %v414 = vadd.f32 %v376, %v397
      %v415 = vadd.f32 %v377, %v397
      %v416 = vadd.f32 %v378, %v397
      %v417 = vadd.f32 %v379, %v397
      %v418 = vadd.f32 %v380, %v397
      %v419 = vadd.f32 %v381, %v397
      %v420 = vadd.f32 %v382, %v397
      %v421 = vadd.f32 %v383, %v397
      %v422 = vadd.f32 %v384, %v397
      %v423 = vadd.f32 %v385, %v397
      %v424 = vadd.f32 %v386, %v397
      %v425 = vadd.f32 %v387, %v397
      %v426 = vadd.f32 %v388, %v397
      %v427 = vadd.f32 %v389, %v397
      %v428 = vadd.f32 %v390, %v397
      %v429 = vadd.f32 %v391, %v397
      %v430 = vadd.f32 %v392, %v397
      %v431 = vmax.f32 %v399, 0.0
      %v432 = vmax.f32 %v400, 0.0
      %v433 = vmax.f32 %v401, 0.0
      %v434 = vmax.f32 %v402, 0.0
      %v435 = vmax.f32 %v403, 0.0
      %v436 = vmax.f32 %v404, 0.0
      %v437 = vmax.f32 %v405, 0.0
      %v438 = vmax.f32 %v406, 0.0
      %v439 = vmax.f32 %v407, 0.0
      %v440 = vmax.f32 %v408, 0.0
      %v441 = vmax.f32 %v409, 0.0
      %v442 = vmax.f32 %v410, 0.0
      %v443 = vmax.f32 %v411, 0.0
      %v444 = vmax.f32 %v412, 0.0
      %v445 = vmax.f32 %v413, 0.0
      %v446 = vmax.f32 %v414, 0.0
      %v447 = vmax.f32 %v415, 0.0
      %v448 = vmax.f32 %v416, 0.0
      %v449 = vmax.f32 %v417, 0.0
      %v450 = vmax.f32 %v418, 0.0
      %v451 = vmax.f32 %v419, 0.0
      %v452 = vmax.f32 %v420, 0.0
      %v453 = vmax.f32 %v421, 0.0
      %v454 = vmax.f32 %v422, 0.0
      %v455 = vmax.f32 %v423, 0.0
      %v456 = vmax.f32 %v424, 0.0
      %v457 = vmax.f32 %v425, 0.0
      %v458 = vmax.f32 %v426, 0.0
      %v459 = vmax.f32 %v427, 0.0
      %v460 = vmax.f32 %v428, 0.0
      %v461 = vmax.f32 %v429, 0.0
      %v462 = vmax.f32 %v430, 0.0
      %v463 = vpack.c.bf16 %v432, %v431
      %v464 = vpack.c.bf16 %v434, %v433
      %v465 = vpack.c.bf16 %v436, %v435
      %v466 = vpack.c.bf16 %v438, %v437
      %v467 = vpack.c.bf16 %v440, %v439
      %v468 = vpack.c.bf16 %v442, %v441
      %v469 = vpack.c.bf16 %v444, %v443
      %v470 = vpack.c.bf16 %v446, %v445
      %v471 = vpack.c.bf16 %v448, %v447
      %v472 = vpack.c.bf16 %v450, %v449
      %v473 = vpack.c.bf16 %v452, %v451
      %v474 = vpack.c.bf16 %v454, %v453
      %v475 = vpack.c.bf16 %v456, %v455
      %v476 = vpack.c.bf16 %v458, %v457
      %v477 = vpack.c.bf16 %v460, %v459
      %v478 = vpack.c.bf16 %v462, %v461
      %v480 = vshrl.u32 %v463, 16
      %v482 = vrot.slane %v480, 7
      %v483 = vshll.u32 %v463, 16
      %v485 = vor.u32 %v482, %v483
      %v487 = vshrl.u32 %v464, 16
      %v489 = vrot.slane %v487, 7
      %v490 = vshll.u32 %v464, 16
      %v492 = vor.u32 %v489, %v490
      %v494 = vshrl.u32 %v465, 16
      %v496 = vrot.slane %v494, 7
      %v497 = vshll.u32 %v465, 16
      %v499 = vor.u32 %v496, %v497
      %v501 = vshrl.u32 %v466, 16
      %v503 = vrot.slane %v501, 7
      %v504 = vshll.u32 %v466, 16
      %v506 = vor.u32 %v503, %v504
      %v508 = vshrl.u32 %v467, 16
      %v510 = vrot.slane %v508, 7
      %v511 = vshll.u32 %v467, 16
      %v513 = vor.u32 %v510, %v511
      %v515 = vshrl.u32 %v468, 16
      %v517 = vrot.slane %v515, 7
      %v518 = vshll.u32 %v468, 16
      %v520 = vor.u32 %v517, %v518
      %v522 = vshrl.u32 %v469, 16
      %v524 = vrot.slane %v522, 7
      %v525 = vshll.u32 %v469, 16
      %v527 = vor.u32 %v524, %v525
      %v529 = vshrl.u32 %v470, 16
      %v531 = vrot.slane %v529, 7
      %v532 = vshll.u32 %v470, 16
      %v534 = vor.u32 %v531, %v532
      %v536 = vshrl.u32 %v471, 16
      %v538 = vrot.slane %v536, 7
      %v539 = vshll.u32 %v471, 16
      %v541 = vor.u32 %v538, %v539
      %v543 = vshrl.u32 %v472, 16
      %v545 = vrot.slane %v543, 7
      %v546 = vshll.u32 %v472, 16
      %v548 = vor.u32 %v545, %v546
      %v550 = vshrl.u32 %v473, 16
      %v552 = vrot.slane %v550, 7
      %v553 = vshll.u32 %v473, 16
      %v555 = vor.u32 %v552, %v553
      %v557 = vshrl.u32 %v474, 16
      %v559 = vrot.slane %v557, 7
      %v560 = vshll.u32 %v474, 16
      %v562 = vor.u32 %v559, %v560
      %v564 = vshrl.u32 %v475, 16
      %v566 = vrot.slane %v564, 7
      %v567 = vshll.u32 %v475, 16
      %v569 = vor.u32 %v566, %v567
      %v571 = vshrl.u32 %v476, 16
      %v573 = vrot.slane %v571, 7
      %v574 = vshll.u32 %v476, 16
      %v576 = vor.u32 %v573, %v574
      %v578 = vshrl.u32 %v477, 16
      %v580 = vrot.slane %v578, 7
      %v581 = vshll.u32 %v477, 16
      %v583 = vor.u32 %v580, %v581
      %v585 = vshrl.u32 %v478, 16
      %v587 = vrot.slane %v585, 7
      %v588 = vshll.u32 %v478, 16
      %v590 = vor.u32 %v587, %v588
      %vm623 = vcmask 1040384
      %vm624 = vsmask.f32 256
      %vm625 = vmand %vm623, %vm624
      %v626 = vsel %vm625, 0, %v485
      %v627 = vsel %vm625, 0, %v492
      %v628 = vsel %vm625, 0, %v499
      %v629 = vsel %vm625, 0, %v506
      %v630 = vsel %vm625, 0, %v513
      %v631 = vsel %vm625, 0, %v520
      %v632 = vsel %vm625, 0, %v527
      %v633 = vsel %vm625, 0, %v534
      %v634 = vsel %vm625, 0, %v541
      %v635 = vsel %vm625, 0, %v548
      %v636 = vsel %vm625, 0, %v555
      %v637 = vsel %vm625, 0, %v562
      %v638 = vsel %vm625, 0, %v569
      %v639 = vsel %vm625, 0, %v576
      %v640 = vsel %vm625, 0, %v583
      %v641 = vsel %vm625, 0, %v590
      %v642 = vsel %vm625, %v482, 0
      %v643 = vsel %vm625, %v489, 0
      %v644 = vsel %vm625, %v496, 0
      %v645 = vsel %vm625, %v503, 0
      %v646 = vsel %vm625, %v510, 0
      %v647 = vsel %vm625, %v517, 0
      %v648 = vsel %vm625, %v524, 0
      %v649 = vsel %vm625, %v531, 0
      %v650 = vsel %vm625, %v538, 0
      %v651 = vsel %vm625, %v545, 0
      %v652 = vsel %vm625, %v552, 0
      %v653 = vsel %vm625, %v559, 0
      %v654 = vsel %vm625, %v566, 0
      %v655 = vsel %vm625, %v573, 0
      %v656 = vsel %vm625, %v580, 0
      %v657 = vsel %vm625, %v587, 0
      %vm658 = vsmask.f32 7424
      %v660 = vshrl.u32 0, 16
      %v662 = vshll.u32 0, 16
      %v664 = vrot.slane %v662, 1
      %v665 = vor.u32 %v660, %v664
      %v666 = vsel %vm658, %v665, %v664
      %v668 = vshrl.u32 %v626, 16
      %v670 = vshll.u32 %v626, 16
      %v672 = vrot.slane %v670, 1
      %v673 = vor.u32 %v668, %v672
      %v675 = vshll.u32 %v642, 16
      %v677 = vrot.slane %v675, 1
      %v678 = vsel %vm658, %v673, %v677
      %v680 = vshrl.u32 %v627, 16
      %v682 = vshll.u32 %v627, 16
      %v684 = vrot.slane %v682, 1
      %v685 = vor.u32 %v680, %v684
      %v687 = vshll.u32 %v643, 16
      %v689 = vrot.slane %v687, 1
      %v690 = vsel %vm658, %v685, %v689
      %v692 = vshrl.u32 %v628, 16
      %v694 = vshll.u32 %v628, 16
      %v696 = vrot.slane %v694, 1
      %v697 = vor.u32 %v692, %v696
      %v699 = vshll.u32 %v644, 16
      %v701 = vrot.slane %v699, 1
      %v702 = vsel %vm658, %v697, %v701
      %v704 = vshrl.u32 %v629, 16
      %v706 = vshll.u32 %v629, 16
      %v708 = vrot.slane %v706, 1
      %v709 = vor.u32 %v704, %v708
      %v711 = vshll.u32 %v645, 16
      %v713 = vrot.slane %v711, 1
      %v714 = vsel %vm658, %v709, %v713
      %v716 = vshrl.u32 %v630, 16
      %v718 = vshll.u32 %v630, 16
      %v720 = vrot.slane %v718, 1
      %v721 = vor.u32 %v716, %v720
      %v723 = vshll.u32 %v646, 16
      %v725 = vrot.slane %v723, 1
      %v726 = vsel %vm658, %v721, %v725
      %v728 = vshrl.u32 %v631, 16
      %v730 = vshll.u32 %v631, 16
      %v732 = vrot.slane %v730, 1
      %v733 = vor.u32 %v728, %v732
      %v735 = vshll.u32 %v647, 16
      %v737 = vrot.slane %v735, 1
      %v738 = vsel %vm658, %v733, %v737
      %v740 = vshrl.u32 %v632, 16
      %v742 = vshll.u32 %v632, 16
      %v744 = vrot.slane %v742, 1
      %v745 = vor.u32 %v740, %v744
      %v747 = vshll.u32 %v648, 16
      %v749 = vrot.slane %v747, 1
      %v750 = vsel %vm658, %v745, %v749
      %v752 = vshrl.u32 %v633, 16
      %v754 = vshll.u32 %v633, 16
      %v756 = vrot.slane %v754, 1
      %v757 = vor.u32 %v752, %v756
      %v759 = vshll.u32 %v649, 16
      %v761 = vrot.slane %v759, 1
      %v762 = vsel %vm658, %v757, %v761
      %v764 = vshrl.u32 %v634, 16
      %v766 = vshll.u32 %v634, 16
      %v768 = vrot.slane %v766, 1
      %v769 = vor.u32 %v764, %v768
      %v771 = vshll.u32 %v650, 16
      %v773 = vrot.slane %v771, 1
      %v774 = vsel %vm658, %v769, %v773
      %v776 = vshrl.u32 %v635, 16
      %v778 = vshll.u32 %v635, 16
      %v780 = vrot.slane %v778, 1
      %v781 = vor.u32 %v776, %v780
      %v783 = vshll.u32 %v651, 16
      %v785 = vrot.slane %v783, 1
      %v786 = vsel %vm658, %v781, %v785
      %v788 = vshrl.u32 %v636, 16
      %v790 = vshll.u32 %v636, 16
      %v792 = vrot.slane %v790, 1
      %v793 = vor.u32 %v788, %v792
      %v795 = vshll.u32 %v652, 16
      %v797 = vrot.slane %v795, 1
      %v798 = vsel %vm658, %v793, %v797
      %v800 = vshrl.u32 %v637, 16
      %v802 = vshll.u32 %v637, 16
      %v804 = vrot.slane %v802, 1
      %v805 = vor.u32 %v800, %v804
      %v807 = vshll.u32 %v653, 16
      %v809 = vrot.slane %v807, 1
      %v810 = vsel %vm658, %v805, %v809
      %v812 = vshrl.u32 %v638, 16
      %v814 = vshll.u32 %v638, 16
      %v816 = vrot.slane %v814, 1
      %v817 = vor.u32 %v812, %v816
      %v819 = vshll.u32 %v654, 16
      %v821 = vrot.slane %v819, 1
      %v822 = vsel %vm658, %v817, %v821
      %v824 = vshrl.u32 %v639, 16
      %v826 = vshll.u32 %v639, 16
      %v828 = vrot.slane %v826, 1
      %v829 = vor.u32 %v824, %v828
      %v831 = vshll.u32 %v655, 16
      %v833 = vrot.slane %v831, 1
      %v834 = vsel %vm658, %v829, %v833
      %v836 = vshrl.u32 %v640, 16
      %v838 = vshll.u32 %v640, 16
      %v840 = vrot.slane %v838, 1
      %v841 = vor.u32 %v836, %v840
      %v843 = vshll.u32 %v656, 16
      %v845 = vrot.slane %v843, 1
      %v846 = vsel %vm658, %v841, %v845
      %vm878 = vcmask 1046528
      %v879 = vrot.slane 0, 1
      %v880 = vsel %vm878, %v879, %v879
      %v881 = vrot.slane %v626, 1
      %v882 = vrot.slane %v642, 1
      %v883 = vsel %vm878, %v881, %v882
      %v884 = vrot.slane %v627, 1
      %v885 = vrot.slane %v643, 1
      %v886 = vsel %vm878, %v884, %v885
      %v887 = vrot.slane %v628, 1
      %v888 = vrot.slane %v644, 1
      %v889 = vsel %vm878, %v887, %v888
      %v890 = vrot.slane %v629, 1
      %v891 = vrot.slane %v645, 1
      %v892 = vsel %vm878, %v890, %v891
      %v893 = vrot.slane %v630, 1
      %v894 = vrot.slane %v646, 1
      %v895 = vsel %vm878, %v893, %v894
      %v896 = vrot.slane %v631, 1
      %v897 = vrot.slane %v647, 1
      %v898 = vsel %vm878, %v896, %v897
      %v899 = vrot.slane %v632, 1
      %v900 = vrot.slane %v648, 1
      %v901 = vsel %vm878, %v899, %v900
      %v902 = vrot.slane %v633, 1
      %v903 = vrot.slane %v649, 1
      %v904 = vsel %vm878, %v902, %v903
      %v905 = vrot.slane %v634, 1
      %v906 = vrot.slane %v650, 1
      %v907 = vsel %vm878, %v905, %v906
      %v908 = vrot.slane %v635, 1
      %v909 = vrot.slane %v651, 1
      %v910 = vsel %vm878, %v908, %v909
      %v911 = vrot.slane %v636, 1
      %v912 = vrot.slane %v652, 1
      %v913 = vsel %vm878, %v911, %v912
      %v914 = vrot.slane %v637, 1
      %v915 = vrot.slane %v653, 1
      %v916 = vsel %vm878, %v914, %v915
      %v917 = vrot.slane %v638, 1
      %v918 = vrot.slane %v654, 1
      %v919 = vsel %vm878, %v917, %v918
      %v920 = vrot.slane %v639, 1
      %v921 = vrot.slane %v655, 1
      %v922 = vsel %vm878, %v920, %v921
      %v923 = vrot.slane %v640, 1
      %v924 = vrot.slane %v656, 1
      %v925 = vsel %vm878, %v923, %v924
      %v927 = vshrl.u32 %v641, 16
      %v929 = vshll.u32 %v641, 16
      %v931 = vrot.slane %v929, 1
      %v932 = vor.u32 %v927, %v931
      %v934 = vshll.u32 %v657, 16
      %v936 = vrot.slane %v934, 1
      %v937 = vsel %vm658, %v932, %v936
      %v940 = vrot.slane %v641, 1
      %v941 = vrot.slane %v657, 1
      %v942 = vsel %vm878, %v940, %v941
      %943 = vrot.lane.b32.xlu0 %v666, 32
      %v944 = vpop.permute.xlu0 %943
      %945 = vrot.lane.b32.xlu0 %v678, 32
      %v946 = vpop.permute.xlu0 %945
      %947 = vrot.lane.b32.xlu0 %v690, 32
      %v948 = vpop.permute.xlu0 %947
      %949 = vrot.lane.b32.xlu0 %v702, 32
      %v950 = vpop.permute.xlu0 %949
      %951 = vrot.lane.b32.xlu0 %v714, 32
      %v952 = vpop.permute.xlu0 %951
      %953 = vrot.lane.b32.xlu0 %v726, 32
      %v954 = vpop.permute.xlu0 %953
      %955 = vrot.lane.b32.xlu0 %v738, 32
      %v956 = vpop.permute.xlu0 %955
      %957 = vrot.lane.b32.xlu0 %v750, 32
      %v958 = vpop.permute.xlu0 %957
      %959 = vrot.lane.b32.xlu0 %v762, 32
      %v960 = vpop.permute.xlu0 %959
      %961 = vrot.lane.b32.xlu0 %v774, 32
      %v962 = vpop.permute.xlu0 %961
      %963 = vrot.lane.b32.xlu0 %v786, 32
      %v964 = vpop.permute.xlu0 %963
      %965 = vrot.lane.b32.xlu0 %v798, 32
      %v966 = vpop.permute.xlu0 %965
      %967 = vrot.lane.b32.xlu0 %v810, 32
      %v968 = vpop.permute.xlu0 %967
      %969 = vrot.lane.b32.xlu0 %v822, 32
      %v970 = vpop.permute.xlu0 %969
      %971 = vrot.lane.b32.xlu0 %v834, 32
      %v972 = vpop.permute.xlu0 %971
      %973 = vrot.lane.b32.xlu0 %v846, 32
      %v974 = vpop.permute.xlu0 %973
      %975 = vrot.lane.b32.xlu0 %v880, 64
      %v976 = vpop.permute.xlu0 %975
      %977 = vrot.lane.b32.xlu0 %v883, 64
      %v978 = vpop.permute.xlu0 %977
      %979 = vrot.lane.b32.xlu0 %v886, 64
      %v980 = vpop.permute.xlu0 %979
      %981 = vrot.lane.b32.xlu0 %v889, 64
      %v982 = vpop.permute.xlu0 %981
      %983 = vrot.lane.b32.xlu0 %v892, 64
      %v984 = vpop.permute.xlu0 %983
      %985 = vrot.lane.b32.xlu0 %v895, 64
      %v986 = vpop.permute.xlu0 %985
      %987 = vrot.lane.b32.xlu0 %v898, 64
      %v988 = vpop.permute.xlu0 %987
      %989 = vrot.lane.b32.xlu0 %v901, 64
      %v990 = vpop.permute.xlu0 %989
      %991 = vrot.lane.b32.xlu0 %v904, 64
      %v992 = vpop.permute.xlu0 %991
      %993 = vrot.lane.b32.xlu0 %v907, 64
      %v994 = vpop.permute.xlu0 %993
      %995 = vrot.lane.b32.xlu0 %v910, 64
      %v996 = vpop.permute.xlu0 %995
      %997 = vrot.lane.b32.xlu0 %v913, 64
      %v998 = vpop.permute.xlu0 %997
      %999 = vrot.lane.b32.xlu0 %v916, 64
      %v1000 = vpop.permute.xlu0 %999
      %1001 = vrot.lane.b32.xlu0 %v919, 64
      %v1002 = vpop.permute.xlu0 %1001
      %1003 = vrot.lane.b32.xlu0 %v922, 64
      %v1004 = vpop.permute.xlu0 %1003
      %1005 = vrot.lane.b32.xlu0 %v925, 64
      %v1006 = vpop.permute.xlu0 %1005
      %1007 = vrot.lane.b32.xlu0 %v626, 96
      %v1008 = vpop.permute.xlu0 %1007
      %1009 = vrot.lane.b32.xlu0 %v627, 96
      %v1010 = vpop.permute.xlu0 %1009
      %1011 = vrot.lane.b32.xlu0 %v628, 96
      %v1012 = vpop.permute.xlu0 %1011
      %1013 = vrot.lane.b32.xlu0 %v629, 96
      %v1014 = vpop.permute.xlu0 %1013
      %1015 = vrot.lane.b32.xlu0 %v630, 96
      %v1016 = vpop.permute.xlu0 %1015
      %1017 = vrot.lane.b32.xlu0 %v631, 96
      %v1018 = vpop.permute.xlu0 %1017
      %1019 = vrot.lane.b32.xlu0 %v632, 96
      %v1020 = vpop.permute.xlu0 %1019
      %1021 = vrot.lane.b32.xlu0 %v633, 96
      %v1022 = vpop.permute.xlu0 %1021
      %1023 = vrot.lane.b32.xlu0 %v634, 96
      %v1024 = vpop.permute.xlu0 %1023
      %1025 = vrot.lane.b32.xlu0 %v635, 96
      %v1026 = vpop.permute.xlu0 %1025
      %1027 = vrot.lane.b32.xlu0 %v636, 96
      %v1028 = vpop.permute.xlu0 %1027
      %1029 = vrot.lane.b32.xlu0 %v637, 96
      %v1030 = vpop.permute.xlu0 %1029
      %1031 = vrot.lane.b32.xlu0 %v638, 96
      %v1032 = vpop.permute.xlu0 %1031
      %1033 = vrot.lane.b32.xlu0 %v639, 96
      %v1034 = vpop.permute.xlu0 %1033
      %1035 = vrot.lane.b32.xlu0 %v640, 96
      %v1036 = vpop.permute.xlu0 %1035
      %1037 = vrot.lane.b32.xlu0 %v641, 96
      %v1038 = vpop.permute.xlu0 %1037
      %1039 = vrot.lane.b32.xlu0 %v883, 32
      %v1040 = vpop.permute.xlu0 %1039
      %1041 = vrot.lane.b32.xlu0 %v886, 32
      %v1042 = vpop.permute.xlu0 %1041
      %1043 = vrot.lane.b32.xlu0 %v889, 32
      %v1044 = vpop.permute.xlu0 %1043
      %1045 = vrot.lane.b32.xlu0 %v892, 32
      %v1046 = vpop.permute.xlu0 %1045
      %1047 = vrot.lane.b32.xlu0 %v895, 32
      %v1048 = vpop.permute.xlu0 %1047
      %1049 = vrot.lane.b32.xlu0 %v898, 32
      %v1050 = vpop.permute.xlu0 %1049
      %1051 = vrot.lane.b32.xlu0 %v901, 32
      %v1052 = vpop.permute.xlu0 %1051
      %1053 = vrot.lane.b32.xlu0 %v904, 32
      %v1054 = vpop.permute.xlu0 %1053
      %1055 = vrot.lane.b32.xlu0 %v907, 32
      %v1056 = vpop.permute.xlu0 %1055
      %1057 = vrot.lane.b32.xlu0 %v910, 32
      %v1058 = vpop.permute.xlu0 %1057
      %1059 = vrot.lane.b32.xlu0 %v913, 32
      %v1060 = vpop.permute.xlu0 %1059
      %1061 = vrot.lane.b32.xlu0 %v916, 32
      %v1062 = vpop.permute.xlu0 %1061
      %1063 = vrot.lane.b32.xlu0 %v919, 32
      %v1064 = vpop.permute.xlu0 %1063
      %1065 = vrot.lane.b32.xlu0 %v922, 32
      %v1066 = vpop.permute.xlu0 %1065
      %1067 = vrot.lane.b32.xlu0 %v925, 32
      %v1068 = vpop.permute.xlu0 %1067
      %1069 = vrot.lane.b32.xlu0 %v942, 32
      %v1070 = vpop.permute.xlu0 %1069
      %1071 = vrot.lane.b32.xlu0 %v627, 64
      %v1072 = vpop.permute.xlu0 %1071
      %1073 = vrot.lane.b32.xlu0 %v628, 64
      %v1074 = vpop.permute.xlu0 %1073
      %1075 = vrot.lane.b32.xlu0 %v629, 64
      %v1076 = vpop.permute.xlu0 %1075
      %1077 = vrot.lane.b32.xlu0 %v630, 64
      %v1078 = vpop.permute.xlu0 %1077
      %1079 = vrot.lane.b32.xlu0 %v631, 64
      %v1080 = vpop.permute.xlu0 %1079
      %1081 = vrot.lane.b32.xlu0 %v632, 64
      %v1082 = vpop.permute.xlu0 %1081
      %1083 = vrot.lane.b32.xlu0 %v633, 64
      %v1084 = vpop.permute.xlu0 %1083
      %1085 = vrot.lane.b32.xlu0 %v634, 64
      %v1086 = vpop.permute.xlu0 %1085
      %1087 = vrot.lane.b32.xlu0 %v635, 64
      %v1088 = vpop.permute.xlu0 %1087
      %1089 = vrot.lane.b32.xlu0 %v636, 64
      %v1090 = vpop.permute.xlu0 %1089
      %1091 = vrot.lane.b32.xlu0 %v637, 64
      %v1092 = vpop.permute.xlu0 %1091
      %1093 = vrot.lane.b32.xlu0 %v638, 64
      %v1094 = vpop.permute.xlu0 %1093
      %1095 = vrot.lane.b32.xlu0 %v639, 64
      %v1096 = vpop.permute.xlu0 %1095
      %1097 = vrot.lane.b32.xlu0 %v640, 64
      %v1098 = vpop.permute.xlu0 %1097
      %1099 = vrot.lane.b32.xlu0 %v641, 64
      %v1100 = vpop.permute.xlu0 %1099
      %1101 = vrot.lane.b32.xlu0 0, 64
      %v1102 = vpop.permute.xlu0 %1101
      %1103 = vrot.lane.b32.xlu0 %v690, 96
      %v1104 = vpop.permute.xlu0 %1103
      %1105 = vrot.lane.b32.xlu0 %v702, 96
      %v1106 = vpop.permute.xlu0 %1105
      %1107 = vrot.lane.b32.xlu0 %v714, 96
      %v1108 = vpop.permute.xlu0 %1107
      %1109 = vrot.lane.b32.xlu0 %v726, 96
      %v1110 = vpop.permute.xlu0 %1109
      %1111 = vrot.lane.b32.xlu0 %v738, 96
      %v1112 = vpop.permute.xlu0 %1111
      %1113 = vrot.lane.b32.xlu0 %v750, 96
      %v1114 = vpop.permute.xlu0 %1113
      %1115 = vrot.lane.b32.xlu0 %v762, 96
      %v1116 = vpop.permute.xlu0 %1115
      %1117 = vrot.lane.b32.xlu0 %v774, 96
      %v1118 = vpop.permute.xlu0 %1117
      %1119 = vrot.lane.b32.xlu0 %v786, 96
      %v1120 = vpop.permute.xlu0 %1119
      %1121 = vrot.lane.b32.xlu0 %v798, 96
      %v1122 = vpop.permute.xlu0 %1121
      %1123 = vrot.lane.b32.xlu0 %v810, 96
      %v1124 = vpop.permute.xlu0 %1123
      %1125 = vrot.lane.b32.xlu0 %v822, 96
      %v1126 = vpop.permute.xlu0 %1125
      %1127 = vrot.lane.b32.xlu0 %v834, 96
      %v1128 = vpop.permute.xlu0 %1127
      %1129 = vrot.lane.b32.xlu0 %v846, 96
      %v1130 = vpop.permute.xlu0 %1129
      %1131 = vrot.lane.b32.xlu0 %v937, 96
      %v1132 = vpop.permute.xlu0 %1131
      %1133 = vrot.lane.b32.xlu0 %v666, 96
      %v1134 = vpop.permute.xlu0 %1133
      %vm1135 = vcmask 261120
      %v1137 = vsel %vm1135, 0, %v944
      %v1139 = vsel %vm1135, %v626, %v946
      %v1141 = vsel %vm1135, %v627, %v948
      %v1143 = vsel %vm1135, %v628, %v950
      %v1145 = vsel %vm1135, %v629, %v952
      %v1147 = vsel %vm1135, %v630, %v954
      %v1149 = vsel %vm1135, %v631, %v956
      %v1151 = vsel %vm1135, %v632, %v958
      %v1153 = vsel %vm1135, %v633, %v960
      %v1155 = vsel %vm1135, %v634, %v962
      %v1157 = vsel %vm1135, %v635, %v964
      %v1159 = vsel %vm1135, %v636, %v966
      %v1161 = vsel %vm1135, %v637, %v968
      %v1163 = vsel %vm1135, %v638, %v970
      %v1165 = vsel %vm1135, %v639, %v972
      %v1167 = vsel %vm1135, %v640, %v974
      %vm1168 = vcmask 523264
      %v1170 = vsel %vm1168, %v1137, %v976
      %v1172 = vsel %vm1168, %v1139, %v978
      %v1174 = vsel %vm1168, %v1141, %v980
      %v1176 = vsel %vm1168, %v1143, %v982
      %v1178 = vsel %vm1168, %v1145, %v984
      %v1180 = vsel %vm1168, %v1147, %v986
      %v1182 = vsel %vm1168, %v1149, %v988
      %v1184 = vsel %vm1168, %v1151, %v990
      %v1186 = vsel %vm1168, %v1153, %v992
      %v1188 = vsel %vm1168, %v1155, %v994
      %v1190 = vsel %vm1168, %v1157, %v996
      %v1192 = vsel %vm1168, %v1159, %v998
      %v1194 = vsel %vm1168, %v1161, %v1000
      %v1196 = vsel %vm1168, %v1163, %v1002
      %v1198 = vsel %vm1168, %v1165, %v1004
      %v1200 = vsel %vm1168, %v1167, %v1006
      %vm1201 = vcmask 785408
      %v1203 = vsel %vm1201, %v1170, %v1008
      %v1206 = vsel %vm1201, %v1172, %v1010
      %v1209 = vsel %vm1201, %v1174, %v1012
      %v1212 = vsel %vm1201, %v1176, %v1014
      %v1215 = vsel %vm1201, %v1178, %v1016
      %v1218 = vsel %vm1201, %v1180, %v1018
      %v1221 = vsel %vm1201, %v1182, %v1020
      %v1224 = vsel %vm1201, %v1184, %v1022
      %v1227 = vsel %vm1201, %v1186, %v1024
      %v1230 = vsel %vm1201, %v1188, %v1026
      %v1233 = vsel %vm1201, %v1190, %v1028
      %v1236 = vsel %vm1201, %v1192, %v1030
      %v1239 = vsel %vm1201, %v1194, %v1032
      %v1242 = vsel %vm1201, %v1196, %v1034
      %v1245 = vsel %vm1201, %v1198, %v1036
      %v1248 = vsel %vm1201, %v1200, %v1038
      %v1252 = vsel %vm1135, %v678, %v1040
      %v1255 = vsel %vm1135, %v690, %v1042
      %v1258 = vsel %vm1135, %v702, %v1044
      %v1261 = vsel %vm1135, %v714, %v1046
      %v1264 = vsel %vm1135, %v726, %v1048
      %v1267 = vsel %vm1135, %v738, %v1050
      %v1270 = vsel %vm1135, %v750, %v1052
      %v1273 = vsel %vm1135, %v762, %v1054
      %v1276 = vsel %vm1135, %v774, %v1056
      %v1279 = vsel %vm1135, %v786, %v1058
      %v1282 = vsel %vm1135, %v798, %v1060
      %v1285 = vsel %vm1135, %v810, %v1062
      %v1288 = vsel %vm1135, %v822, %v1064
      %v1291 = vsel %vm1135, %v834, %v1066
      %v1294 = vsel %vm1135, %v846, %v1068
      %v1297 = vsel %vm1135, %v937, %v1070
      %v1299 = vsel %vm1168, %v1252, %v1072
      %v1301 = vsel %vm1168, %v1255, %v1074
      %v1303 = vsel %vm1168, %v1258, %v1076
      %v1305 = vsel %vm1168, %v1261, %v1078
      %v1307 = vsel %vm1168, %v1264, %v1080
      %v1309 = vsel %vm1168, %v1267, %v1082
      %v1311 = vsel %vm1168, %v1270, %v1084
      %v1313 = vsel %vm1168, %v1273, %v1086
      %v1315 = vsel %vm1168, %v1276, %v1088
      %v1317 = vsel %vm1168, %v1279, %v1090
      %v1319 = vsel %vm1168, %v1282, %v1092
      %v1321 = vsel %vm1168, %v1285, %v1094
      %v1323 = vsel %vm1168, %v1288, %v1096
      %v1325 = vsel %vm1168, %v1291, %v1098
      %v1327 = vsel %vm1168, %v1294, %v1100
      %v1329 = vsel %vm1168, %v1297, %v1102
      %v1331 = vsel %vm1201, %v1299, %v1104
      %v1334 = vsel %vm1201, %v1301, %v1106
      %v1337 = vsel %vm1201, %v1303, %v1108
      %v1340 = vsel %vm1201, %v1305, %v1110
      %v1343 = vsel %vm1201, %v1307, %v1112
      %v1346 = vsel %vm1201, %v1309, %v1114
      %v1349 = vsel %vm1201, %v1311, %v1116
      %v1352 = vsel %vm1201, %v1313, %v1118
      %v1355 = vsel %vm1201, %v1315, %v1120
      %v1358 = vsel %vm1201, %v1317, %v1122
      %v1361 = vsel %vm1201, %v1319, %v1124
      %v1364 = vsel %vm1201, %v1321, %v1126
      %v1367 = vsel %vm1201, %v1323, %v1128
      %v1370 = vsel %vm1201, %v1325, %v1130
      %v1373 = vsel %vm1201, %v1327, %v1132
      %v1376 = vsel %vm1201, %v1329, %v1134
      %v1378 = vld [vmem:[%s4] sm:$0xf]
      %v1379 = vld [vmem:[%s4 + $0x4] sm:$0xf]
      %v1380 = vld [vmem:[%s4 + $0x8] sm:$0xf]
      %v1381 = vld [vmem:[%s4 + $0xc] sm:$0xf]
      %v1382 = vld [vmem:[%s4 + $0x10] sm:$0xf]
      %v1383 = vld [vmem:[%s4 + $0x14] sm:$0xf]
      %v1384 = vld [vmem:[%s4 + $0x18] sm:$0xf]
      %v1385 = vld [vmem:[%s4 + $0x1c] sm:$0xf]
      %v1386 = vld [vmem:[%s4 + $0x20] sm:$0xf]
      %v1387 = vld [vmem:[%s4 + $0x24] sm:$0xf]
      %v1388 = vld [vmem:[%s4 + $0x28] sm:$0xf]
      %v1389 = vld [vmem:[%s4 + $0x2c] sm:$0xf]
      %v1390 = vld [vmem:[%s4 + $0x30] sm:$0xf]
      %v1391 = vld [vmem:[%s4 + $0x34] sm:$0xf]
      %v1392 = vld [vmem:[%s4 + $0x38] sm:$0xf]
      %v1393 = vld [vmem:[%s4 + $0x3c] sm:$0xf]
      %v1394 = vld [vmem:[%s4 + $0x40] sm:$0xf]
      %v1395 = vld [vmem:[%s4 + $0x44] sm:$0xf]
      %v1396 = vld [vmem:[%s4 + $0x48] sm:$0xf]
      %v1397 = vld [vmem:[%s4 + $0x4c] sm:$0xf]
      %v1398 = vld [vmem:[%s4 + $0x50] sm:$0xf]
      %v1399 = vld [vmem:[%s4 + $0x54] sm:$0xf]
      %v1400 = vld [vmem:[%s4 + $0x58] sm:$0xf]
      %v1401 = vld [vmem:[%s4 + $0x5c] sm:$0xf]
      %v1402 = vld [vmem:[%s4 + $0x60] sm:$0xf]
      %v1403 = vld [vmem:[%s4 + $0x64] sm:$0xf]
      %v1404 = vld [vmem:[%s4 + $0x68] sm:$0xf]
      %v1405 = vld [vmem:[%s4 + $0x6c] sm:$0xf]
      %v1406 = vld [vmem:[%s4 + $0x70] sm:$0xf]
      %v1407 = vld [vmem:[%s4 + $0x74] sm:$0xf]
      %v1408 = vld [vmem:[%s4 + $0x78] sm:$0xf]
      %v1409 = vld [vmem:[%s4 + $0x7c] sm:$0xf]
      %v1410 = vld [vmem:[%s4 + $0x80] sm:$0xf]
      %v1411 = vld [vmem:[%s4 + $0x84] sm:$0xf]
      %v1412 = vld [vmem:[%s4 + $0x88] sm:$0xf]
      %v1413 = vld [vmem:[%s4 + $0x8c] sm:$0xf]
      %v1450 = vunpack.c.l.b16 %v1378
      %v1451 = vunpack.c.l.b16 %v1379
      %v1452 = vunpack.c.l.b16 %v1380
      %v1453 = vunpack.c.l.b16 %v1381
      %v1454 = vunpack.c.l.b16 %v1382
      %v1455 = vunpack.c.l.b16 %v1383
      %v1456 = vunpack.c.l.b16 %v1384
      %v1457 = vunpack.c.l.b16 %v1385
      %v1458 = vunpack.c.l.b16 %v1386
      %v1459 = vunpack.c.l.b16 %v1387
      %v1460 = vunpack.c.l.b16 %v1388
      %v1461 = vunpack.c.l.b16 %v1389
      %v1462 = vunpack.c.l.b16 %v1390
      %v1463 = vunpack.c.l.b16 %v1391
      %v1464 = vunpack.c.l.b16 %v1392
      %v1465 = vunpack.c.l.b16 %v1393
      %v1466 = vunpack.c.l.b16 %v1394
      %v1467 = vunpack.c.l.b16 %v1395
      %v1468 = vunpack.c.l.b16 %v1396
      %v1469 = vunpack.c.l.b16 %v1397
      %v1470 = vunpack.c.l.b16 %v1398
      %v1471 = vunpack.c.l.b16 %v1399
      %v1472 = vunpack.c.l.b16 %v1400
      %v1473 = vunpack.c.l.b16 %v1401
      %v1474 = vunpack.c.l.b16 %v1402
      %v1475 = vunpack.c.l.b16 %v1403
      %v1476 = vunpack.c.l.b16 %v1404
      %v1477 = vunpack.c.l.b16 %v1405
      %v1478 = vunpack.c.l.b16 %v1406
      %v1479 = vunpack.c.l.b16 %v1407
      %v1480 = vunpack.c.l.b16 %v1408
      %v1481 = vunpack.c.l.b16 %v1409
      %v1482 = vunpack.c.l.b16 %v1410
      %v1483 = vunpack.c.l.b16 %v1411
      %v1484 = vunpack.c.l.b16 %v1412
      %v1485 = vunpack.c.l.b16 %v1413
      %v1486 = vpack.c.b16 %v1451, %v1450
      %v1487 = vpack.c.b16 %v1453, %v1452
      %v1488 = vpack.c.b16 %v1455, %v1454
      %v1489 = vpack.c.b16 %v1457, %v1456
      %v1490 = vpack.c.b16 %v1459, %v1458
      %v1491 = vpack.c.b16 %v1461, %v1460
      %v1492 = vpack.c.b16 %v1463, %v1462
      %v1493 = vpack.c.b16 %v1465, %v1464
      %v1494 = vpack.c.b16 %v1467, %v1466
      %v1495 = vpack.c.b16 %v1469, %v1468
      %v1496 = vpack.c.b16 %v1471, %v1470
      %v1497 = vpack.c.b16 %v1473, %v1472
      %v1498 = vpack.c.b16 %v1475, %v1474
      %v1499 = vpack.c.b16 %v1477, %v1476
      %v1500 = vpack.c.b16 %v1479, %v1478
      %v1501 = vpack.c.b16 %v1481, %v1480
      %v1502 = vpack.c.b16 %v1483, %v1482
      %v1503 = vpack.c.b16 %v1485, %v1484
      %v1523 = vsel %vm1135, %v886, 0
      %v1526 = vsel %vm1135, %v889, 0
      %v1529 = vsel %vm1135, %v892, 0
      %v1532 = vsel %vm1135, %v895, 0
      %v1535 = vsel %vm1135, %v898, 0
      %v1538 = vsel %vm1135, %v901, 0
      %v1541 = vsel %vm1135, %v904, 0
      %v1544 = vsel %vm1135, %v907, 0
      %v1547 = vsel %vm1135, %v910, 0
      %v1550 = vsel %vm1135, %v913, 0
      %v1553 = vsel %vm1135, %v916, 0
      %v1556 = vsel %vm1135, %v919, 0
      %v1559 = vsel %vm1135, %v922, 0
      %v1562 = vsel %vm1135, %v925, 0
      %v1565 = vsel %vm1135, %v942, 0
      %v1568 = vsel %vm1135, %v880, 0
      %1570 = vmatprep.subr.bf16.mxu0 0
      %1571 = vmatpush1.bf16.msra.mxu0 %v1486
      %1572 = vmatprep.subr.bf16.mxu0 0
      %1573 = vmatpush1.bf16.msra.mxu0 %v1487
      %1574 = vmatprep.subr.bf16.mxu0 0
      %1575 = vmatpush1.bf16.msra.mxu0 %v1488
      %1576 = vmatprep.subr.bf16.mxu0 0
      %1577 = vmatpush1.bf16.msra.mxu0 %v1489
      %1578 = vmatprep.subr.bf16.mxu0 0
      %1579 = vmatpush1.bf16.msra.mxu0 %v1490
      %1580 = vmatprep.subr.bf16.mxu0 0
      %1581 = vmatpush1.bf16.msra.mxu0 %v1491
      %1582 = vmatprep.subr.bf16.mxu0 0
      %1583 = vmatpush1.bf16.msra.mxu0 %v1492
      %1584 = vmatprep.subr.bf16.mxu0 0
      %1585 = vmatpush1.bf16.msra.mxu0 %v1493
      %1586 = vmatprep.subr.bf16.mxu0 0
      %1587 = vmatpush1.bf16.msra.mxu0 %v1494
      %1588 = vmatprep.subr.bf16.mxu0 0
      %1589 = vmatpush1.bf16.msra.mxu0 %v1495
      %1590 = vmatprep.subr.bf16.mxu0 0
      %1591 = vmatpush1.bf16.msra.mxu0 %v1496
      %1592 = vmatprep.subr.bf16.mxu0 0
      %1593 = vmatpush1.bf16.msra.mxu0 %v1497
      %1594 = vmatprep.subr.bf16.mxu0 0
      %1595 = vmatpush1.bf16.msra.mxu0 %v1498
      %1596 = vmatprep.subr.bf16.mxu0 0
      %1597 = vmatpush1.bf16.msra.mxu0 %v1499
      %1598 = vmatprep.subr.bf16.mxu0 0
      %1599 = vmatpush1.bf16.msra.mxu0 %v1500
      %1600 = vmatprep.subr.bf16.mxu0 0
      %1601 = vmatpush1.bf16.msra.mxu0 %v1501
      %1602 = vmatprep.mubr.bf16.mxu0 %v1331
      %1603 = vmatmul.mubr.bf16.gmra.mrb[0].mxu0 %v1203
      %v1604 = vpop.f32.mrb[0].mxu0
      %v1605 = vadd.f32 0.0, %v1604
      %v1606 = vpop.f32.mrb[0].mxu0
      %v1607 = vpop.f32.mrb[0].mxu0
      %v1608 = vadd.f32 0.0, %v1607
      %v1609 = vpop.f32.mrb[0].mxu0
      %1610 = vmatprep.mubr.bf16.mxu0 %v1334
      %1611 = vmatmul.mubr.bf16.gmra.mrb[0].mxu0 %v1206
      %v1612 = vpop.f32.mrb[0].mxu0
      %v1613 = vadd.f32 0.0, %v1612
      %v1614 = vpop.f32.mrb[0].mxu0
      %v1615 = vpop.f32.mrb[0].mxu0
      %v1616 = vadd.f32 0.0, %v1615
      %v1617 = vpop.f32.mrb[0].mxu0
      %1618 = vmatprep.mubr.bf16.mxu0 %v1337
      %1619 = vmatmul.mubr.bf16.gmra.mrb[0].mxu0 %v1209
      %v1620 = vpop.f32.mrb[0].mxu0
      %v1621 = vadd.f32 0.0, %v1620
      %v1622 = vpop.f32.mrb[0].mxu0
      %v1623 = vpop.f32.mrb[0].mxu0
      %v1624 = vadd.f32 0.0, %v1623
      %v1625 = vpop.f32.mrb[0].mxu0
      %1626 = vmatprep.mubr.bf16.mxu0 %v1340
      %1627 = vmatmul.mubr.bf16.gmra.mrb[0].mxu0 %v1212
      %v1628 = vpop.f32.mrb[0].mxu0
      %v1629 = vadd.f32 0.0, %v1628
      %v1630 = vpop.f32.mrb[0].mxu0
      %v1631 = vpop.f32.mrb[0].mxu0
      %v1632 = vadd.f32 0.0, %v1631
      %v1633 = vpop.f32.mrb[0].mxu0
      %1634 = vmatprep.mubr.bf16.mxu0 %v1343
      %1635 = vmatmul.mubr.bf16.gmra.mrb[0].mxu0 %v1215
      %v1636 = vpop.f32.mrb[0].mxu0
      %v1637 = vadd.f32 0.0, %v1636
      %v1638 = vpop.f32.mrb[0].mxu0
      %v1639 = vpop.f32.mrb[0].mxu0
      %v1640 = vadd.f32 0.0, %v1639
      %v1641 = vpop.f32.mrb[0].mxu0
      %1642 = vmatprep.mubr.bf16.mxu0 %v1346
      %1643 = vmatmul.mubr.bf16.gmra.mrb[0].mxu0 %v1218
      %v1644 = vpop.f32.mrb[0].mxu0
      %v1645 = vadd.f32 0.0, %v1644
      %v1646 = vpop.f32.mrb[0].mxu0
      %v1647 = vpop.f32.mrb[0].mxu0
      %v1648 = vadd.f32 0.0, %v1647
      %v1649 = vpop.f32.mrb[0].mxu0
      %1650 = vmatprep.mubr.bf16.mxu0 %v1349
      %1651 = vmatmul.mubr.bf16.gmra.mrb[0].mxu0 %v1221
      %v1652 = vpop.f32.mrb[0].mxu0
      %v1653 = vadd.f32 0.0, %v1652
      %v1654 = vpop.f32.mrb[0].mxu0
      %v1655 = vpop.f32.mrb[0].mxu0
      %v1656 = vadd.f32 0.0, %v1655
      %v1657 = vpop.f32.mrb[0].mxu0
      %1658 = vmatprep.mubr.bf16.mxu0 %v1352
      %1659 = vmatmul.mubr.bf16.gmra.mrb[0].mxu0 %v1224
      %v1660 = vpop.f32.mrb[0].mxu0
      %v1661 = vadd.f32 0.0, %v1660
      %v1662 = vpop.f32.mrb[0].mxu0
      %v1663 = vpop.f32.mrb[0].mxu0
      %v1664 = vadd.f32 0.0, %v1663
      %v1665 = vpop.f32.mrb[0].mxu0
      %1666 = vmatprep.mubr.bf16.mxu0 %v1355
      %1667 = vmatmul.mubr.bf16.gmra.mrb[0].mxu0 %v1227
      %v1668 = vpop.f32.mrb[0].mxu0
      %v1669 = vadd.f32 0.0, %v1668
      %v1670 = vpop.f32.mrb[0].mxu0
      %v1671 = vpop.f32.mrb[0].mxu0
      %v1672 = vadd.f32 0.0, %v1671
      %v1673 = vpop.f32.mrb[0].mxu0
      %1674 = vmatprep.mubr.bf16.mxu0 %v1358
      %1675 = vmatmul.mubr.bf16.gmra.mrb[0].mxu0 %v1230
      %v1676 = vpop.f32.mrb[0].mxu0
      %v1677 = vadd.f32 0.0, %v1676
      %v1678 = vpop.f32.mrb[0].mxu0
      %v1679 = vpop.f32.mrb[0].mxu0
      %v1680 = vadd.f32 0.0, %v1679
      %v1681 = vpop.f32.mrb[0].mxu0
      %1682 = vmatprep.mubr.bf16.mxu0 %v1361
      %1683 = vmatmul.mubr.bf16.gmra.mrb[0].mxu0 %v1233
      %v1684 = vpop.f32.mrb[0].mxu0
      %v1685 = vadd.f32 0.0, %v1684
      %v1686 = vpop.f32.mrb[0].mxu0
      %v1687 = vpop.f32.mrb[0].mxu0
      %v1688 = vadd.f32 0.0, %v1687
      %v1689 = vpop.f32.mrb[0].mxu0
      %1690 = vmatprep.mubr.bf16.mxu0 %v1364
      %1691 = vmatmul.mubr.bf16.gmra.mrb[0].mxu0 %v1236
      %v1692 = vpop.f32.mrb[0].mxu0
      %v1693 = vadd.f32 0.0, %v1692
      %v1694 = vpop.f32.mrb[0].mxu0
      %v1695 = vpop.f32.mrb[0].mxu0
      %v1696 = vadd.f32 0.0, %v1695
      %v1697 = vpop.f32.mrb[0].mxu0
      %1698 = vmatprep.mubr.bf16.mxu0 %v1367
      %1699 = vmatmul.mubr.bf16.gmra.mrb[0].mxu0 %v1239
      %v1700 = vpop.f32.mrb[0].mxu0
      %v1701 = vadd.f32 0.0, %v1700
      %v1702 = vpop.f32.mrb[0].mxu0
      %v1703 = vpop.f32.mrb[0].mxu0
      %v1704 = vadd.f32 0.0, %v1703
      %v1705 = vpop.f32.mrb[0].mxu0
      %1706 = vmatprep.mubr.bf16.mxu0 %v1370
      %1707 = vmatmul.mubr.bf16.gmra.mrb[0].mxu0 %v1242
      %v1708 = vpop.f32.mrb[0].mxu0
      %v1709 = vadd.f32 0.0, %v1708
      %v1710 = vpop.f32.mrb[0].mxu0
      %v1711 = vpop.f32.mrb[0].mxu0
      %v1712 = vadd.f32 0.0, %v1711
      %v1713 = vpop.f32.mrb[0].mxu0
      %1714 = vmatprep.mubr.bf16.mxu0 %v1373
      %1715 = vmatmul.mubr.bf16.gmra.mrb[0].mxu0 %v1245
      %v1716 = vpop.f32.mrb[0].mxu0
      %v1717 = vadd.f32 0.0, %v1716
      %v1718 = vpop.f32.mrb[0].mxu0
      %v1719 = vpop.f32.mrb[0].mxu0
      %v1720 = vadd.f32 0.0, %v1719
      %v1721 = vpop.f32.mrb[0].mxu0
      %1722 = vmatprep.mubr.bf16.mxu0 %v1376
      %1723 = vmatmul.mubr.bf16.gmra.mrb[0].mxu0 %v1248
      %v1724 = vpop.f32.mrb[0].mxu0
      %v1725 = vadd.f32 0.0, %v1724
      %v1726 = vpop.f32.mrb[0].mxu0
      %v1727 = vpop.f32.mrb[0].mxu0
      %v1728 = vadd.f32 0.0, %v1727
      %v1729 = vpop.f32.mrb[0].mxu0
      %1730 = vdwg.mxu0
      %1731 = vmatprep.subr.bf16.mxu0 0
      %1732 = vmatpush1.bf16.msra.mxu0 %v1502
      %1733 = vmatprep.subr.bf16.mxu0 0
      %1734 = vmatpush1.bf16.msra.mxu0 %v1503
      %1735 = vmatprep.subr.bf16.mxu0 0
      %1736 = vmatpush1.bf16.msra.mxu0 0
      %1737 = vmatprep.subr.bf16.mxu0 0
      %1738 = vmatpush1.bf16.msra.mxu0 0
      %1739 = vmatprep.subr.bf16.mxu0 0
      %1740 = vmatpush1.bf16.msra.mxu0 0
      %1741 = vmatprep.subr.bf16.mxu0 0
      %1742 = vmatpush1.bf16.msra.mxu0 0
      %1743 = vmatprep.subr.bf16.mxu0 0
      %1744 = vmatpush1.bf16.msra.mxu0 0
      %1745 = vmatprep.subr.bf16.mxu0 0
      %1746 = vmatpush1.bf16.msra.mxu0 0
      %1747 = vmatprep.subr.bf16.mxu0 0
      %1748 = vmatpush1.bf16.msra.mxu0 0
      %1749 = vmatprep.subr.bf16.mxu0 0
      %1750 = vmatpush1.bf16.msra.mxu0 0
      %1751 = vmatprep.subr.bf16.mxu0 0
      %1752 = vmatpush1.bf16.msra.mxu0 0
      %1753 = vmatprep.subr.bf16.mxu0 0
      %1754 = vmatpush1.bf16.msra.mxu0 0
      %1755 = vmatprep.subr.bf16.mxu0 0
      %1756 = vmatpush1.bf16.msra.mxu0 0
      %1757 = vmatprep.subr.bf16.mxu0 0
      %1758 = vmatpush1.bf16.msra.mxu0 0
      %1759 = vmatprep.subr.bf16.mxu0 0
      %1760 = vmatpush1.bf16.msra.mxu0 0
      %1761 = vmatprep.subr.bf16.mxu0 0
      %1762 = vmatpush1.bf16.msra.mxu0 0
      %1763 = vmatprep.mubr.bf16.mxu0 0
      %1764 = vmatmul.mubr.bf16.gmra.mrb[0].mxu0 %v1523
      %v1765 = vpop.f32.mrb[0].mxu0
      %v1766 = vadd.f32 %v1605, %v1765
      %v1767 = vpop.f32.mrb[0].mxu0
      %v1768 = vpop.f32.mrb[0].mxu0
      %v1769 = vadd.f32 %v1608, %v1768
      %v1770 = vpop.f32.mrb[0].mxu0
      %1771 = vmatprep.mubr.bf16.mxu0 0
      %1772 = vmatmul.mubr.bf16.gmra.mrb[0].mxu0 %v1526
      %v1773 = vpop.f32.mrb[0].mxu0
      %v1774 = vadd.f32 %v1613, %v1773
      %v1775 = vpop.f32.mrb[0].mxu0
      %v1776 = vpop.f32.mrb[0].mxu0
      %v1777 = vadd.f32 %v1616, %v1776
      %v1778 = vpop.f32.mrb[0].mxu0
      %1779 = vmatprep.mubr.bf16.mxu0 0
      %1780 = vmatmul.mubr.bf16.gmra.mrb[0].mxu0 %v1529
      %v1781 = vpop.f32.mrb[0].mxu0
      %v1782 = vadd.f32 %v1621, %v1781
      %v1783 = vpop.f32.mrb[0].mxu0
      %v1784 = vpop.f32.mrb[0].mxu0
      %v1785 = vadd.f32 %v1624, %v1784
      %v1786 = vpop.f32.mrb[0].mxu0
      %1787 = vmatprep.mubr.bf16.mxu0 0
      %1788 = vmatmul.mubr.bf16.gmra.mrb[0].mxu0 %v1532
      %v1789 = vpop.f32.mrb[0].mxu0
      %v1790 = vadd.f32 %v1629, %v1789
      %v1791 = vpop.f32.mrb[0].mxu0
      %v1792 = vpop.f32.mrb[0].mxu0
      %v1793 = vadd.f32 %v1632, %v1792
      %v1794 = vpop.f32.mrb[0].mxu0
      %1795 = vmatprep.mubr.bf16.mxu0 0
      %1796 = vmatmul.mubr.bf16.gmra.mrb[0].mxu0 %v1535
      %v1797 = vpop.f32.mrb[0].mxu0
      %v1798 = vadd.f32 %v1637, %v1797
      %v1799 = vpop.f32.mrb[0].mxu0
      %v1800 = vpop.f32.mrb[0].mxu0
      %v1801 = vadd.f32 %v1640, %v1800
      %v1802 = vpop.f32.mrb[0].mxu0
      %1803 = vmatprep.mubr.bf16.mxu0 0
      %1804 = vmatmul.mubr.bf16.gmra.mrb[0].mxu0 %v1538
      %v1805 = vpop.f32.mrb[0].mxu0
      %v1806 = vadd.f32 %v1645, %v1805
      %v1807 = vpop.f32.mrb[0].mxu0
      %v1808 = vpop.f32.mrb[0].mxu0
      %v1809 = vadd.f32 %v1648, %v1808
      %v1810 = vpop.f32.mrb[0].mxu0
      %1811 = vmatprep.mubr.bf16.mxu0 0
      %1812 = vmatmul.mubr.bf16.gmra.mrb[0].mxu0 %v1541
      %v1813 = vpop.f32.mrb[0].mxu0
      %v1814 = vadd.f32 %v1653, %v1813
      %v1815 = vpop.f32.mrb[0].mxu0
      %v1816 = vpop.f32.mrb[0].mxu0
      %v1817 = vadd.f32 %v1656, %v1816
      %v1818 = vpop.f32.mrb[0].mxu0
      %1819 = vmatprep.mubr.bf16.mxu0 0
      %1820 = vmatmul.mubr.bf16.gmra.mrb[0].mxu0 %v1544
      %v1821 = vpop.f32.mrb[0].mxu0
      %v1822 = vadd.f32 %v1661, %v1821
      %v1823 = vpop.f32.mrb[0].mxu0
      %v1824 = vpop.f32.mrb[0].mxu0
      %v1825 = vadd.f32 %v1664, %v1824
      %v1826 = vpop.f32.mrb[0].mxu0
      %1827 = vmatprep.mubr.bf16.mxu0 0
      %1828 = vmatmul.mubr.bf16.gmra.mrb[0].mxu0 %v1547
      %v1829 = vpop.f32.mrb[0].mxu0
      %v1830 = vadd.f32 %v1669, %v1829
      %v1831 = vpop.f32.mrb[0].mxu0
      %v1832 = vpop.f32.mrb[0].mxu0
      %v1833 = vadd.f32 %v1672, %v1832
      %v1834 = vpop.f32.mrb[0].mxu0
      %1835 = vmatprep.mubr.bf16.mxu0 0
      %1836 = vmatmul.mubr.bf16.gmra.mrb[0].mxu0 %v1550
      %v1837 = vpop.f32.mrb[0].mxu0
      %v1838 = vadd.f32 %v1677, %v1837
      %v1839 = vpop.f32.mrb[0].mxu0
      %v1840 = vpop.f32.mrb[0].mxu0
      %v1841 = vadd.f32 %v1680, %v1840
      %v1842 = vpop.f32.mrb[0].mxu0
      %1843 = vmatprep.mubr.bf16.mxu0 0
      %1844 = vmatmul.mubr.bf16.gmra.mrb[0].mxu0 %v1553
      %v1845 = vpop.f32.mrb[0].mxu0
      %v1846 = vadd.f32 %v1685, %v1845
      %v1847 = vpop.f32.mrb[0].mxu0
      %v1848 = vpop.f32.mrb[0].mxu0
      %v1849 = vadd.f32 %v1688, %v1848
      %v1850 = vpop.f32.mrb[0].mxu0
      %1851 = vmatprep.mubr.bf16.mxu0 0
      %1852 = vmatmul.mubr.bf16.gmra.mrb[0].mxu0 %v1556
      %v1853 = vpop.f32.mrb[0].mxu0
      %v1854 = vadd.f32 %v1693, %v1853
      %v1855 = vpop.f32.mrb[0].mxu0
      %v1856 = vpop.f32.mrb[0].mxu0
      %v1857 = vadd.f32 %v1696, %v1856
      %v1858 = vpop.f32.mrb[0].mxu0
      %1859 = vmatprep.mubr.bf16.mxu0 0
      %1860 = vmatmul.mubr.bf16.gmra.mrb[0].mxu0 %v1559
      %v1861 = vpop.f32.mrb[0].mxu0
      %v1862 = vadd.f32 %v1701, %v1861
      %v1863 = vpop.f32.mrb[0].mxu0
      %v1864 = vpop.f32.mrb[0].mxu0
      %v1865 = vadd.f32 %v1704, %v1864
      %v1866 = vpop.f32.mrb[0].mxu0
      %1867 = vmatprep.mubr.bf16.mxu0 0
      %1868 = vmatmul.mubr.bf16.gmra.mrb[0].mxu0 %v1562
      %v1869 = vpop.f32.mrb[0].mxu0
      %v1870 = vadd.f32 %v1709, %v1869
      %v1871 = vpop.f32.mrb[0].mxu0
      %v1872 = vpop.f32.mrb[0].mxu0
      %v1873 = vadd.f32 %v1712, %v1872
      %v1874 = vpop.f32.mrb[0].mxu0
      %1875 = vmatprep.mubr.bf16.mxu0 0
      %1876 = vmatmul.mubr.bf16.gmra.mrb[0].mxu0 %v1565
      %v1877 = vpop.f32.mrb[0].mxu0
      %v1878 = vadd.f32 %v1717, %v1877
      %v1879 = vpop.f32.mrb[0].mxu0
      %v1880 = vpop.f32.mrb[0].mxu0
      %v1881 = vadd.f32 %v1720, %v1880
      %v1882 = vpop.f32.mrb[0].mxu0
      %1883 = vmatprep.mubr.bf16.mxu0 0
      %1884 = vmatmul.mubr.bf16.gmra.mrb[0].mxu0 %v1568
      %v1885 = vpop.f32.mrb[0].mxu0
      %v1886 = vadd.f32 %v1725, %v1885
      %v1887 = vpop.f32.mrb[0].mxu0
      %v1888 = vpop.f32.mrb[0].mxu0
      %v1889 = vadd.f32 %v1728, %v1888
      %v1890 = vpop.f32.mrb[0].mxu0
      %1891 = vdwg.mxu0
      %v1892 = vpack.c.bf16 %v1769, %v1766
      %v1893 = vpack.c.bf16 %v1777, %v1774
      %v1894 = vpack.c.bf16 %v1785, %v1782
      %v1895 = vpack.c.bf16 %v1793, %v1790
      %v1896 = vpack.c.bf16 %v1801, %v1798
      %v1897 = vpack.c.bf16 %v1809, %v1806
      %v1898 = vpack.c.bf16 %v1817, %v1814
      %v1899 = vpack.c.bf16 %v1825, %v1822
      %v1900 = vpack.c.bf16 %v1833, %v1830
      %v1901 = vpack.c.bf16 %v1841, %v1838
      %v1902 = vpack.c.bf16 %v1849, %v1846
      %v1903 = vpack.c.bf16 %v1857, %v1854
      %v1904 = vpack.c.bf16 %v1865, %v1862
      %v1905 = vpack.c.bf16 %v1873, %v1870
      %v1906 = vpack.c.bf16 %v1881, %v1878
      %v1907 = vpack.c.bf16 %v1889, %v1886
      %v1924 = vunpack.c.l.b16 %v1892
      %v1925 = vunpack.c.h.b16 %v1892
      %v1926 = vunpack.c.l.b16 %v1893
      %v1927 = vunpack.c.h.b16 %v1893
      %v1928 = vunpack.c.l.b16 %v1894
      %v1929 = vunpack.c.h.b16 %v1894
      %v1930 = vunpack.c.l.b16 %v1895
      %v1931 = vunpack.c.h.b16 %v1895
      %v1932 = vunpack.c.l.b16 %v1896
      %v1933 = vunpack.c.h.b16 %v1896
      %v1934 = vunpack.c.l.b16 %v1897
      %v1935 = vunpack.c.h.b16 %v1897
      %v1936 = vunpack.c.l.b16 %v1898
      %v1937 = vunpack.c.h.b16 %v1898
      %v1938 = vunpack.c.l.b16 %v1899
      %v1939 = vunpack.c.h.b16 %v1899
      %v1940 = vunpack.c.l.b16 %v1900
      %v1941 = vunpack.c.h.b16 %v1900
      %v1942 = vunpack.c.l.b16 %v1901
      %v1943 = vunpack.c.h.b16 %v1901
      %v1944 = vunpack.c.l.b16 %v1902
      %v1945 = vunpack.c.h.b16 %v1902
      %v1946 = vunpack.c.l.b16 %v1903
      %v1947 = vunpack.c.h.b16 %v1903
      %v1948 = vunpack.c.l.b16 %v1904
      %v1949 = vunpack.c.h.b16 %v1904
      %v1950 = vunpack.c.l.b16 %v1905
      %v1951 = vunpack.c.h.b16 %v1905
      %v1952 = vunpack.c.l.b16 %v1906
      %v1953 = vunpack.c.h.b16 %v1906
      %v1954 = vunpack.c.l.b16 %v1907
      %v1955 = vunpack.c.h.b16 %v1907
      %v1956 = vpack.c.b16 %v1924, %v1924
      %v1957 = vpack.c.b16 %v1925, %v1925
      %v1958 = vpack.c.b16 %v1926, %v1926
      %v1959 = vpack.c.b16 %v1927, %v1927
      %v1960 = vpack.c.b16 %v1928, %v1928
      %v1961 = vpack.c.b16 %v1929, %v1929
      %v1962 = vpack.c.b16 %v1930, %v1930
      %v1963 = vpack.c.b16 %v1931, %v1931
      %v1964 = vpack.c.b16 %v1932, %v1932
      %v1965 = vpack.c.b16 %v1933, %v1933
      %v1966 = vpack.c.b16 %v1934, %v1934
      %v1967 = vpack.c.b16 %v1935, %v1935
      %v1968 = vpack.c.b16 %v1936, %v1936
      %v1969 = vpack.c.b16 %v1937, %v1937
      %v1970 = vpack.c.b16 %v1938, %v1938
      %v1971 = vpack.c.b16 %v1939, %v1939
      %v1972 = vpack.c.b16 %v1940, %v1940
      %v1973 = vpack.c.b16 %v1941, %v1941
      %v1974 = vpack.c.b16 %v1942, %v1942
      %v1975 = vpack.c.b16 %v1943, %v1943
      %v1976 = vpack.c.b16 %v1944, %v1944
      %v1977 = vpack.c.b16 %v1945, %v1945
      %v1978 = vpack.c.b16 %v1946, %v1946
      %v1979 = vpack.c.b16 %v1947, %v1947
      %v1980 = vpack.c.b16 %v1948, %v1948
      %v1981 = vpack.c.b16 %v1949, %v1949
      %v1982 = vpack.c.b16 %v1950, %v1950
      %v1983 = vpack.c.b16 %v1951, %v1951
      %v1984 = vpack.c.b16 %v1952, %v1952
      %v1985 = vpack.c.b16 %v1953, %v1953
      %v1986 = vpack.c.b16 %v1954, %v1954
      %v1987 = vpack.c.b16 %v1955, %v1955
      %vm2020 = vcmask 257024
      %2021 = vst.msk [vmem:[%s251] sm:$0xf] %vm2020, %v1956
      %2022 = vst.msk [vmem:[%s251 + $0x4] sm:$0xf] %vm2020, %v1957
      %2023 = vst.msk [vmem:[%s251 + $0x8] sm:$0xf] %vm2020, %v1958
      %2024 = vst.msk [vmem:[%s251 + $0xc] sm:$0xf] %vm2020, %v1959
      %2025 = vst.msk [vmem:[%s251 + $0x10] sm:$0xf] %vm2020, %v1960
      %2026 = vst.msk [vmem:[%s251 + $0x14] sm:$0xf] %vm2020, %v1961
      %2027 = vst.msk [vmem:[%s251 + $0x18] sm:$0xf] %vm2020, %v1962
      %2028 = vst.msk [vmem:[%s251 + $0x1c] sm:$0xf] %vm2020, %v1963
      %2029 = vst.msk [vmem:[%s251 + $0x20] sm:$0xf] %vm2020, %v1964
      %2030 = vst.msk [vmem:[%s251 + $0x24] sm:$0xf] %vm2020, %v1965
      %2031 = vst.msk [vmem:[%s251 + $0x28] sm:$0xf] %vm2020, %v1966
      %2032 = vst.msk [vmem:[%s251 + $0x2c] sm:$0xf] %vm2020, %v1967
      %2033 = vst.msk [vmem:[%s251 + $0x30] sm:$0xf] %vm2020, %v1968
      %2034 = vst.msk [vmem:[%s251 + $0x34] sm:$0xf] %vm2020, %v1969
      %2035 = vst.msk [vmem:[%s251 + $0x38] sm:$0xf] %vm2020, %v1970
      %2036 = vst.msk [vmem:[%s251 + $0x3c] sm:$0xf] %vm2020, %v1971
      %2037 = vst.msk [vmem:[%s251 + $0x40] sm:$0xf] %vm2020, %v1972
      %2038 = vst.msk [vmem:[%s251 + $0x44] sm:$0xf] %vm2020, %v1973
      %2039 = vst.msk [vmem:[%s251 + $0x48] sm:$0xf] %vm2020, %v1974
      %2040 = vst.msk [vmem:[%s251 + $0x4c] sm:$0xf] %vm2020, %v1975
      %2041 = vst.msk [vmem:[%s251 + $0x50] sm:$0xf] %vm2020, %v1976
      %2042 = vst.msk [vmem:[%s251 + $0x54] sm:$0xf] %vm2020, %v1977
      %2043 = vst.msk [vmem:[%s251 + $0x58] sm:$0xf] %vm2020, %v1978
      %2044 = vst.msk [vmem:[%s251 + $0x5c] sm:$0xf] %vm2020, %v1979
      %2045 = vst.msk [vmem:[%s251 + $0x60] sm:$0xf] %vm2020, %v1980
      %2046 = vst.msk [vmem:[%s251 + $0x64] sm:$0xf] %vm2020, %v1981
      %2047 = vst.msk [vmem:[%s251 + $0x68] sm:$0xf] %vm2020, %v1982
      %2048 = vst.msk [vmem:[%s251 + $0x6c] sm:$0xf] %vm2020, %v1983
      %2049 = vst.msk [vmem:[%s251 + $0x70] sm:$0xf] %vm2020, %v1984
      %2050 = vst.msk [vmem:[%s251 + $0x74] sm:$0xf] %vm2020, %v1985
      %2051 = vst.msk [vmem:[%s251 + $0x78] sm:$0xf] %vm2020, %v1986
      %2052 = vst.msk [vmem:[%s251 + $0x7c] sm:$0xf] %vm2020, %v1987
      %v2053 = vsel %vm1135, %v1766, 0.0
      %v2054 = vsel %vm1135, %v1769, 0.0
      %v2055 = vadd.f32 %v2053, %v2054
      %v2056 = vsel %vm1135, %v1774, 0.0
      %v2057 = vadd.f32 %v2055, %v2056
      %v2058 = vsel %vm1135, %v1777, 0.0
      %v2059 = vadd.f32 %v2057, %v2058
      %v2060 = vsel %vm1135, %v1782, 0.0
      %v2061 = vadd.f32 %v2059, %v2060
      %v2062 = vsel %vm1135, %v1785, 0.0
      %v2063 = vadd.f32 %v2061, %v2062
      %v2064 = vsel %vm1135, %v1790, 0.0
      %v2065 = vadd.f32 %v2063, %v2064
      %v2066 = vsel %vm1135, %v1793, 0.0
      %v2067 = vadd.f32 %v2065, %v2066
      %v2068 = vsel %vm1135, %v1798, 0.0
      %v2069 = vadd.f32 %v2067, %v2068
      %v2070 = vsel %vm1135, %v1801, 0.0
      %v2071 = vadd.f32 %v2069, %v2070
      %v2072 = vsel %vm1135, %v1806, 0.0
      %v2073 = vadd.f32 %v2071, %v2072
      %v2074 = vsel %vm1135, %v1809, 0.0
      %v2075 = vadd.f32 %v2073, %v2074
      %v2076 = vsel %vm1135, %v1814, 0.0
      %v2077 = vadd.f32 %v2075, %v2076
      %v2078 = vsel %vm1135, %v1817, 0.0
      %v2079 = vadd.f32 %v2077, %v2078
      %v2080 = vsel %vm1135, %v1822, 0.0
      %v2081 = vadd.f32 %v2079, %v2080
      %v2082 = vsel %vm1135, %v1825, 0.0
      %v2083 = vadd.f32 %v2081, %v2082
      %v2084 = vsel %vm1135, %v1830, 0.0
      %v2085 = vadd.f32 %v2083, %v2084
      %v2086 = vsel %vm1135, %v1833, 0.0
      %v2087 = vadd.f32 %v2085, %v2086
      %v2088 = vsel %vm1135, %v1838, 0.0
      %v2089 = vadd.f32 %v2087, %v2088
      %v2090 = vsel %vm1135, %v1841, 0.0
      %v2091 = vadd.f32 %v2089, %v2090
      %v2092 = vsel %vm1135, %v1846, 0.0
      %v2093 = vadd.f32 %v2091, %v2092
      %v2094 = vsel %vm1135, %v1849, 0.0
      %v2095 = vadd.f32 %v2093, %v2094
      %v2096 = vsel %vm1135, %v1854, 0.0
      %v2097 = vadd.f32 %v2095, %v2096
      %v2098 = vsel %vm1135, %v1857, 0.0
      %v2099 = vadd.f32 %v2097, %v2098
      %v2100 = vsel %vm1135, %v1862, 0.0
      %v2101 = vadd.f32 %v2099, %v2100
      %v2102 = vsel %vm1135, %v1865, 0.0
      %v2103 = vadd.f32 %v2101, %v2102
      %v2104 = vsel %vm1135, %v1870, 0.0
      %v2105 = vadd.f32 %v2103, %v2104
      %v2106 = vsel %vm1135, %v1873, 0.0
      %v2107 = vadd.f32 %v2105, %v2106
      %v2108 = vsel %vm1135, %v1878, 0.0
      %v2109 = vadd.f32 %v2107, %v2108
      %v2110 = vsel %vm1135, %v1881, 0.0
      %v2111 = vadd.f32 %v2109, %v2110
      %v2112 = vsel %vm1135, %v1886, 0.0
      %v2113 = vadd.f32 %v2111, %v2112
      %v2114 = vsel %vm1135, %v1889, 0.0
      %v2115 = vadd.f32 %v2113, %v2114
      %v2116 = vrot.slane %v2115, 4
      %v2117 = vadd.f32 %v2115, %v2116
      %v2118 = vrot.slane %v2117, 2
      %v2119 = vadd.f32 %v2117, %v2118
      %v2120 = vrot.slane %v2119, 1
      %v2121 = vadd.f32 %v2119, %v2120
      %v2122 = vmul.f32 %v1766, %v1766
      %v2123 = vmul.f32 %v1769, %v1769
      %v2124 = vmul.f32 %v1774, %v1774
      %v2125 = vmul.f32 %v1777, %v1777
      %v2126 = vmul.f32 %v1782, %v1782
      %v2127 = vmul.f32 %v1785, %v1785
      %v2128 = vmul.f32 %v1790, %v1790
      %v2129 = vmul.f32 %v1793, %v1793
      %v2130 = vmul.f32 %v1798, %v1798
      %v2131 = vmul.f32 %v1801, %v1801
      %v2132 = vmul.f32 %v1806, %v1806
      %v2133 = vmul.f32 %v1809, %v1809
      %v2134 = vmul.f32 %v1814, %v1814
      %v2135 = vmul.f32 %v1817, %v1817
      %v2136 = vmul.f32 %v1822, %v1822
      %v2137 = vmul.f32 %v1825, %v1825
      %v2138 = vmul.f32 %v1830, %v1830
      %v2139 = vmul.f32 %v1833, %v1833
      %v2140 = vmul.f32 %v1838, %v1838
      %v2141 = vmul.f32 %v1841, %v1841
      %v2142 = vmul.f32 %v1846, %v1846
      %v2143 = vmul.f32 %v1849, %v1849
      %v2144 = vmul.f32 %v1854, %v1854
      %v2145 = vmul.f32 %v1857, %v1857
      %v2146 = vmul.f32 %v1862, %v1862
      %v2147 = vmul.f32 %v1865, %v1865
      %v2148 = vmul.f32 %v1870, %v1870
      %v2149 = vmul.f32 %v1873, %v1873
      %v2150 = vmul.f32 %v1878, %v1878
      %v2151 = vmul.f32 %v1881, %v1881
      %v2152 = vmul.f32 %v1886, %v1886
      %v2153 = vmul.f32 %v1889, %v1889
      %v2154 = vsel %vm1135, %v2122, 0.0
      %v2155 = vsel %vm1135, %v2123, 0.0
      %v2156 = vadd.f32 %v2154, %v2155
      %v2157 = vsel %vm1135, %v2124, 0.0
      %v2158 = vadd.f32 %v2156, %v2157
      %v2159 = vsel %vm1135, %v2125, 0.0
      %v2160 = vadd.f32 %v2158, %v2159
      %v2161 = vsel %vm1135, %v2126, 0.0
      %v2162 = vadd.f32 %v2160, %v2161
      %v2163 = vsel %vm1135, %v2127, 0.0
      %v2164 = vadd.f32 %v2162, %v2163
      %v2165 = vsel %vm1135, %v2128, 0.0
      %v2166 = vadd.f32 %v2164, %v2165
      %v2167 = vsel %vm1135, %v2129, 0.0
      %v2168 = vadd.f32 %v2166, %v2167
      %v2169 = vsel %vm1135, %v2130, 0.0
      %v2170 = vadd.f32 %v2168, %v2169
      %v2171 = vsel %vm1135, %v2131, 0.0
      %v2172 = vadd.f32 %v2170, %v2171
      %v2173 = vsel %vm1135, %v2132, 0.0
      %v2174 = vadd.f32 %v2172, %v2173
      %v2175 = vsel %vm1135, %v2133, 0.0
      %v2176 = vadd.f32 %v2174, %v2175
      %v2177 = vsel %vm1135, %v2134, 0.0
      %v2178 = vadd.f32 %v2176, %v2177
      %v2179 = vsel %vm1135, %v2135, 0.0
      %v2180 = vadd.f32 %v2178, %v2179
      %v2181 = vsel %vm1135, %v2136, 0.0
      %v2182 = vadd.f32 %v2180, %v2181
      %v2183 = vsel %vm1135, %v2137, 0.0
      %v2184 = vadd.f32 %v2182, %v2183
      %v2185 = vsel %vm1135, %v2138, 0.0
      %v2186 = vadd.f32 %v2184, %v2185
      %v2187 = vsel %vm1135, %v2139, 0.0
      %v2188 = vadd.f32 %v2186, %v2187
      %v2189 = vsel %vm1135, %v2140, 0.0
      %v2190 = vadd.f32 %v2188, %v2189
      %v2191 = vsel %vm1135, %v2141, 0.0
      %v2192 = vadd.f32 %v2190, %v2191
      %v2193 = vsel %vm1135, %v2142, 0.0
      %v2194 = vadd.f32 %v2192, %v2193
      %v2195 = vsel %vm1135, %v2143, 0.0
      %v2196 = vadd.f32 %v2194, %v2195
      %v2197 = vsel %vm1135, %v2144, 0.0
      %v2198 = vadd.f32 %v2196, %v2197
      %v2199 = vsel %vm1135, %v2145, 0.0
      %v2200 = vadd.f32 %v2198, %v2199
      %v2201 = vsel %vm1135, %v2146, 0.0
      %v2202 = vadd.f32 %v2200, %v2201
      %v2203 = vsel %vm1135, %v2147, 0.0
      %v2204 = vadd.f32 %v2202, %v2203
      %v2205 = vsel %vm1135, %v2148, 0.0
      %v2206 = vadd.f32 %v2204, %v2205
      %v2207 = vsel %vm1135, %v2149, 0.0
      %v2208 = vadd.f32 %v2206, %v2207
      %v2209 = vsel %vm1135, %v2150, 0.0
      %v2210 = vadd.f32 %v2208, %v2209
      %v2211 = vsel %vm1135, %v2151, 0.0
      %v2212 = vadd.f32 %v2210, %v2211
      %v2213 = vsel %vm1135, %v2152, 0.0
      %v2214 = vadd.f32 %v2212, %v2213
      %v2215 = vsel %vm1135, %v2153, 0.0
      %v2216 = vadd.f32 %v2214, %v2215
      %v2217 = vrot.slane %v2216, 4
      %v2218 = vadd.f32 %v2216, %v2217
      %v2219 = vrot.slane %v2218, 2
      %v2220 = vadd.f32 %v2218, %v2219
      %v2221 = vrot.slane %v2220, 1
      %v2222 = vadd.f32 %v2220, %v2221
      %v2223 = vld [vmem:[%s6] sm:$0x3]
      %vm2224 = vcmask 1040384
      %v2225 = vsel %vm2224, %v2121, %v2222
      %v2226 = vadd.f32 %v2223, %v2225
      %vm2227 = vcmask 254976
      %2228 = vst.msk [vmem:[%s6] sm:$0x3] %vm2227, %v2226
      %s2229 = smul.u32 32, %s18
      %p2230 = scmp.lt.s32.totalorder %s2229, 63
      %s2231 = scalar_select %p2230, %s2229, 63
      %s2232 = smul.addr %s2231, 4
      %s2233 = scalar_lea.vmem %s5, %s2232
      // Predicated region
      $region45: #{bottleneck_forward.5} parent=39 // pred_check
        %p2234 = pneg %p146
      $region46: #{bottleneck_forward.5} parent=39 // pred_check_branch
        %2236 = sbr.rel (%p2234) target = $region48
      $region47: #{bottleneck_forward.5} parent=39 // pred_region
        %s2237 = smul.u32 32, %s18
      $region48: #{bottleneck_forward.5} parent=39 // pred_fallthru
        _
      // Predicated region
      $region49: #{bottleneck_forward.5} parent=39 // pred_check
        %p2238 = pneg %p167
      $region50: #{bottleneck_forward.5} parent=39 // pred_check_branch
        %2240 = sbr.rel (%p2238) target = $region52
      $region51: #{bottleneck_forward.5} parent=39 // pred_region
        _
      $region52: #{bottleneck_forward.5} parent=39 // pred_fallthru
        _
      // Predicated region
      $region53: #{bottleneck_forward.5} parent=39 // pred_check
        %p2241 = pneg %p167
      $region54: #{bottleneck_forward.5} parent=39 // pred_check_branch
        %2243 = sbr.rel (%p2241) target = $region56
      $region55: #{bottleneck_forward.5} parent=39 // pred_region
        _
      $region56: #{bottleneck_forward.5} parent=39 // pred_fallthru
        _
    $region40: #{bottleneck_forward.5} parent=5 // pred_fallthru
      _
    %p2244 = scmp.le.s32.totalorder 2, %s13
    // Predicated region
    $region57: #{bottleneck_forward.5} parent=5 // pred_check
      %p2245 = pneg %p2244
    $region58: #{bottleneck_forward.5} parent=5 // pred_check_branch
      %2247 = sbr.rel (%p2245) target = $region60
    $region59: #{bottleneck_forward.5} parent=5 // pred_region
      %s2248 = ssub.s32 %s13, 2
      // Predicated region
      $region61: #{bottleneck_forward.5} parent=59 // pred_check
        %p2249 = pneg %p152
      $region62: #{bottleneck_forward.5} parent=59 // pred_check_branch
        %2251 = sbr.rel (%p2249) target = $region64
      $region63: #{bottleneck_forward.5} parent=59 // pred_region
        %s2252 = smul.u32 32, %s19
        %p2253 = scmp.lt.s32.totalorder %s2252, 63
        %s2254 = scalar_select %p2253, %s2252, 63
        %s2255 = smul.addr %s2254, 4
        %s2256 = scalar_lea.vmem %s5, %s2255
      $region64: #{bottleneck_forward.5} parent=59 // pred_fallthru
        _
    $region60: #{bottleneck_forward.5} parent=5 // pred_fallthru
      _
  $region6: #{bottleneck_forward.5} parent=0 // loop_footer
    %s17 = sadd.s32 1, %s13
  $region7: #{bottleneck_forward.5} parent=0 // loop_footer_branch
    %12 = sbr.rel target = $region3
  $region8: #{bottleneck_forward.5} parent=0 // loop_exit
    _

</llo_original>
